<compile_context>
chip_gen: v7x
topology: tpu7x:2x2x1
jax: 0.10.0
libtpu: 0.0.40
codegen_flags: <defaults>
</compile_context>

<pallas_src>
import functools

import jax
import jax.numpy as jnp
from jax.experimental import pallas as pl
from jax.experimental.pallas import tpu as pltpu


# ----------------------------------------------------------------------------- utils
def _round_up(x, m):
    return ((x + m - 1) // m) * m


def _pad2(x, rows, cols):
    pr, pc = rows - x.shape[0], cols - x.shape[1]
    return jnp.pad(x, ((0, pr), (0, pc))) if (pr or pc) else x


def _vmem_capacity_bytes():
    try:
        cap = int(pltpu.get_tpu_info().vmem_capacity_bytes)
        if cap > 0:
            return cap
    except Exception:
        pass
    return 64 * 1024 * 1024          # conservative fallback (v7x per-TensorCore VMEM)


def _vmem_limit_bytes(needed, vmem_cap):
    # Needed kernel buffers + headroom, never above ~70% of the physical VMEM.
    return int(min(0.7 * vmem_cap, max(2 * needed, 32 * 1024 * 1024)))


def _feature_pad(params, x):
    dims = [x.shape[1]] + [w.shape[1] for (w, _) in params]
    return max(128, _round_up(max(dims), 128))


def _fused_vmem_estimate(n_pad, f_pad, num_layers):
    # A + X + stacked W/b + out + ~3 live fp32 intermediates + slack.
    return (2 * n_pad * n_pad + 2 * n_pad * f_pad + 2 * num_layers * f_pad * f_pad
            + 4 * num_layers * f_pad + 16 * n_pad * f_pad + (2 << 20))


def _choose_tile(n, f_pad, vmem_cap):
    """Largest (TILE_R = TILE_K) tile whose per-step buffers fit ~half of VMEM."""
    budget = int(0.5 * vmem_cap)
    n8 = max(8, _round_up(n, 8))
    for t in (1024, 512, 256):
        if t > n8:
            continue
        per_step = (2 * t * t * 2            # A block, bf16, double-buffered
                    + 2 * t * f_pad * 2      # M block, bf16, double-buffered
                    + 2 * t * f_pad * 4      # out block, double-buffered (<= f32)
                    + t * f_pad * 4          # fp32 accumulator scratch
                    + f_pad * 8)             # bias
        padded = _round_up(n8, t)
        if per_step <= budget and padded * padded <= int(1.3 * n8 * n8):
            return t
    return 128   # minimum tile keeping A's (TILE_R, TILE_K) block (8, 128)-aligned


# ---------------------------------------------------------------- fused (A in VMEM)
def fused_gcn_kernel(a_ref, h_ref, w_ref, b_ref, out_ref, *, num_layers, num_classes):
    """All GCN layers in one invocation; A_hat and activations stay VMEM-resident.

    a_ref  : [Np, Np]     bf16  normalized adjacency (resident)
    h_ref  : [Np, Fp]     bf16  lane-padded input features
    w_ref  : [L, Fp, Fp]  bf16  lane-padded stacked weights
    b_ref  : [L, 1, Fp]   f32   lane-padded stacked biases
    out_ref: [Np, Fp]     f32   final log-softmax (padded class lanes ~= -1e30)
    """
    a = a_ref[...]
    h = h_ref[...]
    for layer in range(num_layers):
        # (H @ W) first so the big Np x Np contraction only carries Fp columns.
        hw = jnp.dot(h, w_ref[layer], preferred_element_type=jnp.float32)
        z = jnp.dot(a, hw.astype(jnp.bfloat16), preferred_element_type=jnp.float32)
        z = z + b_ref[layer]
        if layer < num_layers - 1:
            h = (z * jax.nn.sigmoid(z)).astype(jnp.bfloat16)        # SiLU, keep bf16
        else:
            # log_softmax over the real class lanes only (mask the padded lanes).
            col = jax.lax.broadcasted_iota(jnp.int32, z.shape, 1)
            z = jnp.where(col < num_classes, z, -1e30)
            zmax = jnp.max(z, axis=1, keepdims=True)
            s = z - zmax
            lse = jnp.log(jnp.sum(jnp.exp(s), axis=1, keepdims=True))
            out_ref[...] = s - lse


@functools.partial(jax.jit, static_argnames=("vmem_cap",))
def _fused_forward(a_hat, x, params, *, vmem_cap):
    n = x.shape[0]
    num_classes = params[-1][0].shape[1]
    num_layers = len(params)
    f_pad = _feature_pad(params, x)
    n_pad = _round_up(n, 128)

    a = _pad2(a_hat, n_pad, n_pad).astype(jnp.bfloat16)
    h = _pad2(x, n_pad, f_pad).astype(jnp.bfloat16)
    w_stack = jnp.stack([_pad2(w, f_pad, f_pad) for (w, _) in params]).astype(jnp.bfloat16)
    b_stack = jnp.stack([_pad2(b, 1, f_pad) for (_, b) in params]).astype(jnp.float32)

    needed = _fused_vmem_estimate(n_pad, f_pad, num_layers)
    # TODO(synk): on v7x, split the row range across the two TensorCores with
    # pl.core_map + VMEM_SHARED activations instead of running single-core.
    out = pl.pallas_call(
        functools.partial(fused_gcn_kernel, num_layers=num_layers,
                          num_classes=num_classes),
        out_shape=jax.ShapeDtypeStruct((n_pad, f_pad), jnp.float32),
        in_specs=[pl.BlockSpec(memory_space=pltpu.MemorySpace.VMEM)] * 4,
        out_specs=pl.BlockSpec(memory_space=pltpu.MemorySpace.VMEM),
        compiler_params=pltpu.CompilerParams(
            vmem_limit_bytes=_vmem_limit_bytes(needed, vmem_cap)),
    )(a, h, w_stack, b_stack)
    return out[:n, :num_classes]


# ------------------------------------------------------- tiled (per-layer, large N)
def gcn_aggregate_kernel(a_ref, m_ref, b_ref, out_ref, acc_ref, *,
                         final_layer, num_classes):
    """One (row, K) tile of OUT = act(A_hat @ M + b), with M = H @ W precomputed.

    a_ref  : [TILE_R, TILE_K]  bf16  streamed block of A_hat
    m_ref  : [TILE_K, Fp]      bf16  streamed block of M = H @ W
    b_ref  : [1, Fp]           f32   bias (resident)
    out_ref: [TILE_R, Fp]      bf16 (hidden layers) / f32 (final layer)
    acc_ref: [TILE_R, Fp]      f32   VMEM accumulator over the K axis
    """
    k = pl.program_id(1)

    @pl.when(k == 0)
    def _():
        acc_ref[...] = jnp.zeros_like(acc_ref)

    acc_ref[...] += jnp.dot(a_ref[...], m_ref[...],
                            preferred_element_type=jnp.float32)

    @pl.when(k == pl.num_programs(1) - 1)
    def _():
        z = acc_ref[...] + b_ref[...]
        if final_layer:
            col = jax.lax.broadcasted_iota(jnp.int32, z.shape, 1)
            z = jnp.where(col < num_classes, z, -1e30)
            zmax = jnp.max(z, axis=1, keepdims=True)
            s = z - zmax
            lse = jnp.log(jnp.sum(jnp.exp(s), axis=1, keepdims=True))
            out_ref[...] = (s - lse).astype(out_ref.dtype)
        else:
            out_ref[...] = (z * jax.nn.sigmoid(z)).astype(out_ref.dtype)


def _aggregate_layer(a, m, b, *, tile, f_pad, final_layer, num_classes, vmem_cap):
    n_pad = a.shape[0]
    grid = (n_pad // tile, n_pad // tile)
    out_dtype = jnp.float32 if final_layer else jnp.bfloat16
    per_step = (2 * tile * tile * 2 + 2 * tile * f_pad * 2
                + 2 * tile * f_pad * 4 + tile * f_pad * 4 + f_pad * 8)
    return pl.pallas_call(
        functools.partial(gcn_aggregate_kernel, final_layer=final_layer,
                          num_classes=num_classes),
        out_shape=jax.ShapeDtypeStruct((n_pad, f_pad), out_dtype),
        grid_spec=pltpu.PrefetchScalarGridSpec(
            num_scalar_prefetch=0,
            grid=grid,
            in_specs=[
                # A_hat blocks stream from HBM (double-buffered by Pallas).
                # TODO(synk): sweep pipeline_mode=pl.Buffered(3) here, and consider
                # int8 (v5e/v6e) or fp8 (v7x) quantized A_hat to halve the dominant
                # HBM stream (validate accuracy of the 1/sqrt(d_i d_j) weights).
                pl.BlockSpec((tile, tile), lambda r, k: (r, k)),
                pl.BlockSpec((tile, f_pad), lambda r, k: (k, 0)),
                pl.BlockSpec((1, f_pad), lambda r, k: (0, 0)),
            ],
            out_specs=pl.BlockSpec((tile, f_pad), lambda r, k: (r, 0)),
            scratch_shapes=[pltpu.VMEM((tile, f_pad), jnp.float32)],
        ),
        compiler_params=pltpu.CompilerParams(
            dimension_semantics=("parallel", "arbitrary"),
            vmem_limit_bytes=_vmem_limit_bytes(per_step, vmem_cap),
        ),
    )(a, m, b)


@functools.partial(jax.jit, static_argnames=("vmem_cap",))
def _tiled_forward(a_hat, x, params, *, vmem_cap):
    n = x.shape[0]
    num_classes = params[-1][0].shape[1]
    f_pad = _feature_pad(params, x)
    tile = _choose_tile(n, f_pad, vmem_cap)
    n_pad = _round_up(max(n, tile), tile)

    a = _pad2(a_hat, n_pad, n_pad).astype(jnp.bfloat16)
    h = _pad2(x, n_pad, f_pad).astype(jnp.bfloat16)
    for idx, (w, b) in enumerate(params):
        final = idx == len(params) - 1
        w_p = _pad2(w, f_pad, f_pad).astype(jnp.bfloat16)
        b_p = _pad2(b, 1, f_pad).astype(jnp.float32)
        # Small [N, Fp] @ [Fp, Fp] hoisted to XLA once per layer (negligible next to
        # streaming A_hat); the kernel then only aggregates A_hat against M = H @ W.
        m = jnp.dot(h, w_p, preferred_element_type=jnp.float32).astype(jnp.bfloat16)
        h = _aggregate_layer(a, m, b_p, tile=tile, f_pad=f_pad, final_layer=final,
                             num_classes=num_classes, vmem_cap=vmem_cap)
    return h[:n, :num_classes]


# ------------------------------------------------------------------------- forward
def gcn_net_forward(a_hat, x, params):
    """Forward pass of Net: 4 x (GCNConv -> x*sigmoid(x)) with final log_softmax."""
    vmem_cap = _vmem_capacity_bytes()
    n = x.shape[0]
    f_pad = _feature_pad(params, x)
    n_pad = _round_up(n, 128)
    if _fused_vmem_estimate(n_pad, f_pad, len(params)) <= int(0.55 * vmem_cap):
        # A_hat fits VMEM: fuse all layers, stream A_hat from HBM exactly once.
        return _fused_forward(a_hat, x, params, vmem_cap=vmem_cap)
    # Large graph: per-layer kernel with (row, K)-tiled A_hat streaming.
    return _tiled_forward(a_hat, x, params, vmem_cap=vmem_cap)


# --------------------------------------------------------------------- graph / init
def build_normalized_adjacency(edge_index, num_nodes):
    """Dense A_hat = D^-1/2 (A + I) D^-1/2 matching torch_geometric gcn_norm:
    duplicate edges accumulate, existing self-loops are replaced by a single
    weight-1 self-loop on every node, degrees are in-degrees (dst)."""
    src, dst = edge_index[0], edge_index[1]
    w = jnp.where(src == dst, 0.0, 1.0)                 # drop pre-existing self loops
    a = jnp.zeros((num_nodes, num_nodes), jnp.float32)
    a = a.at[dst, src].add(w)
    a = a + jnp.eye(num_nodes, dtype=jnp.float32)       # one self loop per node
    deg = jnp.sum(a, axis=1)
    d_inv_sqrt = jnp.where(deg > 0, jax.lax.rsqrt(deg), 0.0)
    return a * d_inv_sqrt[:, None] * d_inv_sqrt[None, :]


def glorot_uniform(key, fan_in, fan_out):
    limit = jnp.sqrt(6.0 / (fan_in + fan_out))
    return jax.random.uniform(key, (fan_in, fan_out), jnp.float32, -limit, limit)


def init_params(key, num_features, width, num_classes):
    dims = [num_features, width[0], width[1], width[2], num_classes]
    params = []
    for i in range(4):
        key, sub = jax.random.split(key)
        w = glorot_uniform(sub, dims[i], dims[i + 1])
        b = jnp.zeros((1, dims[i + 1]), jnp.float32)
        params.append((w, b))
    return params


def gcn_reference(a_hat, x, params):
    """Pure-JAX fp32 reference of the same forward (for correctness checks)."""
    h = x
    for idx, (w, b) in enumerate(params):
        z = a_hat @ (h @ w) + b
        if idx < len(params) - 1:
            h = z * jax.nn.sigmoid(z)
        else:
            h = jax.nn.log_softmax(z, axis=1)
    return h


# ------------------------------------------------------------------------------ main
if __name__ == "__main__":
    NUM_NODES = 256
    NUM_FEATURES = 16
    WIDTH = [32, 32, 16]
    NUM_CLASSES = 8
    NUM_EDGES = 1024

    key = jax.random.PRNGKey(0)
    k_x, k_src, k_dst, k_params = jax.random.split(key, 4)

    x = jax.random.normal(k_x, (NUM_NODES, NUM_FEATURES), jnp.float32)
    src = jax.random.randint(k_src, (NUM_EDGES,), 0, NUM_NODES)
    dst = jax.random.randint(k_dst, (NUM_EDGES,), 0, NUM_NODES)
    edge_index = jnp.stack([src, dst], axis=0)                     # [2, E]

    a_hat = build_normalized_adjacency(edge_index, NUM_NODES)      # glue (plain JAX)
    params = init_params(k_params, NUM_FEATURES, WIDTH, NUM_CLASSES)

    # Fused single-kernel path (chosen automatically at this size).
    out = gcn_net_forward(a_hat, x, params)
    jax.block_until_ready(out)

    # Also exercise the tiled per-layer path and cross-check it against the fused one.
    out_tiled = _tiled_forward(a_hat, x, params, vmem_cap=_vmem_capacity_bytes())
    jax.block_until_ready(out_tiled)

    ref = gcn_reference(a_hat, x, params)

    assert out.shape == (NUM_NODES, NUM_CLASSES)
    assert out_tiled.shape == (NUM_NODES, NUM_CLASSES)
    assert bool(jnp.all(jnp.isfinite(out)))
    row_sums = jnp.sum(jnp.exp(out), axis=1)
    assert bool(jnp.all(jnp.abs(row_sums - 1.0) < 1e-3))
    assert bool(jnp.max(jnp.abs(out - out_tiled)) < 0.1)           # both bf16 pipelines
    assert bool(jnp.max(jnp.abs(out - ref)) < 0.2)                 # vs fp32 reference

    print("KERNEL_OK")
</pallas_src>

<mosaic_0001>
module attributes {stable_mosaic.version = 11 : i64} {
  func.func @fused_gcn_kernel(%arg0: memref<256x256xbf16, #tpu.memory_space<vmem>>, %arg1: memref<256x128xbf16, #tpu.memory_space<vmem>>, %arg2: memref<4x128x128xbf16, #tpu.memory_space<vmem>>, %arg3: memref<4x1x128xf32, #tpu.memory_space<vmem>>, %arg4: memref<256x128xf32, #tpu.memory_space<vmem>>) attributes {dimension_semantics = [], scalar_prefetch = 0 : i64, scratch_operands = 0 : i64, tpu.core_type = #tpu.core_type<tc>} {
    %c0 = arith.constant 0 : index
    %c0_0 = arith.constant 0 : index
    %0 = vector.load %arg0[%c0, %c0_0] : memref<256x256xbf16, #tpu.memory_space<vmem>>, vector<256x256xbf16>
    %c0_1 = arith.constant 0 : index
    %c0_2 = arith.constant 0 : index
    %1 = vector.load %arg1[%c0_1, %c0_2] : memref<256x128xbf16, #tpu.memory_space<vmem>>, vector<256x128xbf16>
    %c0_3 = arith.constant 0 : index
    %c0_4 = arith.constant 0 : index
    %c0_5 = arith.constant 0 : index
    %2 = vector.load %arg2[%c0_3, %c0_4, %c0_5] : memref<4x128x128xbf16, #tpu.memory_space<vmem>>, vector<1x128x128xbf16>
    %3 = vector.shape_cast %2 : vector<1x128x128xbf16> to vector<128x128xbf16>
    %cst = arith.constant dense<0.000000e+00> : vector<256x128xf32>
    %4 = tpu.matmul %1, %3, %cst {dimension_numbers = #tpu.dot_dimension_numbers<[1], [0], [0], [1], [0, 0, 1, 1], [], []>} : vector<256x128xbf16>, vector<128x128xbf16>, vector<256x128xf32> -> vector<256x128xf32>
    %5 = arith.truncf %4 : vector<256x128xf32> to vector<256x128xbf16>
    %cst_6 = arith.constant dense<0.000000e+00> : vector<256x128xf32>
    %6 = tpu.matmul %0, %5, %cst_6 {dimension_numbers = #tpu.dot_dimension_numbers<[1], [0], [0], [1], [0, 0, 1, 1], [], []>} : vector<256x256xbf16>, vector<256x128xbf16>, vector<256x128xf32> -> vector<256x128xf32>
    %c0_7 = arith.constant 0 : index
    %c0_8 = arith.constant 0 : index
    %c0_9 = arith.constant 0 : index
    %7 = vector.load %arg3[%c0_7, %c0_8, %c0_9] : memref<4x1x128xf32, #tpu.memory_space<vmem>>, vector<1x1x128xf32>
    %8 = vector.shape_cast %7 : vector<1x1x128xf32> to vector<1x128xf32>
    %9 = vector.broadcast %8 : vector<1x128xf32> to vector<256x128xf32>
    %10 = arith.addf %6, %9 : vector<256x128xf32>
    %11 = arith.negf %10 : vector<256x128xf32>
    %12 = math.exp %11 : vector<256x128xf32>
    %cst_10 = arith.constant 1.000000e+00 : f32
    %13 = vector.broadcast %cst_10 : f32 to vector<256x128xf32>
    %14 = arith.addf %13, %12 : vector<256x128xf32>
    %15 = arith.divf %13, %14 : vector<256x128xf32>
    %16 = arith.mulf %10, %15 : vector<256x128xf32>
    %17 = arith.truncf %16 : vector<256x128xf32> to vector<256x128xbf16>
    %c1 = arith.constant 1 : index
    %c0_11 = arith.constant 0 : index
    %c0_12 = arith.constant 0 : index
    %18 = vector.load %arg2[%c1, %c0_11, %c0_12] : memref<4x128x128xbf16, #tpu.memory_space<vmem>>, vector<1x128x128xbf16>
    %19 = vector.shape_cast %18 : vector<1x128x128xbf16> to vector<128x128xbf16>
    %cst_13 = arith.constant dense<0.000000e+00> : vector<256x128xf32>
    %20 = tpu.matmul %17, %19, %cst_13 {dimension_numbers = #tpu.dot_dimension_numbers<[1], [0], [0], [1], [0, 0, 1, 1], [], []>} : vector<256x128xbf16>, vector<128x128xbf16>, vector<256x128xf32> -> vector<256x128xf32>
    %21 = arith.truncf %20 : vector<256x128xf32> to vector<256x128xbf16>
    %cst_14 = arith.constant dense<0.000000e+00> : vector<256x128xf32>
    %22 = tpu.matmul %0, %21, %cst_14 {dimension_numbers = #tpu.dot_dimension_numbers<[1], [0], [0], [1], [0, 0, 1, 1], [], []>} : vector<256x256xbf16>, vector<256x128xbf16>, vector<256x128xf32> -> vector<256x128xf32>
    %c1_15 = arith.constant 1 : index
    %c0_16 = arith.constant 0 : index
    %c0_17 = arith.constant 0 : index
    %23 = vector.load %arg3[%c1_15, %c0_16, %c0_17] : memref<4x1x128xf32, #tpu.memory_space<vmem>>, vector<1x1x128xf32>
    %24 = vector.shape_cast %23 : vector<1x1x128xf32> to vector<1x128xf32>
    %25 = vector.broadcast %24 : vector<1x128xf32> to vector<256x128xf32>
    %26 = arith.addf %22, %25 : vector<256x128xf32>
    %27 = arith.negf %26 : vector<256x128xf32>
    %28 = math.exp %27 : vector<256x128xf32>
    %cst_18 = arith.constant 1.000000e+00 : f32
    %29 = vector.broadcast %cst_18 : f32 to vector<256x128xf32>
    %30 = arith.addf %29, %28 : vector<256x128xf32>
    %31 = arith.divf %29, %30 : vector<256x128xf32>
    %32 = arith.mulf %26, %31 : vector<256x128xf32>
    %33 = arith.truncf %32 : vector<256x128xf32> to vector<256x128xbf16>
    %c2 = arith.constant 2 : index
    %c0_19 = arith.constant 0 : index
    %c0_20 = arith.constant 0 : index
    %34 = vector.load %arg2[%c2, %c0_19, %c0_20] : memref<4x128x128xbf16, #tpu.memory_space<vmem>>, vector<1x128x128xbf16>
    %35 = vector.shape_cast %34 : vector<1x128x128xbf16> to vector<128x128xbf16>
    %cst_21 = arith.constant dense<0.000000e+00> : vector<256x128xf32>
    %36 = tpu.matmul %33, %35, %cst_21 {dimension_numbers = #tpu.dot_dimension_numbers<[1], [0], [0], [1], [0, 0, 1, 1], [], []>} : vector<256x128xbf16>, vector<128x128xbf16>, vector<256x128xf32> -> vector<256x128xf32>
    %37 = arith.truncf %36 : vector<256x128xf32> to vector<256x128xbf16>
    %cst_22 = arith.constant dense<0.000000e+00> : vector<256x128xf32>
    %38 = tpu.matmul %0, %37, %cst_22 {dimension_numbers = #tpu.dot_dimension_numbers<[1], [0], [0], [1], [0, 0, 1, 1], [], []>} : vector<256x256xbf16>, vector<256x128xbf16>, vector<256x128xf32> -> vector<256x128xf32>
    %c2_23 = arith.constant 2 : index
    %c0_24 = arith.constant 0 : index
    %c0_25 = arith.constant 0 : index
    %39 = vector.load %arg3[%c2_23, %c0_24, %c0_25] : memref<4x1x128xf32, #tpu.memory_space<vmem>>, vector<1x1x128xf32>
    %40 = vector.shape_cast %39 : vector<1x1x128xf32> to vector<1x128xf32>
    %41 = vector.broadcast %40 : vector<1x128xf32> to vector<256x128xf32>
    %42 = arith.addf %38, %41 : vector<256x128xf32>
    %43 = arith.negf %42 : vector<256x128xf32>
    %44 = math.exp %43 : vector<256x128xf32>
    %cst_26 = arith.constant 1.000000e+00 : f32
    %45 = vector.broadcast %cst_26 : f32 to vector<256x128xf32>
    %46 = arith.addf %45, %44 : vector<256x128xf32>
    %47 = arith.divf %45, %46 : vector<256x128xf32>
    %48 = arith.mulf %42, %47 : vector<256x128xf32>
    %49 = arith.truncf %48 : vector<256x128xf32> to vector<256x128xbf16>
    %c3 = arith.constant 3 : index
    %c0_27 = arith.constant 0 : index
    %c0_28 = arith.constant 0 : index
    %50 = vector.load %arg2[%c3, %c0_27, %c0_28] : memref<4x128x128xbf16, #tpu.memory_space<vmem>>, vector<1x128x128xbf16>
    %51 = vector.shape_cast %50 : vector<1x128x128xbf16> to vector<128x128xbf16>
    %cst_29 = arith.constant dense<0.000000e+00> : vector<256x128xf32>
    %52 = tpu.matmul %49, %51, %cst_29 {dimension_numbers = #tpu.dot_dimension_numbers<[1], [0], [0], [1], [0, 0, 1, 1], [], []>} : vector<256x128xbf16>, vector<128x128xbf16>, vector<256x128xf32> -> vector<256x128xf32>
    %53 = arith.truncf %52 : vector<256x128xf32> to vector<256x128xbf16>
    %cst_30 = arith.constant dense<0.000000e+00> : vector<256x128xf32>
    %54 = tpu.matmul %0, %53, %cst_30 {dimension_numbers = #tpu.dot_dimension_numbers<[1], [0], [0], [1], [0, 0, 1, 1], [], []>} : vector<256x256xbf16>, vector<256x128xbf16>, vector<256x128xf32> -> vector<256x128xf32>
    %c3_31 = arith.constant 3 : index
    %c0_32 = arith.constant 0 : index
    %c0_33 = arith.constant 0 : index
    %55 = vector.load %arg3[%c3_31, %c0_32, %c0_33] : memref<4x1x128xf32, #tpu.memory_space<vmem>>, vector<1x1x128xf32>
    %56 = vector.shape_cast %55 : vector<1x1x128xf32> to vector<1x128xf32>
    %57 = vector.broadcast %56 : vector<1x128xf32> to vector<256x128xf32>
    %58 = arith.addf %54, %57 : vector<256x128xf32>
    %59 = tpu.iota {dimensions = array<i32: 1>} : vector<256x128xi32>
    %c8_i32 = arith.constant 8 : i32
    %60 = vector.broadcast %c8_i32 : i32 to vector<256x128xi32>
    %61 = arith.cmpi slt, %59, %60 : vector<256x128xi32>
    %cst_34 = arith.constant -1.000000e+30 : f32
    %62 = vector.broadcast %cst_34 : f32 to vector<256x128xf32>
    %63 = arith.select %61, %58, %62 : vector<256x128xi1>, vector<256x128xf32>
    %cst_35 = arith.constant dense<0xFF800000> : vector<256xf32>
    %64 = vector.multi_reduction <maximumf>, %63, %cst_35 [1] : vector<256x128xf32> to vector<256xf32>
    %65 = vector.shape_cast %64 : vector<256xf32> to vector<256x1xf32>
    %66 = vector.broadcast %65 : vector<256x1xf32> to vector<256x128xf32>
    %67 = arith.subf %63, %66 : vector<256x128xf32>
    %68 = math.exp %67 : vector<256x128xf32>
    %cst_36 = arith.constant dense<0.000000e+00> : vector<256xf32>
    %69 = vector.multi_reduction <add>, %68, %cst_36 [1] : vector<256x128xf32> to vector<256xf32>
    %70 = vector.shape_cast %69 : vector<256xf32> to vector<256x1xf32>
    %71 = math.log %70 : vector<256x1xf32>
    %72 = vector.broadcast %71 : vector<256x1xf32> to vector<256x128xf32>
    %73 = arith.subf %67, %72 : vector<256x128xf32>
    %c0_37 = arith.constant 0 : index
    %c0_38 = arith.constant 0 : index
    %74 = vector.load %arg4[%c0_37, %c0_38] : memref<256x128xf32, #tpu.memory_space<vmem>>, vector<256x128xf32>
    tpu.vector_store %arg4[%c0_37, %c0_38], %73 {strides = array<i32>} : memref<256x128xf32, #tpu.memory_space<vmem>>, vector<256x128xf32>,
    return
  }
}

</mosaic_0001>

<llo_original>
// kernel: _fused_forward.1
$region0: #{_fused_forward.1}
  #allocation0 [shape = 'u32[]', space=smem, size = 0x4, offset = 0x4, fixed_abs, tag = 'smem constant byte address 0x4 - core index']
  #allocation1 [shape = 'u32[144,128]{1,0:T(1,128)}', space=vmem, size = 0x12000, scoped, tag = 'internal scratch']
  %s0 = inlined_call_operand.vmem [shape: bf16[256,256], index: 0, kind: input, shape index: {}]
  %s1 = inlined_call_operand.vmem [shape: bf16[256,128], index: 1, kind: input, shape index: {}]
  %s2 = inlined_call_operand.vmem [shape: bf16[4,128,128], index: 2, kind: input, shape index: {}]
  %s3 = inlined_call_operand.vmem [shape: f32[4,1,128], index: 3, kind: input, shape index: {}]
  %s4 = inlined_call_operand.vmem [shape: f32[256,128], index: 4, kind: output, shape index: {}]
  %s5 = sld [smem:[#allocation0]]
  $region26: #{_fused_forward.1} parent=0
    _
  %s7 = ssub.s32 1, %s5
  %s8 = scalar_select 0, %s7, %s5
  // Predicated region
  $region2: #{_fused_forward.1} parent=0 // pred_check
    _
  $region3: #{_fused_forward.1} parent=0 // pred_check_branch
    %10 = sbr.rel (0) target = $region5
  $region4: #{_fused_forward.1} parent=0 // pred_region
    _
  $region5: #{_fused_forward.1} parent=0 // pred_fallthru
    _
  // Predicated region
  $region6: #{_fused_forward.1} parent=0 // pred_check
    _
  $region7: #{_fused_forward.1} parent=0 // pred_check_branch
    %12 = sbr.rel (0) target = $region9
  $region8: #{_fused_forward.1} parent=0 // pred_region
    _
  $region9: #{_fused_forward.1} parent=0 // pred_fallthru
    _
  // Predicated region
  $region10: #{_fused_forward.1} parent=0 // pred_check
    _
  $region11: #{_fused_forward.1} parent=0 // pred_check_branch
    %14 = sbr.rel (0) target = $region13
  $region12: #{_fused_forward.1} parent=0 // pred_region
    _
  $region13: #{_fused_forward.1} parent=0 // pred_fallthru
    _
  // Predicated region
  $region14: #{_fused_forward.1} parent=0 // pred_check
    _
  $region15: #{_fused_forward.1} parent=0 // pred_check_branch
    %16 = sbr.rel (0) target = $region17
  $region16: #{_fused_forward.1} parent=0 // pred_region
    _
  $region17: #{_fused_forward.1} parent=0 // pred_fallthru
    _
  %v18 = vld [vmem:[%s0] sm:$0xff]
  %v19 = vld [vmem:[%s0 + $0x8] sm:$0xff]
  %v20 = vld [vmem:[%s0 + $0x10] sm:$0xff]
  %v21 = vld [vmem:[%s0 + $0x18] sm:$0xff]
  %v22 = vld [vmem:[%s0 + $0x20] sm:$0xff]
  %v23 = vld [vmem:[%s0 + $0x28] sm:$0xff]
  %v24 = vld [vmem:[%s0 + $0x30] sm:$0xff]
  %v25 = vld [vmem:[%s0 + $0x38] sm:$0xff]
  %v26 = vld [vmem:[%s0 + $0x40] sm:$0xff]
  %v27 = vld [vmem:[%s0 + $0x48] sm:$0xff]
  %v28 = vld [vmem:[%s0 + $0x50] sm:$0xff]
  %v29 = vld [vmem:[%s0 + $0x58] sm:$0xff]
  %v30 = vld [vmem:[%s0 + $0x60] sm:$0xff]
  %v31 = vld [vmem:[%s0 + $0x68] sm:$0xff]
  %v32 = vld [vmem:[%s0 + $0x70] sm:$0xff]
  %v33 = vld [vmem:[%s0 + $0x78] sm:$0xff]
  %v34 = vld [vmem:[%s0 + $0x80] sm:$0xff]
  %v35 = vld [vmem:[%s0 + $0x88] sm:$0xff]
  %v36 = vld [vmem:[%s0 + $0x90] sm:$0xff]
  %v37 = vld [vmem:[%s0 + $0x98] sm:$0xff]
  %v38 = vld [vmem:[%s0 + $0xa0] sm:$0xff]
  %v39 = vld [vmem:[%s0 + $0xa8] sm:$0xff]
  %v40 = vld [vmem:[%s0 + $0xb0] sm:$0xff]
  %v41 = vld [vmem:[%s0 + $0xb8] sm:$0xff]
  %v42 = vld [vmem:[%s0 + $0xc0] sm:$0xff]
  %v43 = vld [vmem:[%s0 + $0xc8] sm:$0xff]
  %v44 = vld [vmem:[%s0 + $0xd0] sm:$0xff]
  %v45 = vld [vmem:[%s0 + $0xd8] sm:$0xff]
  %v46 = vld [vmem:[%s0 + $0xe0] sm:$0xff]
  %v47 = vld [vmem:[%s0 + $0xe8] sm:$0xff]
  %v48 = vld [vmem:[%s0 + $0xf0] sm:$0xff]
  %v49 = vld [vmem:[%s0 + $0xf8] sm:$0xff]
  %v50 = vld [vmem:[%s1] sm:$0xf]
  %v51 = vld [vmem:[%s1 + $0x4] sm:$0xf]
  %v52 = vld [vmem:[%s1 + $0x8] sm:$0xf]
  %v53 = vld [vmem:[%s1 + $0xc] sm:$0xf]
  %v54 = vld [vmem:[%s1 + $0x10] sm:$0xf]
  %v55 = vld [vmem:[%s1 + $0x14] sm:$0xf]
  %v56 = vld [vmem:[%s1 + $0x18] sm:$0xf]
  %v57 = vld [vmem:[%s1 + $0x1c] sm:$0xf]
  %v58 = vld [vmem:[%s1 + $0x20] sm:$0xf]
  %v59 = vld [vmem:[%s1 + $0x24] sm:$0xf]
  %v60 = vld [vmem:[%s1 + $0x28] sm:$0xf]
  %v61 = vld [vmem:[%s1 + $0x2c] sm:$0xf]
  %v62 = vld [vmem:[%s1 + $0x30] sm:$0xf]
  %v63 = vld [vmem:[%s1 + $0x34] sm:$0xf]
  %v64 = vld [vmem:[%s1 + $0x38] sm:$0xf]
  %v65 = vld [vmem:[%s1 + $0x3c] sm:$0xf]
  %v66 = vld [vmem:[%s1 + $0x40] sm:$0xf]
  %v67 = vld [vmem:[%s1 + $0x44] sm:$0xf]
  %v68 = vld [vmem:[%s1 + $0x48] sm:$0xf]
  %v69 = vld [vmem:[%s1 + $0x4c] sm:$0xf]
  %v70 = vld [vmem:[%s1 + $0x50] sm:$0xf]
  %v71 = vld [vmem:[%s1 + $0x54] sm:$0xf]
  %v72 = vld [vmem:[%s1 + $0x58] sm:$0xf]
  %v73 = vld [vmem:[%s1 + $0x5c] sm:$0xf]
  %v74 = vld [vmem:[%s1 + $0x60] sm:$0xf]
  %v75 = vld [vmem:[%s1 + $0x64] sm:$0xf]
  %v76 = vld [vmem:[%s1 + $0x68] sm:$0xf]
  %v77 = vld [vmem:[%s1 + $0x6c] sm:$0xf]
  %v78 = vld [vmem:[%s1 + $0x70] sm:$0xf]
  %v79 = vld [vmem:[%s1 + $0x74] sm:$0xf]
  %v80 = vld [vmem:[%s1 + $0x78] sm:$0xf]
  %v81 = vld [vmem:[%s1 + $0x7c] sm:$0xf]
  %v82 = vld [vmem:[%s2] sm:$0xf]
  %v83 = vld [vmem:[%s2 + $0x4] sm:$0xf]
  %v84 = vld [vmem:[%s2 + $0x8] sm:$0xf]
  %v85 = vld [vmem:[%s2 + $0xc] sm:$0xf]
  %v86 = vld [vmem:[%s2 + $0x10] sm:$0xf]
  %v87 = vld [vmem:[%s2 + $0x14] sm:$0xf]
  %v88 = vld [vmem:[%s2 + $0x18] sm:$0xf]
  %v89 = vld [vmem:[%s2 + $0x1c] sm:$0xf]
  %v90 = vld [vmem:[%s2 + $0x20] sm:$0xf]
  %v91 = vld [vmem:[%s2 + $0x24] sm:$0xf]
  %v92 = vld [vmem:[%s2 + $0x28] sm:$0xf]
  %v93 = vld [vmem:[%s2 + $0x2c] sm:$0xf]
  %v94 = vld [vmem:[%s2 + $0x30] sm:$0xf]
  %v95 = vld [vmem:[%s2 + $0x34] sm:$0xf]
  %v96 = vld [vmem:[%s2 + $0x38] sm:$0xf]
  %v97 = vld [vmem:[%s2 + $0x3c] sm:$0xf]
  %v130 = vunpack.c.l.b16 %v50
  %v131 = vunpack.c.l.b16 %v51
  %v132 = vunpack.c.l.b16 %v52
  %v133 = vunpack.c.l.b16 %v53
  %v134 = vunpack.c.l.b16 %v54
  %v135 = vunpack.c.l.b16 %v55
  %v136 = vunpack.c.l.b16 %v56
  %v137 = vunpack.c.l.b16 %v57
  %v138 = vunpack.c.l.b16 %v58
  %v139 = vunpack.c.l.b16 %v59
  %v140 = vunpack.c.l.b16 %v60
  %v141 = vunpack.c.l.b16 %v61
  %v142 = vunpack.c.l.b16 %v62
  %v143 = vunpack.c.l.b16 %v63
  %v144 = vunpack.c.l.b16 %v64
  %v145 = vunpack.c.l.b16 %v65
  %v146 = vunpack.c.l.b16 %v66
  %v147 = vunpack.c.l.b16 %v67
  %v148 = vunpack.c.l.b16 %v68
  %v149 = vunpack.c.l.b16 %v69
  %v150 = vunpack.c.l.b16 %v70
  %v151 = vunpack.c.l.b16 %v71
  %v152 = vunpack.c.l.b16 %v72
  %v153 = vunpack.c.l.b16 %v73
  %v154 = vunpack.c.l.b16 %v74
  %v155 = vunpack.c.l.b16 %v75
  %v156 = vunpack.c.l.b16 %v76
  %v157 = vunpack.c.l.b16 %v77
  %v158 = vunpack.c.l.b16 %v78
  %v159 = vunpack.c.l.b16 %v79
  %v160 = vunpack.c.l.b16 %v80
  %v161 = vunpack.c.l.b16 %v81
  %v162 = vpack.c.b16 %v131, %v130
  %v163 = vpack.c.b16 %v133, %v132
  %v164 = vpack.c.b16 %v135, %v134
  %v165 = vpack.c.b16 %v137, %v136
  %v166 = vpack.c.b16 %v139, %v138
  %v167 = vpack.c.b16 %v141, %v140
  %v168 = vpack.c.b16 %v143, %v142
  %v169 = vpack.c.b16 %v145, %v144
  %v170 = vpack.c.b16 %v147, %v146
  %v171 = vpack.c.b16 %v149, %v148
  %v172 = vpack.c.b16 %v151, %v150
  %v173 = vpack.c.b16 %v153, %v152
  %v174 = vpack.c.b16 %v155, %v154
  %v175 = vpack.c.b16 %v157, %v156
  %v176 = vpack.c.b16 %v159, %v158
  %v177 = vpack.c.b16 %v161, %v160
  %v210 = vunpack.c.l.b16 %v82
  %v211 = vunpack.c.l.b16 %v83
  %v212 = vunpack.c.l.b16 %v84
  %v213 = vunpack.c.l.b16 %v85
  %v214 = vunpack.c.l.b16 %v86
  %v215 = vunpack.c.l.b16 %v87
  %v216 = vunpack.c.l.b16 %v88
  %v217 = vunpack.c.l.b16 %v89
  %v218 = vunpack.c.l.b16 %v90
  %v219 = vunpack.c.l.b16 %v91
  %v220 = vunpack.c.l.b16 %v92
  %v221 = vunpack.c.l.b16 %v93
  %v222 = vunpack.c.l.b16 %v94
  %v223 = vunpack.c.l.b16 %v95
  %v224 = vunpack.c.l.b16 %v96
  %v225 = vunpack.c.l.b16 %v97
  %v226 = vpack.c.b16 %v211, %v210
  %v227 = vpack.c.b16 %v213, %v212
  %v228 = vpack.c.b16 %v215, %v214
  %v229 = vpack.c.b16 %v217, %v216
  %v230 = vpack.c.b16 %v219, %v218
  %v231 = vpack.c.b16 %v221, %v220
  %v232 = vpack.c.b16 %v223, %v222
  %v233 = vpack.c.b16 %v225, %v224
  %242 = vmatprep.subr.bf16.mxu0 0
  %243 = vmatpush1.bf16.msra.mxu0 %v226
  %244 = vmatprep.subr.bf16.mxu0 0
  %245 = vmatpush1.bf16.msra.mxu0 %v227
  %246 = vmatprep.subr.bf16.mxu0 0
  %247 = vmatpush1.bf16.msra.mxu0 %v228
  %248 = vmatprep.subr.bf16.mxu0 0
  %249 = vmatpush1.bf16.msra.mxu0 %v229
  %250 = vmatprep.subr.bf16.mxu0 0
  %251 = vmatpush1.bf16.msra.mxu0 %v230
  %252 = vmatprep.subr.bf16.mxu0 0
  %253 = vmatpush1.bf16.msra.mxu0 %v231
  %254 = vmatprep.subr.bf16.mxu0 0
  %255 = vmatpush1.bf16.msra.mxu0 %v232
  %256 = vmatprep.subr.bf16.mxu0 0
  %257 = vmatpush1.bf16.msra.mxu0 %v233
  %258 = vmatprep.subr.bf16.mxu0 0
  %259 = vmatpush1.bf16.msra.mxu0 0
  %260 = vmatprep.subr.bf16.mxu0 0
  %261 = vmatpush1.bf16.msra.mxu0 0
  %262 = vmatprep.subr.bf16.mxu0 0
  %263 = vmatpush1.bf16.msra.mxu0 0
  %264 = vmatprep.subr.bf16.mxu0 0
  %265 = vmatpush1.bf16.msra.mxu0 0
  %266 = vmatprep.subr.bf16.mxu0 0
  %267 = vmatpush1.bf16.msra.mxu0 0
  %268 = vmatprep.subr.bf16.mxu0 0
  %269 = vmatpush1.bf16.msra.mxu0 0
  %270 = vmatprep.subr.bf16.mxu0 0
  %271 = vmatpush1.bf16.msra.mxu0 0
  %272 = vmatprep.subr.bf16.mxu0 0
  %273 = vmatpush1.bf16.msra.mxu0 0
  %274 = vmatprep.mubr.bf16.mxu0 0
  %275 = vmatmul.mubr.bf16.gmra.mrb[0].mxu0 %v162
  %v276 = vpop.f32.mrb[0].mxu0
  %v277 = vadd.f32 0.0, %v276
  %v278 = vpop.f32.mrb[0].mxu0
  %v279 = vpop.f32.mrb[0].mxu0
  %v280 = vadd.f32 0.0, %v279
  %v281 = vpop.f32.mrb[0].mxu0
  %282 = vmatprep.mubr.bf16.mxu0 0
  %283 = vmatmul.mubr.bf16.gmra.mrb[0].mxu0 %v163
  %v284 = vpop.f32.mrb[0].mxu0
  %v285 = vadd.f32 0.0, %v284
  %v286 = vpop.f32.mrb[0].mxu0
  %v287 = vpop.f32.mrb[0].mxu0
  %v288 = vadd.f32 0.0, %v287
  %v289 = vpop.f32.mrb[0].mxu0
  %290 = vmatprep.mubr.bf16.mxu0 0
  %291 = vmatmul.mubr.bf16.gmra.mrb[0].mxu0 %v164
  %v292 = vpop.f32.mrb[0].mxu0
  %v293 = vadd.f32 0.0, %v292
  %v294 = vpop.f32.mrb[0].mxu0
  %v295 = vpop.f32.mrb[0].mxu0
  %v296 = vadd.f32 0.0, %v295
  %v297 = vpop.f32.mrb[0].mxu0
  %298 = vmatprep.mubr.bf16.mxu0 0
  %299 = vmatmul.mubr.bf16.gmra.mrb[0].mxu0 %v165
  %v300 = vpop.f32.mrb[0].mxu0
  %v301 = vadd.f32 0.0, %v300
  %v302 = vpop.f32.mrb[0].mxu0
  %v303 = vpop.f32.mrb[0].mxu0
  %v304 = vadd.f32 0.0, %v303
  %v305 = vpop.f32.mrb[0].mxu0
  %306 = vmatprep.mubr.bf16.mxu0 0
  %307 = vmatmul.mubr.bf16.gmra.mrb[0].mxu0 %v166
  %v308 = vpop.f32.mrb[0].mxu0
  %v309 = vadd.f32 0.0, %v308
  %v310 = vpop.f32.mrb[0].mxu0
  %v311 = vpop.f32.mrb[0].mxu0
  %v312 = vadd.f32 0.0, %v311
  %v313 = vpop.f32.mrb[0].mxu0
  %314 = vmatprep.mubr.bf16.mxu0 0
  %315 = vmatmul.mubr.bf16.gmra.mrb[0].mxu0 %v167
  %v316 = vpop.f32.mrb[0].mxu0
  %v317 = vadd.f32 0.0, %v316
  %v318 = vpop.f32.mrb[0].mxu0
  %v319 = vpop.f32.mrb[0].mxu0
  %v320 = vadd.f32 0.0, %v319
  %v321 = vpop.f32.mrb[0].mxu0
  %322 = vmatprep.mubr.bf16.mxu0 0
  %323 = vmatmul.mubr.bf16.gmra.mrb[0].mxu0 %v168
  %v324 = vpop.f32.mrb[0].mxu0
  %v325 = vadd.f32 0.0, %v324
  %v326 = vpop.f32.mrb[0].mxu0
  %v327 = vpop.f32.mrb[0].mxu0
  %v328 = vadd.f32 0.0, %v327
  %v329 = vpop.f32.mrb[0].mxu0
  %330 = vmatprep.mubr.bf16.mxu0 0
  %331 = vmatmul.mubr.bf16.gmra.mrb[0].mxu0 %v169
  %v332 = vpop.f32.mrb[0].mxu0
  %v333 = vadd.f32 0.0, %v332
  %v334 = vpop.f32.mrb[0].mxu0
  %v335 = vpop.f32.mrb[0].mxu0
  %v336 = vadd.f32 0.0, %v335
  %v337 = vpop.f32.mrb[0].mxu0
  %338 = vmatprep.mubr.bf16.mxu0 0
  %339 = vmatmul.mubr.bf16.gmra.mrb[0].mxu0 %v170
  %v340 = vpop.f32.mrb[0].mxu0
  %v341 = vadd.f32 0.0, %v340
  %v342 = vpop.f32.mrb[0].mxu0
  %v343 = vpop.f32.mrb[0].mxu0
  %v344 = vadd.f32 0.0, %v343
  %v345 = vpop.f32.mrb[0].mxu0
  %346 = vmatprep.mubr.bf16.mxu0 0
  %347 = vmatmul.mubr.bf16.gmra.mrb[0].mxu0 %v171
  %v348 = vpop.f32.mrb[0].mxu0
  %v349 = vadd.f32 0.0, %v348
  %v350 = vpop.f32.mrb[0].mxu0
  %v351 = vpop.f32.mrb[0].mxu0
  %v352 = vadd.f32 0.0, %v351
  %v353 = vpop.f32.mrb[0].mxu0
  %354 = vmatprep.mubr.bf16.mxu0 0
  %355 = vmatmul.mubr.bf16.gmra.mrb[0].mxu0 %v172
  %v356 = vpop.f32.mrb[0].mxu0
  %v357 = vadd.f32 0.0, %v356
  %v358 = vpop.f32.mrb[0].mxu0
  %v359 = vpop.f32.mrb[0].mxu0
  %v360 = vadd.f32 0.0, %v359
  %v361 = vpop.f32.mrb[0].mxu0
  %362 = vmatprep.mubr.bf16.mxu0 0
  %363 = vmatmul.mubr.bf16.gmra.mrb[0].mxu0 %v173
  %v364 = vpop.f32.mrb[0].mxu0
  %v365 = vadd.f32 0.0, %v364
  %v366 = vpop.f32.mrb[0].mxu0
  %v367 = vpop.f32.mrb[0].mxu0
  %v368 = vadd.f32 0.0, %v367
  %v369 = vpop.f32.mrb[0].mxu0
  %370 = vmatprep.mubr.bf16.mxu0 0
  %371 = vmatmul.mubr.bf16.gmra.mrb[0].mxu0 %v174
  %v372 = vpop.f32.mrb[0].mxu0
  %v373 = vadd.f32 0.0, %v372
  %v374 = vpop.f32.mrb[0].mxu0
  %v375 = vpop.f32.mrb[0].mxu0
  %v376 = vadd.f32 0.0, %v375
  %v377 = vpop.f32.mrb[0].mxu0
  %378 = vmatprep.mubr.bf16.mxu0 0
  %379 = vmatmul.mubr.bf16.gmra.mrb[0].mxu0 %v175
  %v380 = vpop.f32.mrb[0].mxu0
  %v381 = vadd.f32 0.0, %v380
  %v382 = vpop.f32.mrb[0].mxu0
  %v383 = vpop.f32.mrb[0].mxu0
  %v384 = vadd.f32 0.0, %v383
  %v385 = vpop.f32.mrb[0].mxu0
  %386 = vmatprep.mubr.bf16.mxu0 0
  %387 = vmatmul.mubr.bf16.gmra.mrb[0].mxu0 %v176
  %v388 = vpop.f32.mrb[0].mxu0
  %v389 = vadd.f32 0.0, %v388
  %v390 = vpop.f32.mrb[0].mxu0
  %v391 = vpop.f32.mrb[0].mxu0
  %v392 = vadd.f32 0.0, %v391
  %v393 = vpop.f32.mrb[0].mxu0
  %394 = vmatprep.mubr.bf16.mxu0 0
  %395 = vmatmul.mubr.bf16.gmra.mrb[0].mxu0 %v177
  %v396 = vpop.f32.mrb[0].mxu0
  %v397 = vadd.f32 0.0, %v396
  %v398 = vpop.f32.mrb[0].mxu0
  %v399 = vpop.f32.mrb[0].mxu0
  %v400 = vadd.f32 0.0, %v399
  %v401 = vpop.f32.mrb[0].mxu0
  %402 = vdwg.mxu0
  %v403 = vpack.c.bf16 %v280, %v277
  %v404 = vpack.c.bf16 %v288, %v285
  %v405 = vpack.c.bf16 %v296, %v293
  %v406 = vpack.c.bf16 %v304, %v301
  %v407 = vpack.c.bf16 %v312, %v309
  %v408 = vpack.c.bf16 %v320, %v317
  %v409 = vpack.c.bf16 %v328, %v325
  %v410 = vpack.c.bf16 %v336, %v333
  %v411 = vpack.c.bf16 %v344, %v341
  %v412 = vpack.c.bf16 %v352, %v349
  %v413 = vpack.c.bf16 %v360, %v357
  %v414 = vpack.c.bf16 %v368, %v365
  %v415 = vpack.c.bf16 %v376, %v373
  %v416 = vpack.c.bf16 %v384, %v381
  %v417 = vpack.c.bf16 %v392, %v389
  %v418 = vpack.c.bf16 %v400, %v397
  %v419 = vld [vmem:[%s3] sm:$0x1]
  %v421 = vlaneseq
  %v422 = vshrl.u32 %v421, 7
  %v423 = vsub.s32 0, %v422
  %v424 = vrot.slane %v419, %v423
  %v458 = vunpack.c.l.b16 %v18
  %v459 = vunpack.c.h.b16 %v18
  %v460 = vunpack.c.l.b16 %v19
  %v461 = vunpack.c.h.b16 %v19
  %v462 = vunpack.c.l.b16 %v20
  %v463 = vunpack.c.h.b16 %v20
  %v464 = vunpack.c.l.b16 %v21
  %v465 = vunpack.c.h.b16 %v21
  %v466 = vunpack.c.l.b16 %v22
  %v467 = vunpack.c.h.b16 %v22
  %v468 = vunpack.c.l.b16 %v23
  %v469 = vunpack.c.h.b16 %v23
  %v470 = vunpack.c.l.b16 %v24
  %v471 = vunpack.c.h.b16 %v24
  %v472 = vunpack.c.l.b16 %v25
  %v473 = vunpack.c.h.b16 %v25
  %v474 = vunpack.c.l.b16 %v26
  %v475 = vunpack.c.h.b16 %v26
  %v476 = vunpack.c.l.b16 %v27
  %v477 = vunpack.c.h.b16 %v27
  %v478 = vunpack.c.l.b16 %v28
  %v479 = vunpack.c.h.b16 %v28
  %v480 = vunpack.c.l.b16 %v29
  %v481 = vunpack.c.h.b16 %v29
  %v482 = vunpack.c.l.b16 %v30
  %v483 = vunpack.c.h.b16 %v30
  %v484 = vunpack.c.l.b16 %v31
  %v485 = vunpack.c.h.b16 %v31
  %v486 = vunpack.c.l.b16 %v32
  %v487 = vunpack.c.h.b16 %v32
  %v488 = vunpack.c.l.b16 %v33
  %v489 = vunpack.c.h.b16 %v33
  %v490 = vunpack.c.l.b16 %v34
  %v491 = vunpack.c.h.b16 %v34
  %v492 = vunpack.c.l.b16 %v35
  %v493 = vunpack.c.h.b16 %v35
  %v494 = vunpack.c.l.b16 %v36
  %v495 = vunpack.c.h.b16 %v36
  %v496 = vunpack.c.l.b16 %v37
  %v497 = vunpack.c.h.b16 %v37
  %v498 = vunpack.c.l.b16 %v38
  %v499 = vunpack.c.h.b16 %v38
  %v500 = vunpack.c.l.b16 %v39
  %v501 = vunpack.c.h.b16 %v39
  %v502 = vunpack.c.l.b16 %v40
  %v503 = vunpack.c.h.b16 %v40
  %v504 = vunpack.c.l.b16 %v41
  %v505 = vunpack.c.h.b16 %v41
  %v506 = vunpack.c.l.b16 %v42
  %v507 = vunpack.c.h.b16 %v42
  %v508 = vunpack.c.l.b16 %v43
  %v509 = vunpack.c.h.b16 %v43
  %v510 = vunpack.c.l.b16 %v44
  %v511 = vunpack.c.h.b16 %v44
  %v512 = vunpack.c.l.b16 %v45
  %v513 = vunpack.c.h.b16 %v45
  %v514 = vunpack.c.l.b16 %v46
  %v515 = vunpack.c.h.b16 %v46
  %v516 = vunpack.c.l.b16 %v47
  %v517 = vunpack.c.h.b16 %v47
  %v518 = vunpack.c.l.b16 %v48
  %v519 = vunpack.c.h.b16 %v48
  %v520 = vunpack.c.l.b16 %v49
  %v521 = vunpack.c.h.b16 %v49
  %v522 = vpack.c.b16 %v460, %v458
  %v523 = vpack.c.b16 %v461, %v459
  %v524 = vpack.c.b16 %v464, %v462
  %v525 = vpack.c.b16 %v465, %v463
  %v526 = vpack.c.b16 %v468, %v466
  %v527 = vpack.c.b16 %v469, %v467
  %v528 = vpack.c.b16 %v472, %v470
  %v529 = vpack.c.b16 %v473, %v471
  %v530 = vpack.c.b16 %v476, %v474
  %v531 = vpack.c.b16 %v477, %v475
  %v532 = vpack.c.b16 %v480, %v478
  %v533 = vpack.c.b16 %v481, %v479
  %v534 = vpack.c.b16 %v484, %v482
  %v535 = vpack.c.b16 %v485, %v483
  %v536 = vpack.c.b16 %v488, %v486
  %v537 = vpack.c.b16 %v489, %v487
  %v538 = vpack.c.b16 %v492, %v490
  %v539 = vpack.c.b16 %v493, %v491
  %v540 = vpack.c.b16 %v496, %v494
  %v541 = vpack.c.b16 %v497, %v495
  %v542 = vpack.c.b16 %v500, %v498
  %v543 = vpack.c.b16 %v501, %v499
  %v544 = vpack.c.b16 %v504, %v502
  %v545 = vpack.c.b16 %v505, %v503
  %v546 = vpack.c.b16 %v508, %v506
  %v547 = vpack.c.b16 %v509, %v507
  %v548 = vpack.c.b16 %v512, %v510
  %v549 = vpack.c.b16 %v513, %v511
  %v550 = vpack.c.b16 %v516, %v514
  %v551 = vpack.c.b16 %v517, %v515
  %v552 = vpack.c.b16 %v520, %v518
  %v553 = vpack.c.b16 %v521, %v519
  %586 = vmatprep.subr.bf16.mxu0 0
  %587 = vmatpush1.bf16.msra.mxu0 %v403
  %588 = vmatprep.subr.bf16.mxu0 0
  %589 = vmatpush1.bf16.msra.mxu0 %v404
  %590 = vmatprep.subr.bf16.mxu0 0
  %591 = vmatpush1.bf16.msra.mxu0 %v405
  %592 = vmatprep.subr.bf16.mxu0 0
  %593 = vmatpush1.bf16.msra.mxu0 %v406
  %594 = vmatprep.subr.bf16.mxu0 0
  %595 = vmatpush1.bf16.msra.mxu0 %v407
  %596 = vmatprep.subr.bf16.mxu0 0
  %597 = vmatpush1.bf16.msra.mxu0 %v408
  %598 = vmatprep.subr.bf16.mxu0 0
  %599 = vmatpush1.bf16.msra.mxu0 %v409
  %600 = vmatprep.subr.bf16.mxu0 0
  %601 = vmatpush1.bf16.msra.mxu0 %v410
  %602 = vmatprep.subr.bf16.mxu0 0
  %603 = vmatpush1.bf16.msra.mxu0 %v411
  %604 = vmatprep.subr.bf16.mxu0 0
  %605 = vmatpush1.bf16.msra.mxu0 %v412
  %606 = vmatprep.subr.bf16.mxu0 0
  %607 = vmatpush1.bf16.msra.mxu0 %v413
  %608 = vmatprep.subr.bf16.mxu0 0
  %609 = vmatpush1.bf16.msra.mxu0 %v414
  %610 = vmatprep.subr.bf16.mxu0 0
  %611 = vmatpush1.bf16.msra.mxu0 %v415
  %612 = vmatprep.subr.bf16.mxu0 0
  %613 = vmatpush1.bf16.msra.mxu0 %v416
  %614 = vmatprep.subr.bf16.mxu0 0
  %615 = vmatpush1.bf16.msra.mxu0 %v417
  %616 = vmatprep.subr.bf16.mxu0 0
  %617 = vmatpush1.bf16.msra.mxu0 %v418
  %618 = vmatprep.mubr.bf16.mxu0 %v523
  %619 = vmatmul.mubr.bf16.gmra.mrb[0].mxu0 %v522
  %v620 = vpop.f32.mrb[0].mxu0
  %v621 = vadd.f32 %v424, %v620
  %v622 = vpop.f32.mrb[0].mxu0
  %v623 = vpop.f32.mrb[0].mxu0
  %v624 = vadd.f32 %v424, %v623
  %v625 = vpop.f32.mrb[0].mxu0
  %626 = vmatprep.mubr.bf16.mxu0 %v525
  %627 = vmatmul.mubr.bf16.gmra.mrb[0].mxu0 %v524
  %v628 = vpop.f32.mrb[0].mxu0
  %v629 = vadd.f32 %v424, %v628
  %v630 = vpop.f32.mrb[0].mxu0
  %v631 = vpop.f32.mrb[0].mxu0
  %v632 = vadd.f32 %v424, %v631
  %v633 = vpop.f32.mrb[0].mxu0
  %634 = vmatprep.mubr.bf16.mxu0 %v527
  %635 = vmatmul.mubr.bf16.gmra.mrb[0].mxu0 %v526
  %v636 = vpop.f32.mrb[0].mxu0
  %v637 = vadd.f32 %v424, %v636
  %v638 = vpop.f32.mrb[0].mxu0
  %v639 = vpop.f32.mrb[0].mxu0
  %v640 = vadd.f32 %v424, %v639
  %v641 = vpop.f32.mrb[0].mxu0
  %642 = vmatprep.mubr.bf16.mxu0 %v529
  %643 = vmatmul.mubr.bf16.gmra.mrb[0].mxu0 %v528
  %v644 = vpop.f32.mrb[0].mxu0
  %v645 = vadd.f32 %v424, %v644
  %v646 = vpop.f32.mrb[0].mxu0
  %v647 = vpop.f32.mrb[0].mxu0
  %v648 = vadd.f32 %v424, %v647
  %v649 = vpop.f32.mrb[0].mxu0
  %650 = vmatprep.mubr.bf16.mxu0 %v531
  %651 = vmatmul.mubr.bf16.gmra.mrb[0].mxu0 %v530
  %v652 = vpop.f32.mrb[0].mxu0
  %v653 = vadd.f32 %v424, %v652
  %v654 = vpop.f32.mrb[0].mxu0
  %v655 = vpop.f32.mrb[0].mxu0
  %v656 = vadd.f32 %v424, %v655
  %v657 = vpop.f32.mrb[0].mxu0
  %658 = vmatprep.mubr.bf16.mxu0 %v533
  %659 = vmatmul.mubr.bf16.gmra.mrb[0].mxu0 %v532
  %v660 = vpop.f32.mrb[0].mxu0
  %v661 = vadd.f32 %v424, %v660
  %v662 = vpop.f32.mrb[0].mxu0
  %v663 = vpop.f32.mrb[0].mxu0
  %v664 = vadd.f32 %v424, %v663
  %v665 = vpop.f32.mrb[0].mxu0
  %666 = vmatprep.mubr.bf16.mxu0 %v535
  %667 = vmatmul.mubr.bf16.gmra.mrb[0].mxu0 %v534
  %v668 = vpop.f32.mrb[0].mxu0
  %v669 = vadd.f32 %v424, %v668
  %v670 = vpop.f32.mrb[0].mxu0
  %v671 = vpop.f32.mrb[0].mxu0
  %v672 = vadd.f32 %v424, %v671
  %v673 = vpop.f32.mrb[0].mxu0
  %674 = vmatprep.mubr.bf16.mxu0 %v537
  %675 = vmatmul.mubr.bf16.gmra.mrb[0].mxu0 %v536
  %v676 = vpop.f32.mrb[0].mxu0
  %v677 = vadd.f32 %v424, %v676
  %v678 = vpop.f32.mrb[0].mxu0
  %v679 = vpop.f32.mrb[0].mxu0
  %v680 = vadd.f32 %v424, %v679
  %v681 = vpop.f32.mrb[0].mxu0
  %682 = vmatprep.mubr.bf16.mxu0 %v539
  %683 = vmatmul.mubr.bf16.gmra.mrb[0].mxu0 %v538
  %v684 = vpop.f32.mrb[0].mxu0
  %v685 = vadd.f32 %v424, %v684
  %v686 = vpop.f32.mrb[0].mxu0
  %v687 = vpop.f32.mrb[0].mxu0
  %v688 = vadd.f32 %v424, %v687
  %v689 = vpop.f32.mrb[0].mxu0
  %690 = vmatprep.mubr.bf16.mxu0 %v541
  %691 = vmatmul.mubr.bf16.gmra.mrb[0].mxu0 %v540
  %v692 = vpop.f32.mrb[0].mxu0
  %v693 = vadd.f32 %v424, %v692
  %v694 = vpop.f32.mrb[0].mxu0
  %v695 = vpop.f32.mrb[0].mxu0
  %v696 = vadd.f32 %v424, %v695
  %v697 = vpop.f32.mrb[0].mxu0
  %698 = vmatprep.mubr.bf16.mxu0 %v543
  %699 = vmatmul.mubr.bf16.gmra.mrb[0].mxu0 %v542
  %v700 = vpop.f32.mrb[0].mxu0
  %v701 = vadd.f32 %v424, %v700
  %v702 = vpop.f32.mrb[0].mxu0
  %v703 = vpop.f32.mrb[0].mxu0
  %v704 = vadd.f32 %v424, %v703
  %v705 = vpop.f32.mrb[0].mxu0
  %706 = vmatprep.mubr.bf16.mxu0 %v545
  %707 = vmatmul.mubr.bf16.gmra.mrb[0].mxu0 %v544
  %v708 = vpop.f32.mrb[0].mxu0
  %v709 = vadd.f32 %v424, %v708
  %v710 = vpop.f32.mrb[0].mxu0
  %v711 = vpop.f32.mrb[0].mxu0
  %v712 = vadd.f32 %v424, %v711
  %v713 = vpop.f32.mrb[0].mxu0
  %714 = vmatprep.mubr.bf16.mxu0 %v547
  %715 = vmatmul.mubr.bf16.gmra.mrb[0].mxu0 %v546
  %v716 = vpop.f32.mrb[0].mxu0
  %v717 = vadd.f32 %v424, %v716
  %v718 = vpop.f32.mrb[0].mxu0
  %v719 = vpop.f32.mrb[0].mxu0
  %v720 = vadd.f32 %v424, %v719
  %v721 = vpop.f32.mrb[0].mxu0
  %722 = vmatprep.mubr.bf16.mxu0 %v549
  %723 = vmatmul.mubr.bf16.gmra.mrb[0].mxu0 %v548
  %v724 = vpop.f32.mrb[0].mxu0
  %v725 = vadd.f32 %v424, %v724
  %v726 = vpop.f32.mrb[0].mxu0
  %v727 = vpop.f32.mrb[0].mxu0
  %v728 = vadd.f32 %v424, %v727
  %v729 = vpop.f32.mrb[0].mxu0
  %730 = vmatprep.mubr.bf16.mxu0 %v551
  %731 = vmatmul.mubr.bf16.gmra.mrb[0].mxu0 %v550
  %v732 = vpop.f32.mrb[0].mxu0
  %v733 = vadd.f32 %v424, %v732
  %v734 = vpop.f32.mrb[0].mxu0
  %v735 = vpop.f32.mrb[0].mxu0
  %v736 = vadd.f32 %v424, %v735
  %v737 = vpop.f32.mrb[0].mxu0
  %738 = vmatprep.mubr.bf16.mxu0 %v553
  %739 = vmatmul.mubr.bf16.gmra.mrb[0].mxu0 %v552
  %v740 = vpop.f32.mrb[0].mxu0
  %v741 = vadd.f32 %v424, %v740
  %v742 = vpop.f32.mrb[0].mxu0
  %v743 = vpop.f32.mrb[0].mxu0
  %v744 = vadd.f32 %v424, %v743
  %v745 = vpop.f32.mrb[0].mxu0
  %746 = vdwg.mxu0
  %v747 = vxor.u32 %v621, 2147483648
  %v748 = vxor.u32 %v624, 2147483648
  %v749 = vxor.u32 %v629, 2147483648
  %v750 = vxor.u32 %v632, 2147483648
  %v751 = vxor.u32 %v637, 2147483648
  %v752 = vxor.u32 %v640, 2147483648
  %v753 = vxor.u32 %v645, 2147483648
  %v754 = vxor.u32 %v648, 2147483648
  %v755 = vxor.u32 %v653, 2147483648
  %v756 = vxor.u32 %v656, 2147483648
  %v757 = vxor.u32 %v661, 2147483648
  %v758 = vxor.u32 %v664, 2147483648
  %v759 = vxor.u32 %v669, 2147483648
  %v760 = vxor.u32 %v672, 2147483648
  %v761 = vxor.u32 %v677, 2147483648
  %v762 = vxor.u32 %v680, 2147483648
  %v763 = vxor.u32 %v685, 2147483648
  %v764 = vxor.u32 %v688, 2147483648
  %v765 = vxor.u32 %v693, 2147483648
  %v766 = vxor.u32 %v696, 2147483648
  %v767 = vxor.u32 %v701, 2147483648
  %v768 = vxor.u32 %v704, 2147483648
  %v769 = vxor.u32 %v709, 2147483648
  %v770 = vxor.u32 %v712, 2147483648
  %v771 = vxor.u32 %v717, 2147483648
  %v772 = vxor.u32 %v720, 2147483648
  %v773 = vxor.u32 %v725, 2147483648
  %v774 = vxor.u32 %v728, 2147483648
  %v775 = vxor.u32 %v733, 2147483648
  %v776 = vxor.u32 %v736, 2147483648
  %v777 = vxor.u32 %v741, 2147483648
  %v778 = vxor.u32 %v744, 2147483648
  %v779 = vmul.f32 %v747, 1.442695
  %v780 = vpow.pop %v779
  %v781 = vmul.f32 %v748, 1.442695
  %v782 = vpow.pop %v781
  %v783 = vmul.f32 %v749, 1.442695
  %v784 = vpow.pop %v783
  %v785 = vmul.f32 %v750, 1.442695
  %v786 = vpow.pop %v785
  %v787 = vmul.f32 %v751, 1.442695
  %v788 = vpow.pop %v787
  %v789 = vmul.f32 %v752, 1.442695
  %v790 = vpow.pop %v789
  %v791 = vmul.f32 %v753, 1.442695
  %v792 = vpow.pop %v791
  %v793 = vmul.f32 %v754, 1.442695
  %v794 = vpow.pop %v793
  %v795 = vmul.f32 %v755, 1.442695
  %v796 = vpow.pop %v795
  %v797 = vmul.f32 %v756, 1.442695
  %v798 = vpow.pop %v797
  %v799 = vmul.f32 %v757, 1.442695
  %v800 = vpow.pop %v799
  %v801 = vmul.f32 %v758, 1.442695
  %v802 = vpow.pop %v801
  %v803 = vmul.f32 %v759, 1.442695
  %v804 = vpow.pop %v803
  %v805 = vmul.f32 %v760, 1.442695
  %v806 = vpow.pop %v805
  %v807 = vmul.f32 %v761, 1.442695
  %v808 = vpow.pop %v807
  %v809 = vmul.f32 %v762, 1.442695
  %v810 = vpow.pop %v809
  %v811 = vmul.f32 %v763, 1.442695
  %v812 = vpow.pop %v811
  %v813 = vmul.f32 %v764, 1.442695
  %v814 = vpow.pop %v813
  %v815 = vmul.f32 %v765, 1.442695
  %v816 = vpow.pop %v815
  %v817 = vmul.f32 %v766, 1.442695
  %v818 = vpow.pop %v817
  %v819 = vmul.f32 %v767, 1.442695
  %v820 = vpow.pop %v819
  %v821 = vmul.f32 %v768, 1.442695
  %v822 = vpow.pop %v821
  %v823 = vmul.f32 %v769, 1.442695
  %v824 = vpow.pop %v823
  %v825 = vmul.f32 %v770, 1.442695
  %v826 = vpow.pop %v825
  %v827 = vmul.f32 %v771, 1.442695
  %v828 = vpow.pop %v827
  %v829 = vmul.f32 %v772, 1.442695
  %v830 = vpow.pop %v829
  %v831 = vmul.f32 %v773, 1.442695
  %v832 = vpow.pop %v831
  %v833 = vmul.f32 %v774, 1.442695
  %v834 = vpow.pop %v833
  %v835 = vmul.f32 %v775, 1.442695
  %v836 = vpow.pop %v835
  %v837 = vmul.f32 %v776, 1.442695
  %v838 = vpow.pop %v837
  %v839 = vmul.f32 %v777, 1.442695
  %v840 = vpow.pop %v839
  %v841 = vmul.f32 %v778, 1.442695
  %v842 = vpow.pop %v841
  %v843 = vadd.f32 %v780, 1.0
  %v844 = vadd.f32 %v782, 1.0
  %v845 = vadd.f32 %v784, 1.0
  %v846 = vadd.f32 %v786, 1.0
  %v847 = vadd.f32 %v788, 1.0
  %v848 = vadd.f32 %v790, 1.0
  %v849 = vadd.f32 %v792, 1.0
  %v850 = vadd.f32 %v794, 1.0
  %v851 = vadd.f32 %v796, 1.0
  %v852 = vadd.f32 %v798, 1.0
  %v853 = vadd.f32 %v800, 1.0
  %v854 = vadd.f32 %v802, 1.0
  %v855 = vadd.f32 %v804, 1.0
  %v856 = vadd.f32 %v806, 1.0
  %v857 = vadd.f32 %v808, 1.0
  %v858 = vadd.f32 %v810, 1.0
  %v859 = vadd.f32 %v812, 1.0
  %v860 = vadd.f32 %v814, 1.0
  %v861 = vadd.f32 %v816, 1.0
  %v862 = vadd.f32 %v818, 1.0
  %v863 = vadd.f32 %v820, 1.0
  %v864 = vadd.f32 %v822, 1.0
  %v865 = vadd.f32 %v824, 1.0
  %v866 = vadd.f32 %v826, 1.0
  %v867 = vadd.f32 %v828, 1.0
  %v868 = vadd.f32 %v830, 1.0
  %v869 = vadd.f32 %v832, 1.0
  %v870 = vadd.f32 %v834, 1.0
  %v871 = vadd.f32 %v836, 1.0
  %v872 = vadd.f32 %v838, 1.0
  %v873 = vadd.f32 %v840, 1.0
  %v874 = vadd.f32 %v842, 1.0
  %v875 = vrcp.pop %v843
  %v876 = vmul.f32 1.0, %v875
  %v877 = vrcp.pop %v844
  %v878 = vmul.f32 1.0, %v877
  %v879 = vrcp.pop %v845
  %v880 = vmul.f32 1.0, %v879
  %v881 = vrcp.pop %v846
  %v882 = vmul.f32 1.0, %v881
  %v883 = vrcp.pop %v847
  %v884 = vmul.f32 1.0, %v883
  %v885 = vrcp.pop %v848
  %v886 = vmul.f32 1.0, %v885
  %v887 = vrcp.pop %v849
  %v888 = vmul.f32 1.0, %v887
  %v889 = vrcp.pop %v850
  %v890 = vmul.f32 1.0, %v889
  %v891 = vrcp.pop %v851
  %v892 = vmul.f32 1.0, %v891
  %v893 = vrcp.pop %v852
  %v894 = vmul.f32 1.0, %v893
  %v895 = vrcp.pop %v853
  %v896 = vmul.f32 1.0, %v895
  %v897 = vrcp.pop %v854
  %v898 = vmul.f32 1.0, %v897
  %v899 = vrcp.pop %v855
  %v900 = vmul.f32 1.0, %v899
  %v901 = vrcp.pop %v856
  %v902 = vmul.f32 1.0, %v901
  %v903 = vrcp.pop %v857
  %v904 = vmul.f32 1.0, %v903
  %v905 = vrcp.pop %v858
  %v906 = vmul.f32 1.0, %v905
  %v907 = vrcp.pop %v859
  %v908 = vmul.f32 1.0, %v907
  %v909 = vrcp.pop %v860
  %v910 = vmul.f32 1.0, %v909
  %v911 = vrcp.pop %v861
  %v912 = vmul.f32 1.0, %v911
  %v913 = vrcp.pop %v862
  %v914 = vmul.f32 1.0, %v913
  %v915 = vrcp.pop %v863
  %v916 = vmul.f32 1.0, %v915
  %v917 = vrcp.pop %v864
  %v918 = vmul.f32 1.0, %v917
  %v919 = vrcp.pop %v865
  %v920 = vmul.f32 1.0, %v919
  %v921 = vrcp.pop %v866
  %v922 = vmul.f32 1.0, %v921
  %v923 = vrcp.pop %v867
  %v924 = vmul.f32 1.0, %v923
  %v925 = vrcp.pop %v868
  %v926 = vmul.f32 1.0, %v925
  %v927 = vrcp.pop %v869
  %v928 = vmul.f32 1.0, %v927
  %v929 = vrcp.pop %v870
  %v930 = vmul.f32 1.0, %v929
  %v931 = vrcp.pop %v871
  %v932 = vmul.f32 1.0, %v931
  %v933 = vrcp.pop %v872
  %v934 = vmul.f32 1.0, %v933
  %v935 = vrcp.pop %v873
  %v936 = vmul.f32 1.0, %v935
  %v937 = vrcp.pop %v874
  %v938 = vmul.f32 1.0, %v937
  %v939 = vmul.f32 %v621, %v876
  %v940 = vmul.f32 %v624, %v878
  %v941 = vmul.f32 %v629, %v880
  %v942 = vmul.f32 %v632, %v882
  %v943 = vmul.f32 %v637, %v884
  %v944 = vmul.f32 %v640, %v886
  %v945 = vmul.f32 %v645, %v888
  %v946 = vmul.f32 %v648, %v890
  %v947 = vmul.f32 %v653, %v892
  %v948 = vmul.f32 %v656, %v894
  %v949 = vmul.f32 %v661, %v896
  %v950 = vmul.f32 %v664, %v898
  %v951 = vmul.f32 %v669, %v900
  %v952 = vmul.f32 %v672, %v902
  %v953 = vmul.f32 %v677, %v904
  %v954 = vmul.f32 %v680, %v906
  %v955 = vmul.f32 %v685, %v908
  %v956 = vmul.f32 %v688, %v910
  %v957 = vmul.f32 %v693, %v912
  %v958 = vmul.f32 %v696, %v914
  %v959 = vmul.f32 %v701, %v916
  %v960 = vmul.f32 %v704, %v918
  %v961 = vmul.f32 %v709, %v920
  %v962 = vmul.f32 %v712, %v922
  %v963 = vmul.f32 %v717, %v924
  %v964 = vmul.f32 %v720, %v926
  %v965 = vmul.f32 %v725, %v928
  %v966 = vmul.f32 %v728, %v930
  %v967 = vmul.f32 %v733, %v932
  %v968 = vmul.f32 %v736, %v934
  %v969 = vmul.f32 %v741, %v936
  %v970 = vmul.f32 %v744, %v938
  %v971 = vpack.c.bf16 %v940, %v939
  %v972 = vpack.c.bf16 %v942, %v941
  %v973 = vpack.c.bf16 %v944, %v943
  %v974 = vpack.c.bf16 %v946, %v945
  %v975 = vpack.c.bf16 %v948, %v947
  %v976 = vpack.c.bf16 %v950, %v949
  %v977 = vpack.c.bf16 %v952, %v951
  %v978 = vpack.c.bf16 %v954, %v953
  %v979 = vpack.c.bf16 %v956, %v955
  %v980 = vpack.c.bf16 %v958, %v957
  %v981 = vpack.c.bf16 %v960, %v959
  %v982 = vpack.c.bf16 %v962, %v961
  %v983 = vpack.c.bf16 %v964, %v963
  %v984 = vpack.c.bf16 %v966, %v965
  %v985 = vpack.c.bf16 %v968, %v967
  %v986 = vpack.c.bf16 %v970, %v969
  %s987 = scalar_lea.vmem %s2, 64
  %v988 = vld [vmem:[%s987] sm:$0xf]
  %v989 = vld [vmem:[%s987 + $0x4] sm:$0xf]
  %v990 = vld [vmem:[%s987 + $0x8] sm:$0xf]
  %v991 = vld [vmem:[%s987 + $0xc] sm:$0xf]
  %v992 = vld [vmem:[%s987 + $0x10] sm:$0xf]
  %v993 = vld [vmem:[%s987 + $0x14] sm:$0xf]
  %v994 = vld [vmem:[%s987 + $0x18] sm:$0xf]
  %v995 = vld [vmem:[%s987 + $0x1c] sm:$0xf]
  %v996 = vld [vmem:[%s987 + $0x20] sm:$0xf]
  %v997 = vld [vmem:[%s987 + $0x24] sm:$0xf]
  %v998 = vld [vmem:[%s987 + $0x28] sm:$0xf]
  %v999 = vld [vmem:[%s987 + $0x2c] sm:$0xf]
  %v1000 = vld [vmem:[%s987 + $0x30] sm:$0xf]
  %v1001 = vld [vmem:[%s987 + $0x34] sm:$0xf]
  %v1002 = vld [vmem:[%s987 + $0x38] sm:$0xf]
  %v1003 = vld [vmem:[%s987 + $0x3c] sm:$0xf]
  %v1020 = vunpack.c.l.b16 %v988
  %v1021 = vunpack.c.l.b16 %v989
  %v1022 = vunpack.c.l.b16 %v990
  %v1023 = vunpack.c.l.b16 %v991
  %v1024 = vunpack.c.l.b16 %v992
  %v1025 = vunpack.c.l.b16 %v993
  %v1026 = vunpack.c.l.b16 %v994
  %v1027 = vunpack.c.l.b16 %v995
  %v1028 = vunpack.c.l.b16 %v996
  %v1029 = vunpack.c.l.b16 %v997
  %v1030 = vunpack.c.l.b16 %v998
  %v1031 = vunpack.c.l.b16 %v999
  %v1032 = vunpack.c.l.b16 %v1000
  %v1033 = vunpack.c.l.b16 %v1001
  %v1034 = vunpack.c.l.b16 %v1002
  %v1035 = vunpack.c.l.b16 %v1003
  %v1036 = vpack.c.b16 %v1021, %v1020
  %v1037 = vpack.c.b16 %v1023, %v1022
  %v1038 = vpack.c.b16 %v1025, %v1024
  %v1039 = vpack.c.b16 %v1027, %v1026
  %v1040 = vpack.c.b16 %v1029, %v1028
  %v1041 = vpack.c.b16 %v1031, %v1030
  %v1042 = vpack.c.b16 %v1033, %v1032
  %v1043 = vpack.c.b16 %v1035, %v1034
  %1052 = vmatprep.subr.bf16.mxu0 0
  %1053 = vmatpush1.bf16.msra.mxu0 %v1036
  %1054 = vmatprep.subr.bf16.mxu0 0
  %1055 = vmatpush1.bf16.msra.mxu0 %v1037
  %1056 = vmatprep.subr.bf16.mxu0 0
  %1057 = vmatpush1.bf16.msra.mxu0 %v1038
  %1058 = vmatprep.subr.bf16.mxu0 0
  %1059 = vmatpush1.bf16.msra.mxu0 %v1039
  %1060 = vmatprep.subr.bf16.mxu0 0
  %1061 = vmatpush1.bf16.msra.mxu0 %v1040
  %1062 = vmatprep.subr.bf16.mxu0 0
  %1063 = vmatpush1.bf16.msra.mxu0 %v1041
  %1064 = vmatprep.subr.bf16.mxu0 0
  %1065 = vmatpush1.bf16.msra.mxu0 %v1042
  %1066 = vmatprep.subr.bf16.mxu0 0
  %1067 = vmatpush1.bf16.msra.mxu0 %v1043
  %1068 = vmatprep.subr.bf16.mxu0 0
  %1069 = vmatpush1.bf16.msra.mxu0 0
  %1070 = vmatprep.subr.bf16.mxu0 0
  %1071 = vmatpush1.bf16.msra.mxu0 0
  %1072 = vmatprep.subr.bf16.mxu0 0
  %1073 = vmatpush1.bf16.msra.mxu0 0
  %1074 = vmatprep.subr.bf16.mxu0 0
  %1075 = vmatpush1.bf16.msra.mxu0 0
  %1076 = vmatprep.subr.bf16.mxu0 0
  %1077 = vmatpush1.bf16.msra.mxu0 0
  %1078 = vmatprep.subr.bf16.mxu0 0
  %1079 = vmatpush1.bf16.msra.mxu0 0
  %1080 = vmatprep.subr.bf16.mxu0 0
  %1081 = vmatpush1.bf16.msra.mxu0 0
  %1082 = vmatprep.subr.bf16.mxu0 0
  %1083 = vmatpush1.bf16.msra.mxu0 0
  %1084 = vmatprep.mubr.bf16.mxu0 0
  %1085 = vmatmul.mubr.bf16.gmra.mrb[0].mxu0 %v971
  %v1086 = vpop.f32.mrb[0].mxu0
  %v1087 = vadd.f32 0.0, %v1086
  %v1088 = vpop.f32.mrb[0].mxu0
  %v1089 = vpop.f32.mrb[0].mxu0
  %v1090 = vadd.f32 0.0, %v1089
  %v1091 = vpop.f32.mrb[0].mxu0
  %1092 = vmatprep.mubr.bf16.mxu0 0
  %1093 = vmatmul.mubr.bf16.gmra.mrb[0].mxu0 %v972
  %v1094 = vpop.f32.mrb[0].mxu0
  %v1095 = vadd.f32 0.0, %v1094
  %v1096 = vpop.f32.mrb[0].mxu0
  %v1097 = vpop.f32.mrb[0].mxu0
  %v1098 = vadd.f32 0.0, %v1097
  %v1099 = vpop.f32.mrb[0].mxu0
  %1100 = vmatprep.mubr.bf16.mxu0 0
  %1101 = vmatmul.mubr.bf16.gmra.mrb[0].mxu0 %v973
  %v1102 = vpop.f32.mrb[0].mxu0
  %v1103 = vadd.f32 0.0, %v1102
  %v1104 = vpop.f32.mrb[0].mxu0
  %v1105 = vpop.f32.mrb[0].mxu0
  %v1106 = vadd.f32 0.0, %v1105
  %v1107 = vpop.f32.mrb[0].mxu0
  %1108 = vmatprep.mubr.bf16.mxu0 0
  %1109 = vmatmul.mubr.bf16.gmra.mrb[0].mxu0 %v974
  %v1110 = vpop.f32.mrb[0].mxu0
  %v1111 = vadd.f32 0.0, %v1110
  %v1112 = vpop.f32.mrb[0].mxu0
  %v1113 = vpop.f32.mrb[0].mxu0
  %v1114 = vadd.f32 0.0, %v1113
  %v1115 = vpop.f32.mrb[0].mxu0
  %1116 = vmatprep.mubr.bf16.mxu0 0
  %1117 = vmatmul.mubr.bf16.gmra.mrb[0].mxu0 %v975
  %v1118 = vpop.f32.mrb[0].mxu0
  %v1119 = vadd.f32 0.0, %v1118
  %v1120 = vpop.f32.mrb[0].mxu0
  %v1121 = vpop.f32.mrb[0].mxu0
  %v1122 = vadd.f32 0.0, %v1121
  %v1123 = vpop.f32.mrb[0].mxu0
  %1124 = vmatprep.mubr.bf16.mxu0 0
  %1125 = vmatmul.mubr.bf16.gmra.mrb[0].mxu0 %v976
  %v1126 = vpop.f32.mrb[0].mxu0
  %v1127 = vadd.f32 0.0, %v1126
  %v1128 = vpop.f32.mrb[0].mxu0
  %v1129 = vpop.f32.mrb[0].mxu0
  %v1130 = vadd.f32 0.0, %v1129
  %v1131 = vpop.f32.mrb[0].mxu0
  %1132 = vmatprep.mubr.bf16.mxu0 0
  %1133 = vmatmul.mubr.bf16.gmra.mrb[0].mxu0 %v977
  %v1134 = vpop.f32.mrb[0].mxu0
  %v1135 = vadd.f32 0.0, %v1134
  %v1136 = vpop.f32.mrb[0].mxu0
  %v1137 = vpop.f32.mrb[0].mxu0
  %v1138 = vadd.f32 0.0, %v1137
  %v1139 = vpop.f32.mrb[0].mxu0
  %1140 = vmatprep.mubr.bf16.mxu0 0
  %1141 = vmatmul.mubr.bf16.gmra.mrb[0].mxu0 %v978
  %v1142 = vpop.f32.mrb[0].mxu0
  %v1143 = vadd.f32 0.0, %v1142
  %v1144 = vpop.f32.mrb[0].mxu0
  %v1145 = vpop.f32.mrb[0].mxu0
  %v1146 = vadd.f32 0.0, %v1145
  %v1147 = vpop.f32.mrb[0].mxu0
  %1148 = vmatprep.mubr.bf16.mxu0 0
  %1149 = vmatmul.mubr.bf16.gmra.mrb[0].mxu0 %v979
  %v1150 = vpop.f32.mrb[0].mxu0
  %v1151 = vadd.f32 0.0, %v1150
  %v1152 = vpop.f32.mrb[0].mxu0
  %v1153 = vpop.f32.mrb[0].mxu0
  %v1154 = vadd.f32 0.0, %v1153
  %v1155 = vpop.f32.mrb[0].mxu0
  %1156 = vmatprep.mubr.bf16.mxu0 0
  %1157 = vmatmul.mubr.bf16.gmra.mrb[0].mxu0 %v980
  %v1158 = vpop.f32.mrb[0].mxu0
  %v1159 = vadd.f32 0.0, %v1158
  %v1160 = vpop.f32.mrb[0].mxu0
  %v1161 = vpop.f32.mrb[0].mxu0
  %v1162 = vadd.f32 0.0, %v1161
  %v1163 = vpop.f32.mrb[0].mxu0
  %1164 = vmatprep.mubr.bf16.mxu0 0
  %1165 = vmatmul.mubr.bf16.gmra.mrb[0].mxu0 %v981
  %v1166 = vpop.f32.mrb[0].mxu0
  %v1167 = vadd.f32 0.0, %v1166
  %v1168 = vpop.f32.mrb[0].mxu0
  %v1169 = vpop.f32.mrb[0].mxu0
  %v1170 = vadd.f32 0.0, %v1169
  %v1171 = vpop.f32.mrb[0].mxu0
  %1172 = vmatprep.mubr.bf16.mxu0 0
  %1173 = vmatmul.mubr.bf16.gmra.mrb[0].mxu0 %v982
  %v1174 = vpop.f32.mrb[0].mxu0
  %v1175 = vadd.f32 0.0, %v1174
  %v1176 = vpop.f32.mrb[0].mxu0
  %v1177 = vpop.f32.mrb[0].mxu0
  %v1178 = vadd.f32 0.0, %v1177
  %v1179 = vpop.f32.mrb[0].mxu0
  %1180 = vmatprep.mubr.bf16.mxu0 0
  %1181 = vmatmul.mubr.bf16.gmra.mrb[0].mxu0 %v983
  %v1182 = vpop.f32.mrb[0].mxu0
  %v1183 = vadd.f32 0.0, %v1182
  %v1184 = vpop.f32.mrb[0].mxu0
  %v1185 = vpop.f32.mrb[0].mxu0
  %v1186 = vadd.f32 0.0, %v1185
  %v1187 = vpop.f32.mrb[0].mxu0
  %1188 = vmatprep.mubr.bf16.mxu0 0
  %1189 = vmatmul.mubr.bf16.gmra.mrb[0].mxu0 %v984
  %v1190 = vpop.f32.mrb[0].mxu0
  %v1191 = vadd.f32 0.0, %v1190
  %v1192 = vpop.f32.mrb[0].mxu0
  %v1193 = vpop.f32.mrb[0].mxu0
  %v1194 = vadd.f32 0.0, %v1193
  %v1195 = vpop.f32.mrb[0].mxu0
  %1196 = vmatprep.mubr.bf16.mxu0 0
  %1197 = vmatmul.mubr.bf16.gmra.mrb[0].mxu0 %v985
  %v1198 = vpop.f32.mrb[0].mxu0
  %v1199 = vadd.f32 0.0, %v1198
  %v1200 = vpop.f32.mrb[0].mxu0
  %v1201 = vpop.f32.mrb[0].mxu0
  %v1202 = vadd.f32 0.0, %v1201
  %v1203 = vpop.f32.mrb[0].mxu0
  %1204 = vmatprep.mubr.bf16.mxu0 0
  %1205 = vmatmul.mubr.bf16.gmra.mrb[0].mxu0 %v986
  %v1206 = vpop.f32.mrb[0].mxu0
  %v1207 = vadd.f32 0.0, %v1206
  %v1208 = vpop.f32.mrb[0].mxu0
  %v1209 = vpop.f32.mrb[0].mxu0
  %v1210 = vadd.f32 0.0, %v1209
  %v1211 = vpop.f32.mrb[0].mxu0
  %1212 = vdwg.mxu0
  %v1213 = vpack.c.bf16 %v1090, %v1087
  %v1214 = vpack.c.bf16 %v1098, %v1095
  %v1215 = vpack.c.bf16 %v1106, %v1103
  %v1216 = vpack.c.bf16 %v1114, %v1111
  %v1217 = vpack.c.bf16 %v1122, %v1119
  %v1218 = vpack.c.bf16 %v1130, %v1127
  %v1219 = vpack.c.bf16 %v1138, %v1135
  %v1220 = vpack.c.bf16 %v1146, %v1143
  %v1221 = vpack.c.bf16 %v1154, %v1151
  %v1222 = vpack.c.bf16 %v1162, %v1159
  %v1223 = vpack.c.bf16 %v1170, %v1167
  %v1224 = vpack.c.bf16 %v1178, %v1175
  %v1225 = vpack.c.bf16 %v1186, %v1183
  %v1226 = vpack.c.bf16 %v1194, %v1191
  %v1227 = vpack.c.bf16 %v1202, %v1199
  %v1228 = vpack.c.bf16 %v1210, %v1207
  %s1229 = scalar_lea.vmem %s3, 1
  %v1230 = vld [vmem:[%s1229] sm:$0x1]
  %v1232 = vlaneseq
  %v1233 = vshrl.u32 %v1232, 7
  %v1234 = vsub.s32 0, %v1233
  %v1235 = vrot.slane %v1230, %v1234
  %1237 = vmatprep.subr.bf16.mxu0 0
  %1238 = vmatpush1.bf16.msra.mxu0 %v1213
  %1239 = vmatprep.subr.bf16.mxu0 0
  %1240 = vmatpush1.bf16.msra.mxu0 %v1214
  %1241 = vmatprep.subr.bf16.mxu0 0
  %1242 = vmatpush1.bf16.msra.mxu0 %v1215
  %1243 = vmatprep.subr.bf16.mxu0 0
  %1244 = vmatpush1.bf16.msra.mxu0 %v1216
  %1245 = vmatprep.subr.bf16.mxu0 0
  %1246 = vmatpush1.bf16.msra.mxu0 %v1217
  %1247 = vmatprep.subr.bf16.mxu0 0
  %1248 = vmatpush1.bf16.msra.mxu0 %v1218
  %1249 = vmatprep.subr.bf16.mxu0 0
  %1250 = vmatpush1.bf16.msra.mxu0 %v1219
  %1251 = vmatprep.subr.bf16.mxu0 0
  %1252 = vmatpush1.bf16.msra.mxu0 %v1220
  %1253 = vmatprep.subr.bf16.mxu0 0
  %1254 = vmatpush1.bf16.msra.mxu0 %v1221
  %1255 = vmatprep.subr.bf16.mxu0 0
  %1256 = vmatpush1.bf16.msra.mxu0 %v1222
  %1257 = vmatprep.subr.bf16.mxu0 0
  %1258 = vmatpush1.bf16.msra.mxu0 %v1223
  %1259 = vmatprep.subr.bf16.mxu0 0
  %1260 = vmatpush1.bf16.msra.mxu0 %v1224
  %1261 = vmatprep.subr.bf16.mxu0 0
  %1262 = vmatpush1.bf16.msra.mxu0 %v1225
  %1263 = vmatprep.subr.bf16.mxu0 0
  %1264 = vmatpush1.bf16.msra.mxu0 %v1226
  %1265 = vmatprep.subr.bf16.mxu0 0
  %1266 = vmatpush1.bf16.msra.mxu0 %v1227
  %1267 = vmatprep.subr.bf16.mxu0 0
  %1268 = vmatpush1.bf16.msra.mxu0 %v1228
  %1269 = vmatprep.mubr.bf16.mxu0 %v523
  %1270 = vmatmul.mubr.bf16.gmra.mrb[0].mxu0 %v522
  %v1271 = vpop.f32.mrb[0].mxu0
  %v1272 = vadd.f32 %v1235, %v1271
  %v1273 = vpop.f32.mrb[0].mxu0
  %v1274 = vpop.f32.mrb[0].mxu0
  %v1275 = vadd.f32 %v1235, %v1274
  %v1276 = vpop.f32.mrb[0].mxu0
  %1277 = vmatprep.mubr.bf16.mxu0 %v525
  %1278 = vmatmul.mubr.bf16.gmra.mrb[0].mxu0 %v524
  %v1279 = vpop.f32.mrb[0].mxu0
  %v1280 = vadd.f32 %v1235, %v1279
  %v1281 = vpop.f32.mrb[0].mxu0
  %v1282 = vpop.f32.mrb[0].mxu0
  %v1283 = vadd.f32 %v1235, %v1282
  %v1284 = vpop.f32.mrb[0].mxu0
  %1285 = vmatprep.mubr.bf16.mxu0 %v527
  %1286 = vmatmul.mubr.bf16.gmra.mrb[0].mxu0 %v526
  %v1287 = vpop.f32.mrb[0].mxu0
  %v1288 = vadd.f32 %v1235, %v1287
  %v1289 = vpop.f32.mrb[0].mxu0
  %v1290 = vpop.f32.mrb[0].mxu0
  %v1291 = vadd.f32 %v1235, %v1290
  %v1292 = vpop.f32.mrb[0].mxu0
  %1293 = vmatprep.mubr.bf16.mxu0 %v529
  %1294 = vmatmul.mubr.bf16.gmra.mrb[0].mxu0 %v528
  %v1295 = vpop.f32.mrb[0].mxu0
  %v1296 = vadd.f32 %v1235, %v1295
  %v1297 = vpop.f32.mrb[0].mxu0
  %v1298 = vpop.f32.mrb[0].mxu0
  %v1299 = vadd.f32 %v1235, %v1298
  %v1300 = vpop.f32.mrb[0].mxu0
  %1301 = vmatprep.mubr.bf16.mxu0 %v531
  %1302 = vmatmul.mubr.bf16.gmra.mrb[0].mxu0 %v530
  %v1303 = vpop.f32.mrb[0].mxu0
  %v1304 = vadd.f32 %v1235, %v1303
  %v1305 = vpop.f32.mrb[0].mxu0
  %v1306 = vpop.f32.mrb[0].mxu0
  %v1307 = vadd.f32 %v1235, %v1306
  %v1308 = vpop.f32.mrb[0].mxu0
  %1309 = vmatprep.mubr.bf16.mxu0 %v533
  %1310 = vmatmul.mubr.bf16.gmra.mrb[0].mxu0 %v532
  %v1311 = vpop.f32.mrb[0].mxu0
  %v1312 = vadd.f32 %v1235, %v1311
  %v1313 = vpop.f32.mrb[0].mxu0
  %v1314 = vpop.f32.mrb[0].mxu0
  %v1315 = vadd.f32 %v1235, %v1314
  %v1316 = vpop.f32.mrb[0].mxu0
  %1317 = vmatprep.mubr.bf16.mxu0 %v535
  %1318 = vmatmul.mubr.bf16.gmra.mrb[0].mxu0 %v534
  %v1319 = vpop.f32.mrb[0].mxu0
  %v1320 = vadd.f32 %v1235, %v1319
  %v1321 = vpop.f32.mrb[0].mxu0
  %v1322 = vpop.f32.mrb[0].mxu0
  %v1323 = vadd.f32 %v1235, %v1322
  %v1324 = vpop.f32.mrb[0].mxu0
  %1325 = vmatprep.mubr.bf16.mxu0 %v537
  %1326 = vmatmul.mubr.bf16.gmra.mrb[0].mxu0 %v536
  %v1327 = vpop.f32.mrb[0].mxu0
  %v1328 = vadd.f32 %v1235, %v1327
  %v1329 = vpop.f32.mrb[0].mxu0
  %v1330 = vpop.f32.mrb[0].mxu0
  %v1331 = vadd.f32 %v1235, %v1330
  %v1332 = vpop.f32.mrb[0].mxu0
  %1333 = vmatprep.mubr.bf16.mxu0 %v539
  %1334 = vmatmul.mubr.bf16.gmra.mrb[0].mxu0 %v538
  %v1335 = vpop.f32.mrb[0].mxu0
  %v1336 = vadd.f32 %v1235, %v1335
  %v1337 = vpop.f32.mrb[0].mxu0
  %v1338 = vpop.f32.mrb[0].mxu0
  %v1339 = vadd.f32 %v1235, %v1338
  %v1340 = vpop.f32.mrb[0].mxu0
  %1341 = vmatprep.mubr.bf16.mxu0 %v541
  %1342 = vmatmul.mubr.bf16.gmra.mrb[0].mxu0 %v540
  %v1343 = vpop.f32.mrb[0].mxu0
  %v1344 = vadd.f32 %v1235, %v1343
  %v1345 = vpop.f32.mrb[0].mxu0
  %v1346 = vpop.f32.mrb[0].mxu0
  %v1347 = vadd.f32 %v1235, %v1346
  %v1348 = vpop.f32.mrb[0].mxu0
  %1349 = vmatprep.mubr.bf16.mxu0 %v543
  %1350 = vmatmul.mubr.bf16.gmra.mrb[0].mxu0 %v542
  %v1351 = vpop.f32.mrb[0].mxu0
  %v1352 = vadd.f32 %v1235, %v1351
  %v1353 = vpop.f32.mrb[0].mxu0
  %v1354 = vpop.f32.mrb[0].mxu0
  %v1355 = vadd.f32 %v1235, %v1354
  %v1356 = vpop.f32.mrb[0].mxu0
  %1357 = vmatprep.mubr.bf16.mxu0 %v545
  %1358 = vmatmul.mubr.bf16.gmra.mrb[0].mxu0 %v544
  %v1359 = vpop.f32.mrb[0].mxu0
  %v1360 = vadd.f32 %v1235, %v1359
  %v1361 = vpop.f32.mrb[0].mxu0
  %v1362 = vpop.f32.mrb[0].mxu0
  %v1363 = vadd.f32 %v1235, %v1362
  %v1364 = vpop.f32.mrb[0].mxu0
  %1365 = vmatprep.mubr.bf16.mxu0 %v547
  %1366 = vmatmul.mubr.bf16.gmra.mrb[0].mxu0 %v546
  %v1367 = vpop.f32.mrb[0].mxu0
  %v1368 = vadd.f32 %v1235, %v1367
  %v1369 = vpop.f32.mrb[0].mxu0
  %v1370 = vpop.f32.mrb[0].mxu0
  %v1371 = vadd.f32 %v1235, %v1370
  %v1372 = vpop.f32.mrb[0].mxu0
  %1373 = vmatprep.mubr.bf16.mxu0 %v549
  %1374 = vmatmul.mubr.bf16.gmra.mrb[0].mxu0 %v548
  %v1375 = vpop.f32.mrb[0].mxu0
  %v1376 = vadd.f32 %v1235, %v1375
  %v1377 = vpop.f32.mrb[0].mxu0
  %v1378 = vpop.f32.mrb[0].mxu0
  %v1379 = vadd.f32 %v1235, %v1378
  %v1380 = vpop.f32.mrb[0].mxu0
  %1381 = vmatprep.mubr.bf16.mxu0 %v551
  %1382 = vmatmul.mubr.bf16.gmra.mrb[0].mxu0 %v550
  %v1383 = vpop.f32.mrb[0].mxu0
  %v1384 = vadd.f32 %v1235, %v1383
  %v1385 = vpop.f32.mrb[0].mxu0
  %v1386 = vpop.f32.mrb[0].mxu0
  %v1387 = vadd.f32 %v1235, %v1386
  %v1388 = vpop.f32.mrb[0].mxu0
  %1389 = vmatprep.mubr.bf16.mxu0 %v553
  %1390 = vmatmul.mubr.bf16.gmra.mrb[0].mxu0 %v552
  %v1391 = vpop.f32.mrb[0].mxu0
  %v1392 = vadd.f32 %v1235, %v1391
  %v1393 = vpop.f32.mrb[0].mxu0
  %v1394 = vpop.f32.mrb[0].mxu0
  %v1395 = vadd.f32 %v1235, %v1394
  %v1396 = vpop.f32.mrb[0].mxu0
  %1397 = vdwg.mxu0
  %v1398 = vxor.u32 %v1272, 2147483648
  %v1399 = vxor.u32 %v1275, 2147483648
  %v1400 = vxor.u32 %v1280, 2147483648
  %v1401 = vxor.u32 %v1283, 2147483648
  %v1402 = vxor.u32 %v1288, 2147483648
  %v1403 = vxor.u32 %v1291, 2147483648
  %v1404 = vxor.u32 %v1296, 2147483648
  %v1405 = vxor.u32 %v1299, 2147483648
  %v1406 = vxor.u32 %v1304, 2147483648
  %v1407 = vxor.u32 %v1307, 2147483648
  %v1408 = vxor.u32 %v1312, 2147483648
  %v1409 = vxor.u32 %v1315, 2147483648
  %v1410 = vxor.u32 %v1320, 2147483648
  %v1411 = vxor.u32 %v1323, 2147483648
  %v1412 = vxor.u32 %v1328, 2147483648
  %v1413 = vxor.u32 %v1331, 2147483648
  %v1414 = vxor.u32 %v1336, 2147483648
  %v1415 = vxor.u32 %v1339, 2147483648
  %v1416 = vxor.u32 %v1344, 2147483648
  %v1417 = vxor.u32 %v1347, 2147483648
  %v1418 = vxor.u32 %v1352, 2147483648
  %v1419 = vxor.u32 %v1355, 2147483648
  %v1420 = vxor.u32 %v1360, 2147483648
  %v1421 = vxor.u32 %v1363, 2147483648
  %v1422 = vxor.u32 %v1368, 2147483648
  %v1423 = vxor.u32 %v1371, 2147483648
  %v1424 = vxor.u32 %v1376, 2147483648
  %v1425 = vxor.u32 %v1379, 2147483648
  %v1426 = vxor.u32 %v1384, 2147483648
  %v1427 = vxor.u32 %v1387, 2147483648
  %v1428 = vxor.u32 %v1392, 2147483648
  %v1429 = vxor.u32 %v1395, 2147483648
  %v1430 = vmul.f32 %v1398, 1.442695
  %v1431 = vpow.pop %v1430
  %v1432 = vmul.f32 %v1399, 1.442695
  %v1433 = vpow.pop %v1432
  %v1434 = vmul.f32 %v1400, 1.442695
  %v1435 = vpow.pop %v1434
  %v1436 = vmul.f32 %v1401, 1.442695
  %v1437 = vpow.pop %v1436
  %v1438 = vmul.f32 %v1402, 1.442695
  %v1439 = vpow.pop %v1438
  %v1440 = vmul.f32 %v1403, 1.442695
  %v1441 = vpow.pop %v1440
  %v1442 = vmul.f32 %v1404, 1.442695
  %v1443 = vpow.pop %v1442
  %v1444 = vmul.f32 %v1405, 1.442695
  %v1445 = vpow.pop %v1444
  %v1446 = vmul.f32 %v1406, 1.442695
  %v1447 = vpow.pop %v1446
  %v1448 = vmul.f32 %v1407, 1.442695
  %v1449 = vpow.pop %v1448
  %v1450 = vmul.f32 %v1408, 1.442695
  %v1451 = vpow.pop %v1450
  %v1452 = vmul.f32 %v1409, 1.442695
  %v1453 = vpow.pop %v1452
  %v1454 = vmul.f32 %v1410, 1.442695
  %v1455 = vpow.pop %v1454
  %v1456 = vmul.f32 %v1411, 1.442695
  %v1457 = vpow.pop %v1456
  %v1458 = vmul.f32 %v1412, 1.442695
  %v1459 = vpow.pop %v1458
  %v1460 = vmul.f32 %v1413, 1.442695
  %v1461 = vpow.pop %v1460
  %v1462 = vmul.f32 %v1414, 1.442695
  %v1463 = vpow.pop %v1462
  %v1464 = vmul.f32 %v1415, 1.442695
  %v1465 = vpow.pop %v1464
  %v1466 = vmul.f32 %v1416, 1.442695
  %v1467 = vpow.pop %v1466
  %v1468 = vmul.f32 %v1417, 1.442695
  %v1469 = vpow.pop %v1468
  %v1470 = vmul.f32 %v1418, 1.442695
  %v1471 = vpow.pop %v1470
  %v1472 = vmul.f32 %v1419, 1.442695
  %v1473 = vpow.pop %v1472
  %v1474 = vmul.f32 %v1420, 1.442695
  %v1475 = vpow.pop %v1474
  %v1476 = vmul.f32 %v1421, 1.442695
  %v1477 = vpow.pop %v1476
  %v1478 = vmul.f32 %v1422, 1.442695
  %v1479 = vpow.pop %v1478
  %v1480 = vmul.f32 %v1423, 1.442695
  %v1481 = vpow.pop %v1480
  %v1482 = vmul.f32 %v1424, 1.442695
  %v1483 = vpow.pop %v1482
  %v1484 = vmul.f32 %v1425, 1.442695
  %v1485 = vpow.pop %v1484
  %v1486 = vmul.f32 %v1426, 1.442695
  %v1487 = vpow.pop %v1486
  %v1488 = vmul.f32 %v1427, 1.442695
  %v1489 = vpow.pop %v1488
  %v1490 = vmul.f32 %v1428, 1.442695
  %v1491 = vpow.pop %v1490
  %v1492 = vmul.f32 %v1429, 1.442695
  %v1493 = vpow.pop %v1492
  %v1494 = vadd.f32 %v1431, 1.0
  %v1495 = vadd.f32 %v1433, 1.0
  %v1496 = vadd.f32 %v1435, 1.0
  %v1497 = vadd.f32 %v1437, 1.0
  %v1498 = vadd.f32 %v1439, 1.0
  %v1499 = vadd.f32 %v1441, 1.0
  %v1500 = vadd.f32 %v1443, 1.0
  %v1501 = vadd.f32 %v1445, 1.0
  %v1502 = vadd.f32 %v1447, 1.0
  %v1503 = vadd.f32 %v1449, 1.0
  %v1504 = vadd.f32 %v1451, 1.0
  %v1505 = vadd.f32 %v1453, 1.0
  %v1506 = vadd.f32 %v1455, 1.0
  %v1507 = vadd.f32 %v1457, 1.0
  %v1508 = vadd.f32 %v1459, 1.0
  %v1509 = vadd.f32 %v1461, 1.0
  %v1510 = vadd.f32 %v1463, 1.0
  %v1511 = vadd.f32 %v1465, 1.0
  %v1512 = vadd.f32 %v1467, 1.0
  %v1513 = vadd.f32 %v1469, 1.0
  %v1514 = vadd.f32 %v1471, 1.0
  %v1515 = vadd.f32 %v1473, 1.0
  %v1516 = vadd.f32 %v1475, 1.0
  %v1517 = vadd.f32 %v1477, 1.0
  %v1518 = vadd.f32 %v1479, 1.0
  %v1519 = vadd.f32 %v1481, 1.0
  %v1520 = vadd.f32 %v1483, 1.0
  %v1521 = vadd.f32 %v1485, 1.0
  %v1522 = vadd.f32 %v1487, 1.0
  %v1523 = vadd.f32 %v1489, 1.0
  %v1524 = vadd.f32 %v1491, 1.0
  %v1525 = vadd.f32 %v1493, 1.0
  %v1526 = vrcp.pop %v1494
  %v1527 = vmul.f32 1.0, %v1526
  %v1528 = vrcp.pop %v1495
  %v1529 = vmul.f32 1.0, %v1528
  %v1530 = vrcp.pop %v1496
  %v1531 = vmul.f32 1.0, %v1530
  %v1532 = vrcp.pop %v1497
  %v1533 = vmul.f32 1.0, %v1532
  %v1534 = vrcp.pop %v1498
  %v1535 = vmul.f32 1.0, %v1534
  %v1536 = vrcp.pop %v1499
  %v1537 = vmul.f32 1.0, %v1536
  %v1538 = vrcp.pop %v1500
  %v1539 = vmul.f32 1.0, %v1538
  %v1540 = vrcp.pop %v1501
  %v1541 = vmul.f32 1.0, %v1540
  %v1542 = vrcp.pop %v1502
  %v1543 = vmul.f32 1.0, %v1542
  %v1544 = vrcp.pop %v1503
  %v1545 = vmul.f32 1.0, %v1544
  %v1546 = vrcp.pop %v1504
  %v1547 = vmul.f32 1.0, %v1546
  %v1548 = vrcp.pop %v1505
  %v1549 = vmul.f32 1.0, %v1548
  %v1550 = vrcp.pop %v1506
  %v1551 = vmul.f32 1.0, %v1550
  %v1552 = vrcp.pop %v1507
  %v1553 = vmul.f32 1.0, %v1552
  %v1554 = vrcp.pop %v1508
  %v1555 = vmul.f32 1.0, %v1554
  %v1556 = vrcp.pop %v1509
  %v1557 = vmul.f32 1.0, %v1556
  %v1558 = vrcp.pop %v1510
  %v1559 = vmul.f32 1.0, %v1558
  %v1560 = vrcp.pop %v1511
  %v1561 = vmul.f32 1.0, %v1560
  %v1562 = vrcp.pop %v1512
  %v1563 = vmul.f32 1.0, %v1562
  %v1564 = vrcp.pop %v1513
  %v1565 = vmul.f32 1.0, %v1564
  %v1566 = vrcp.pop %v1514
  %v1567 = vmul.f32 1.0, %v1566
  %v1568 = vrcp.pop %v1515
  %v1569 = vmul.f32 1.0, %v1568
  %v1570 = vrcp.pop %v1516
  %v1571 = vmul.f32 1.0, %v1570
  %v1572 = vrcp.pop %v1517
  %v1573 = vmul.f32 1.0, %v1572
  %v1574 = vrcp.pop %v1518
  %v1575 = vmul.f32 1.0, %v1574
  %v1576 = vrcp.pop %v1519
  %v1577 = vmul.f32 1.0, %v1576
  %v1578 = vrcp.pop %v1520
  %v1579 = vmul.f32 1.0, %v1578
  %v1580 = vrcp.pop %v1521
  %v1581 = vmul.f32 1.0, %v1580
  %v1582 = vrcp.pop %v1522
  %v1583 = vmul.f32 1.0, %v1582
  %v1584 = vrcp.pop %v1523
  %v1585 = vmul.f32 1.0, %v1584
  %v1586 = vrcp.pop %v1524
  %v1587 = vmul.f32 1.0, %v1586
  %v1588 = vrcp.pop %v1525
  %v1589 = vmul.f32 1.0, %v1588
  %v1590 = vmul.f32 %v1272, %v1527
  %v1591 = vmul.f32 %v1275, %v1529
  %v1592 = vmul.f32 %v1280, %v1531
  %v1593 = vmul.f32 %v1283, %v1533
  %v1594 = vmul.f32 %v1288, %v1535
  %v1595 = vmul.f32 %v1291, %v1537
  %v1596 = vmul.f32 %v1296, %v1539
  %v1597 = vmul.f32 %v1299, %v1541
  %v1598 = vmul.f32 %v1304, %v1543
  %v1599 = vmul.f32 %v1307, %v1545
  %v1600 = vmul.f32 %v1312, %v1547
  %v1601 = vmul.f32 %v1315, %v1549
  %v1602 = vmul.f32 %v1320, %v1551
  %v1603 = vmul.f32 %v1323, %v1553
  %v1604 = vmul.f32 %v1328, %v1555
  %v1605 = vmul.f32 %v1331, %v1557
  %v1606 = vmul.f32 %v1336, %v1559
  %v1607 = vmul.f32 %v1339, %v1561
  %v1608 = vmul.f32 %v1344, %v1563
  %v1609 = vmul.f32 %v1347, %v1565
  %v1610 = vmul.f32 %v1352, %v1567
  %v1611 = vmul.f32 %v1355, %v1569
  %v1612 = vmul.f32 %v1360, %v1571
  %v1613 = vmul.f32 %v1363, %v1573
  %v1614 = vmul.f32 %v1368, %v1575
  %v1615 = vmul.f32 %v1371, %v1577
  %v1616 = vmul.f32 %v1376, %v1579
  %v1617 = vmul.f32 %v1379, %v1581
  %v1618 = vmul.f32 %v1384, %v1583
  %v1619 = vmul.f32 %v1387, %v1585
  %v1620 = vmul.f32 %v1392, %v1587
  %v1621 = vmul.f32 %v1395, %v1589
  %v1622 = vpack.c.bf16 %v1591, %v1590
  %v1623 = vpack.c.bf16 %v1593, %v1592
  %v1624 = vpack.c.bf16 %v1595, %v1594
  %v1625 = vpack.c.bf16 %v1597, %v1596
  %v1626 = vpack.c.bf16 %v1599, %v1598
  %v1627 = vpack.c.bf16 %v1601, %v1600
  %v1628 = vpack.c.bf16 %v1603, %v1602
  %v1629 = vpack.c.bf16 %v1605, %v1604
  %v1630 = vpack.c.bf16 %v1607, %v1606
  %v1631 = vpack.c.bf16 %v1609, %v1608
  %v1632 = vpack.c.bf16 %v1611, %v1610
  %v1633 = vpack.c.bf16 %v1613, %v1612
  %v1634 = vpack.c.bf16 %v1615, %v1614
  %v1635 = vpack.c.bf16 %v1617, %v1616
  %v1636 = vpack.c.bf16 %v1619, %v1618
  %v1637 = vpack.c.bf16 %v1621, %v1620
  %s1638 = scalar_lea.vmem %s2, 128
  %v1639 = vld [vmem:[%s1638] sm:$0xf]
  %v1640 = vld [vmem:[%s1638 + $0x4] sm:$0xf]
  %v1641 = vld [vmem:[%s1638 + $0x8] sm:$0xf]
  %v1642 = vld [vmem:[%s1638 + $0xc] sm:$0xf]
  %v1643 = vld [vmem:[%s1638 + $0x10] sm:$0xf]
  %v1644 = vld [vmem:[%s1638 + $0x14] sm:$0xf]
  %v1645 = vld [vmem:[%s1638 + $0x18] sm:$0xf]
  %v1646 = vld [vmem:[%s1638 + $0x1c] sm:$0xf]
  %v1647 = vld [vmem:[%s1638 + $0x20] sm:$0xf]
  %v1648 = vld [vmem:[%s1638 + $0x24] sm:$0xf]
  %v1649 = vld [vmem:[%s1638 + $0x28] sm:$0xf]
  %v1650 = vld [vmem:[%s1638 + $0x2c] sm:$0xf]
  %v1651 = vld [vmem:[%s1638 + $0x30] sm:$0xf]
  %v1652 = vld [vmem:[%s1638 + $0x34] sm:$0xf]
  %v1653 = vld [vmem:[%s1638 + $0x38] sm:$0xf]
  %v1654 = vld [vmem:[%s1638 + $0x3c] sm:$0xf]
  %v1671 = vunpack.c.l.b16 %v1639
  %v1672 = vunpack.c.l.b16 %v1640
  %v1673 = vunpack.c.l.b16 %v1641
  %v1674 = vunpack.c.l.b16 %v1642
  %v1675 = vunpack.c.l.b16 %v1643
  %v1676 = vunpack.c.l.b16 %v1644
  %v1677 = vunpack.c.l.b16 %v1645
  %v1678 = vunpack.c.l.b16 %v1646
  %v1679 = vunpack.c.l.b16 %v1647
  %v1680 = vunpack.c.l.b16 %v1648
  %v1681 = vunpack.c.l.b16 %v1649
  %v1682 = vunpack.c.l.b16 %v1650
  %v1683 = vunpack.c.l.b16 %v1651
  %v1684 = vunpack.c.l.b16 %v1652
  %v1685 = vunpack.c.l.b16 %v1653
  %v1686 = vunpack.c.l.b16 %v1654
  %v1687 = vpack.c.b16 %v1672, %v1671
  %v1688 = vpack.c.b16 %v1674, %v1673
  %v1689 = vpack.c.b16 %v1676, %v1675
  %v1690 = vpack.c.b16 %v1678, %v1677
  %v1691 = vpack.c.b16 %v1680, %v1679
  %v1692 = vpack.c.b16 %v1682, %v1681
  %v1693 = vpack.c.b16 %v1684, %v1683
  %v1694 = vpack.c.b16 %v1686, %v1685
  %1703 = vmatprep.subr.bf16.mxu0 0
  %1704 = vmatpush1.bf16.msra.mxu0 %v1687
  %1705 = vmatprep.subr.bf16.mxu0 0
  %1706 = vmatpush1.bf16.msra.mxu0 %v1688
  %1707 = vmatprep.subr.bf16.mxu0 0
  %1708 = vmatpush1.bf16.msra.mxu0 %v1689
  %1709 = vmatprep.subr.bf16.mxu0 0
  %1710 = vmatpush1.bf16.msra.mxu0 %v1690
  %1711 = vmatprep.subr.bf16.mxu0 0
  %1712 = vmatpush1.bf16.msra.mxu0 %v1691
  %1713 = vmatprep.subr.bf16.mxu0 0
  %1714 = vmatpush1.bf16.msra.mxu0 %v1692
  %1715 = vmatprep.subr.bf16.mxu0 0
  %1716 = vmatpush1.bf16.msra.mxu0 %v1693
  %1717 = vmatprep.subr.bf16.mxu0 0
  %1718 = vmatpush1.bf16.msra.mxu0 %v1694
  %1719 = vmatprep.subr.bf16.mxu0 0
  %1720 = vmatpush1.bf16.msra.mxu0 0
  %1721 = vmatprep.subr.bf16.mxu0 0
  %1722 = vmatpush1.bf16.msra.mxu0 0
  %1723 = vmatprep.subr.bf16.mxu0 0
  %1724 = vmatpush1.bf16.msra.mxu0 0
  %1725 = vmatprep.subr.bf16.mxu0 0
  %1726 = vmatpush1.bf16.msra.mxu0 0
  %1727 = vmatprep.subr.bf16.mxu0 0
  %1728 = vmatpush1.bf16.msra.mxu0 0
  %1729 = vmatprep.subr.bf16.mxu0 0
  %1730 = vmatpush1.bf16.msra.mxu0 0
  %1731 = vmatprep.subr.bf16.mxu0 0
  %1732 = vmatpush1.bf16.msra.mxu0 0
  %1733 = vmatprep.subr.bf16.mxu0 0
  %1734 = vmatpush1.bf16.msra.mxu0 0
  %1735 = vmatprep.mubr.bf16.mxu0 0
  %1736 = vmatmul.mubr.bf16.gmra.mrb[0].mxu0 %v1622
  %v1737 = vpop.f32.mrb[0].mxu0
  %v1738 = vadd.f32 0.0, %v1737
  %v1739 = vpop.f32.mrb[0].mxu0
  %v1740 = vpop.f32.mrb[0].mxu0
  %v1741 = vadd.f32 0.0, %v1740
  %v1742 = vpop.f32.mrb[0].mxu0
  %1743 = vmatprep.mubr.bf16.mxu0 0
  %1744 = vmatmul.mubr.bf16.gmra.mrb[0].mxu0 %v1623
  %v1745 = vpop.f32.mrb[0].mxu0
  %v1746 = vadd.f32 0.0, %v1745
  %v1747 = vpop.f32.mrb[0].mxu0
  %v1748 = vpop.f32.mrb[0].mxu0
  %v1749 = vadd.f32 0.0, %v1748
  %v1750 = vpop.f32.mrb[0].mxu0
  %1751 = vmatprep.mubr.bf16.mxu0 0
  %1752 = vmatmul.mubr.bf16.gmra.mrb[0].mxu0 %v1624
  %v1753 = vpop.f32.mrb[0].mxu0
  %v1754 = vadd.f32 0.0, %v1753
  %v1755 = vpop.f32.mrb[0].mxu0
  %v1756 = vpop.f32.mrb[0].mxu0
  %v1757 = vadd.f32 0.0, %v1756
  %v1758 = vpop.f32.mrb[0].mxu0
  %1759 = vmatprep.mubr.bf16.mxu0 0
  %1760 = vmatmul.mubr.bf16.gmra.mrb[0].mxu0 %v1625
  %v1761 = vpop.f32.mrb[0].mxu0
  %v1762 = vadd.f32 0.0, %v1761
  %v1763 = vpop.f32.mrb[0].mxu0
  %v1764 = vpop.f32.mrb[0].mxu0
  %v1765 = vadd.f32 0.0, %v1764
  %v1766 = vpop.f32.mrb[0].mxu0
  %1767 = vmatprep.mubr.bf16.mxu0 0
  %1768 = vmatmul.mubr.bf16.gmra.mrb[0].mxu0 %v1626
  %v1769 = vpop.f32.mrb[0].mxu0
  %v1770 = vadd.f32 0.0, %v1769
  %v1771 = vpop.f32.mrb[0].mxu0
  %v1772 = vpop.f32.mrb[0].mxu0
  %v1773 = vadd.f32 0.0, %v1772
  %v1774 = vpop.f32.mrb[0].mxu0
  %1775 = vmatprep.mubr.bf16.mxu0 0
  %1776 = vmatmul.mubr.bf16.gmra.mrb[0].mxu0 %v1627
  %v1777 = vpop.f32.mrb[0].mxu0
  %v1778 = vadd.f32 0.0, %v1777
  %v1779 = vpop.f32.mrb[0].mxu0
  %v1780 = vpop.f32.mrb[0].mxu0
  %v1781 = vadd.f32 0.0, %v1780
  %v1782 = vpop.f32.mrb[0].mxu0
  %1783 = vmatprep.mubr.bf16.mxu0 0
  %1784 = vmatmul.mubr.bf16.gmra.mrb[0].mxu0 %v1628
  %v1785 = vpop.f32.mrb[0].mxu0
  %v1786 = vadd.f32 0.0, %v1785
  %v1787 = vpop.f32.mrb[0].mxu0
  %v1788 = vpop.f32.mrb[0].mxu0
  %v1789 = vadd.f32 0.0, %v1788
  %v1790 = vpop.f32.mrb[0].mxu0
  %1791 = vmatprep.mubr.bf16.mxu0 0
  %1792 = vmatmul.mubr.bf16.gmra.mrb[0].mxu0 %v1629
  %v1793 = vpop.f32.mrb[0].mxu0
  %v1794 = vadd.f32 0.0, %v1793
  %v1795 = vpop.f32.mrb[0].mxu0
  %v1796 = vpop.f32.mrb[0].mxu0
  %v1797 = vadd.f32 0.0, %v1796
  %v1798 = vpop.f32.mrb[0].mxu0
  %1799 = vmatprep.mubr.bf16.mxu0 0
  %1800 = vmatmul.mubr.bf16.gmra.mrb[0].mxu0 %v1630
  %v1801 = vpop.f32.mrb[0].mxu0
  %v1802 = vadd.f32 0.0, %v1801
  %v1803 = vpop.f32.mrb[0].mxu0
  %v1804 = vpop.f32.mrb[0].mxu0
  %v1805 = vadd.f32 0.0, %v1804
  %v1806 = vpop.f32.mrb[0].mxu0
  %1807 = vmatprep.mubr.bf16.mxu0 0
  %1808 = vmatmul.mubr.bf16.gmra.mrb[0].mxu0 %v1631
  %v1809 = vpop.f32.mrb[0].mxu0
  %v1810 = vadd.f32 0.0, %v1809
  %v1811 = vpop.f32.mrb[0].mxu0
  %v1812 = vpop.f32.mrb[0].mxu0
  %v1813 = vadd.f32 0.0, %v1812
  %v1814 = vpop.f32.mrb[0].mxu0
  %1815 = vmatprep.mubr.bf16.mxu0 0
  %1816 = vmatmul.mubr.bf16.gmra.mrb[0].mxu0 %v1632
  %v1817 = vpop.f32.mrb[0].mxu0
  %v1818 = vadd.f32 0.0, %v1817
  %v1819 = vpop.f32.mrb[0].mxu0
  %v1820 = vpop.f32.mrb[0].mxu0
  %v1821 = vadd.f32 0.0, %v1820
  %v1822 = vpop.f32.mrb[0].mxu0
  %1823 = vmatprep.mubr.bf16.mxu0 0
  %1824 = vmatmul.mubr.bf16.gmra.mrb[0].mxu0 %v1633
  %v1825 = vpop.f32.mrb[0].mxu0
  %v1826 = vadd.f32 0.0, %v1825
  %v1827 = vpop.f32.mrb[0].mxu0
  %v1828 = vpop.f32.mrb[0].mxu0
  %v1829 = vadd.f32 0.0, %v1828
  %v1830 = vpop.f32.mrb[0].mxu0
  %1831 = vmatprep.mubr.bf16.mxu0 0
  %1832 = vmatmul.mubr.bf16.gmra.mrb[0].mxu0 %v1634
  %v1833 = vpop.f32.mrb[0].mxu0
  %v1834 = vadd.f32 0.0, %v1833
  %v1835 = vpop.f32.mrb[0].mxu0
  %v1836 = vpop.f32.mrb[0].mxu0
  %v1837 = vadd.f32 0.0, %v1836
  %v1838 = vpop.f32.mrb[0].mxu0
  %1839 = vmatprep.mubr.bf16.mxu0 0
  %1840 = vmatmul.mubr.bf16.gmra.mrb[0].mxu0 %v1635
  %v1841 = vpop.f32.mrb[0].mxu0
  %v1842 = vadd.f32 0.0, %v1841
  %v1843 = vpop.f32.mrb[0].mxu0
  %v1844 = vpop.f32.mrb[0].mxu0
  %v1845 = vadd.f32 0.0, %v1844
  %v1846 = vpop.f32.mrb[0].mxu0
  %1847 = vmatprep.mubr.bf16.mxu0 0
  %1848 = vmatmul.mubr.bf16.gmra.mrb[0].mxu0 %v1636
  %v1849 = vpop.f32.mrb[0].mxu0
  %v1850 = vadd.f32 0.0, %v1849
  %v1851 = vpop.f32.mrb[0].mxu0
  %v1852 = vpop.f32.mrb[0].mxu0
  %v1853 = vadd.f32 0.0, %v1852
  %v1854 = vpop.f32.mrb[0].mxu0
  %1855 = vmatprep.mubr.bf16.mxu0 0
  %1856 = vmatmul.mubr.bf16.gmra.mrb[0].mxu0 %v1637
  %v1857 = vpop.f32.mrb[0].mxu0
  %v1858 = vadd.f32 0.0, %v1857
  %v1859 = vpop.f32.mrb[0].mxu0
  %v1860 = vpop.f32.mrb[0].mxu0
  %v1861 = vadd.f32 0.0, %v1860
  %v1862 = vpop.f32.mrb[0].mxu0
  %1863 = vdwg.mxu0
  %v1864 = vpack.c.bf16 %v1741, %v1738
  %v1865 = vpack.c.bf16 %v1749, %v1746
  %v1866 = vpack.c.bf16 %v1757, %v1754
  %v1867 = vpack.c.bf16 %v1765, %v1762
  %v1868 = vpack.c.bf16 %v1773, %v1770
  %v1869 = vpack.c.bf16 %v1781, %v1778
  %v1870 = vpack.c.bf16 %v1789, %v1786
  %v1871 = vpack.c.bf16 %v1797, %v1794
  %v1872 = vpack.c.bf16 %v1805, %v1802
  %v1873 = vpack.c.bf16 %v1813, %v1810
  %v1874 = vpack.c.bf16 %v1821, %v1818
  %v1875 = vpack.c.bf16 %v1829, %v1826
  %v1876 = vpack.c.bf16 %v1837, %v1834
  %v1877 = vpack.c.bf16 %v1845, %v1842
  %v1878 = vpack.c.bf16 %v1853, %v1850
  %v1879 = vpack.c.bf16 %v1861, %v1858
  %s1880 = scalar_lea.vmem %s3, 2
  %v1881 = vld [vmem:[%s1880] sm:$0x1]
  %v1883 = vlaneseq
  %v1884 = vshrl.u32 %v1883, 7
  %v1885 = vsub.s32 0, %v1884
  %v1886 = vrot.slane %v1881, %v1885
  %1888 = vmatprep.subr.bf16.mxu0 0
  %1889 = vmatpush1.bf16.msra.mxu0 %v1864
  %1890 = vmatprep.subr.bf16.mxu0 0
  %1891 = vmatpush1.bf16.msra.mxu0 %v1865
  %1892 = vmatprep.subr.bf16.mxu0 0
  %1893 = vmatpush1.bf16.msra.mxu0 %v1866
  %1894 = vmatprep.subr.bf16.mxu0 0
  %1895 = vmatpush1.bf16.msra.mxu0 %v1867
  %1896 = vmatprep.subr.bf16.mxu0 0
  %1897 = vmatpush1.bf16.msra.mxu0 %v1868
  %1898 = vmatprep.subr.bf16.mxu0 0
  %1899 = vmatpush1.bf16.msra.mxu0 %v1869
  %1900 = vmatprep.subr.bf16.mxu0 0
  %1901 = vmatpush1.bf16.msra.mxu0 %v1870
  %1902 = vmatprep.subr.bf16.mxu0 0
  %1903 = vmatpush1.bf16.msra.mxu0 %v1871
  %1904 = vmatprep.subr.bf16.mxu0 0
  %1905 = vmatpush1.bf16.msra.mxu0 %v1872
  %1906 = vmatprep.subr.bf16.mxu0 0
  %1907 = vmatpush1.bf16.msra.mxu0 %v1873
  %1908 = vmatprep.subr.bf16.mxu0 0
  %1909 = vmatpush1.bf16.msra.mxu0 %v1874
  %1910 = vmatprep.subr.bf16.mxu0 0
  %1911 = vmatpush1.bf16.msra.mxu0 %v1875
  %1912 = vmatprep.subr.bf16.mxu0 0
  %1913 = vmatpush1.bf16.msra.mxu0 %v1876
  %1914 = vmatprep.subr.bf16.mxu0 0
  %1915 = vmatpush1.bf16.msra.mxu0 %v1877
  %1916 = vmatprep.subr.bf16.mxu0 0
  %1917 = vmatpush1.bf16.msra.mxu0 %v1878
  %1918 = vmatprep.subr.bf16.mxu0 0
  %1919 = vmatpush1.bf16.msra.mxu0 %v1879
  %1920 = vmatprep.mubr.bf16.mxu0 %v523
  %1921 = vmatmul.mubr.bf16.gmra.mrb[0].mxu0 %v522
  %v1922 = vpop.f32.mrb[0].mxu0
  %v1923 = vadd.f32 %v1886, %v1922
  %v1924 = vpop.f32.mrb[0].mxu0
  %v1925 = vpop.f32.mrb[0].mxu0
  %v1926 = vadd.f32 %v1886, %v1925
  %v1927 = vpop.f32.mrb[0].mxu0
  %1928 = vmatprep.mubr.bf16.mxu0 %v525
  %1929 = vmatmul.mubr.bf16.gmra.mrb[0].mxu0 %v524
  %v1930 = vpop.f32.mrb[0].mxu0
  %v1931 = vadd.f32 %v1886, %v1930
  %v1932 = vpop.f32.mrb[0].mxu0
  %v1933 = vpop.f32.mrb[0].mxu0
  %v1934 = vadd.f32 %v1886, %v1933
  %v1935 = vpop.f32.mrb[0].mxu0
  %1936 = vmatprep.mubr.bf16.mxu0 %v527
  %1937 = vmatmul.mubr.bf16.gmra.mrb[0].mxu0 %v526
  %v1938 = vpop.f32.mrb[0].mxu0
  %v1939 = vadd.f32 %v1886, %v1938
  %v1940 = vpop.f32.mrb[0].mxu0
  %v1941 = vpop.f32.mrb[0].mxu0
  %v1942 = vadd.f32 %v1886, %v1941
  %v1943 = vpop.f32.mrb[0].mxu0
  %1944 = vmatprep.mubr.bf16.mxu0 %v529
  %1945 = vmatmul.mubr.bf16.gmra.mrb[0].mxu0 %v528
  %v1946 = vpop.f32.mrb[0].mxu0
  %v1947 = vadd.f32 %v1886, %v1946
  %v1948 = vpop.f32.mrb[0].mxu0
  %v1949 = vpop.f32.mrb[0].mxu0
  %v1950 = vadd.f32 %v1886, %v1949
  %v1951 = vpop.f32.mrb[0].mxu0
  %1952 = vmatprep.mubr.bf16.mxu0 %v531
  %1953 = vmatmul.mubr.bf16.gmra.mrb[0].mxu0 %v530
  %v1954 = vpop.f32.mrb[0].mxu0
  %v1955 = vadd.f32 %v1886, %v1954
  %v1956 = vpop.f32.mrb[0].mxu0
  %v1957 = vpop.f32.mrb[0].mxu0
  %v1958 = vadd.f32 %v1886, %v1957
  %v1959 = vpop.f32.mrb[0].mxu0
  %1960 = vmatprep.mubr.bf16.mxu0 %v533
  %1961 = vmatmul.mubr.bf16.gmra.mrb[0].mxu0 %v532
  %v1962 = vpop.f32.mrb[0].mxu0
  %v1963 = vadd.f32 %v1886, %v1962
  %v1964 = vpop.f32.mrb[0].mxu0
  %v1965 = vpop.f32.mrb[0].mxu0
  %v1966 = vadd.f32 %v1886, %v1965
  %v1967 = vpop.f32.mrb[0].mxu0
  %1968 = vmatprep.mubr.bf16.mxu0 %v535
  %1969 = vmatmul.mubr.bf16.gmra.mrb[0].mxu0 %v534
  %v1970 = vpop.f32.mrb[0].mxu0
  %v1971 = vadd.f32 %v1886, %v1970
  %v1972 = vpop.f32.mrb[0].mxu0
  %v1973 = vpop.f32.mrb[0].mxu0
  %v1974 = vadd.f32 %v1886, %v1973
  %v1975 = vpop.f32.mrb[0].mxu0
  %1976 = vmatprep.mubr.bf16.mxu0 %v537
  %1977 = vmatmul.mubr.bf16.gmra.mrb[0].mxu0 %v536
  %v1978 = vpop.f32.mrb[0].mxu0
  %v1979 = vadd.f32 %v1886, %v1978
  %v1980 = vpop.f32.mrb[0].mxu0
  %v1981 = vpop.f32.mrb[0].mxu0
  %v1982 = vadd.f32 %v1886, %v1981
  %v1983 = vpop.f32.mrb[0].mxu0
  %1984 = vmatprep.mubr.bf16.mxu0 %v539
  %1985 = vmatmul.mubr.bf16.gmra.mrb[0].mxu0 %v538
  %v1986 = vpop.f32.mrb[0].mxu0
  %v1987 = vadd.f32 %v1886, %v1986
  %v1988 = vpop.f32.mrb[0].mxu0
  %v1989 = vpop.f32.mrb[0].mxu0
  %v1990 = vadd.f32 %v1886, %v1989
  %v1991 = vpop.f32.mrb[0].mxu0
  %1992 = vmatprep.mubr.bf16.mxu0 %v541
  %1993 = vmatmul.mubr.bf16.gmra.mrb[0].mxu0 %v540
  %v1994 = vpop.f32.mrb[0].mxu0
  %v1995 = vadd.f32 %v1886, %v1994
  %v1996 = vpop.f32.mrb[0].mxu0
  %v1997 = vpop.f32.mrb[0].mxu0
  %v1998 = vadd.f32 %v1886, %v1997
  %v1999 = vpop.f32.mrb[0].mxu0
  %2000 = vmatprep.mubr.bf16.mxu0 %v543
  %2001 = vmatmul.mubr.bf16.gmra.mrb[0].mxu0 %v542
  %v2002 = vpop.f32.mrb[0].mxu0
  %v2003 = vadd.f32 %v1886, %v2002
  %v2004 = vpop.f32.mrb[0].mxu0
  %v2005 = vpop.f32.mrb[0].mxu0
  %v2006 = vadd.f32 %v1886, %v2005
  %v2007 = vpop.f32.mrb[0].mxu0
  %2008 = vmatprep.mubr.bf16.mxu0 %v545
  %2009 = vmatmul.mubr.bf16.gmra.mrb[0].mxu0 %v544
  %v2010 = vpop.f32.mrb[0].mxu0
  %v2011 = vadd.f32 %v1886, %v2010
  %v2012 = vpop.f32.mrb[0].mxu0
  %v2013 = vpop.f32.mrb[0].mxu0
  %v2014 = vadd.f32 %v1886, %v2013
  %v2015 = vpop.f32.mrb[0].mxu0
  %2016 = vmatprep.mubr.bf16.mxu0 %v547
  %2017 = vmatmul.mubr.bf16.gmra.mrb[0].mxu0 %v546
  %v2018 = vpop.f32.mrb[0].mxu0
  %v2019 = vadd.f32 %v1886, %v2018
  %v2020 = vpop.f32.mrb[0].mxu0
  %v2021 = vpop.f32.mrb[0].mxu0
  %v2022 = vadd.f32 %v1886, %v2021
  %v2023 = vpop.f32.mrb[0].mxu0
  %2024 = vmatprep.mubr.bf16.mxu0 %v549
  %2025 = vmatmul.mubr.bf16.gmra.mrb[0].mxu0 %v548
  %v2026 = vpop.f32.mrb[0].mxu0
  %v2027 = vadd.f32 %v1886, %v2026
  %v2028 = vpop.f32.mrb[0].mxu0
  %v2029 = vpop.f32.mrb[0].mxu0
  %v2030 = vadd.f32 %v1886, %v2029
  %v2031 = vpop.f32.mrb[0].mxu0
  %2032 = vmatprep.mubr.bf16.mxu0 %v551
  %2033 = vmatmul.mubr.bf16.gmra.mrb[0].mxu0 %v550
  %v2034 = vpop.f32.mrb[0].mxu0
  %v2035 = vadd.f32 %v1886, %v2034
  %v2036 = vpop.f32.mrb[0].mxu0
  %v2037 = vpop.f32.mrb[0].mxu0
  %v2038 = vadd.f32 %v1886, %v2037
  %v2039 = vpop.f32.mrb[0].mxu0
  %2040 = vmatprep.mubr.bf16.mxu0 %v553
  %2041 = vmatmul.mubr.bf16.gmra.mrb[0].mxu0 %v552
  %v2042 = vpop.f32.mrb[0].mxu0
  %v2043 = vadd.f32 %v1886, %v2042
  %v2044 = vpop.f32.mrb[0].mxu0
  %v2045 = vpop.f32.mrb[0].mxu0
  %v2046 = vadd.f32 %v1886, %v2045
  %v2047 = vpop.f32.mrb[0].mxu0
  %2048 = vdwg.mxu0
  %v2049 = vxor.u32 %v1923, 2147483648
  %v2050 = vxor.u32 %v1926, 2147483648
  %v2051 = vxor.u32 %v1931, 2147483648
  %v2052 = vxor.u32 %v1934, 2147483648
  %v2053 = vxor.u32 %v1939, 2147483648
  %v2054 = vxor.u32 %v1942, 2147483648
  %v2055 = vxor.u32 %v1947, 2147483648
  %v2056 = vxor.u32 %v1950, 2147483648
  %v2057 = vxor.u32 %v1955, 2147483648
  %v2058 = vxor.u32 %v1958, 2147483648
  %v2059 = vxor.u32 %v1963, 2147483648
  %v2060 = vxor.u32 %v1966, 2147483648
  %v2061 = vxor.u32 %v1971, 2147483648
  %v2062 = vxor.u32 %v1974, 2147483648
  %v2063 = vxor.u32 %v1979, 2147483648
  %v2064 = vxor.u32 %v1982, 2147483648
  %v2065 = vxor.u32 %v1987, 2147483648
  %v2066 = vxor.u32 %v1990, 2147483648
  %v2067 = vxor.u32 %v1995, 2147483648
  %v2068 = vxor.u32 %v1998, 2147483648
  %v2069 = vxor.u32 %v2003, 2147483648
  %v2070 = vxor.u32 %v2006, 2147483648
  %v2071 = vxor.u32 %v2011, 2147483648
  %v2072 = vxor.u32 %v2014, 2147483648
  %v2073 = vxor.u32 %v2019, 2147483648
  %v2074 = vxor.u32 %v2022, 2147483648
  %v2075 = vxor.u32 %v2027, 2147483648
  %v2076 = vxor.u32 %v2030, 2147483648
  %v2077 = vxor.u32 %v2035, 2147483648
  %v2078 = vxor.u32 %v2038, 2147483648
  %v2079 = vxor.u32 %v2043, 2147483648
  %v2080 = vxor.u32 %v2046, 2147483648
  %v2081 = vmul.f32 %v2049, 1.442695
  %v2082 = vpow.pop %v2081
  %v2083 = vmul.f32 %v2050, 1.442695
  %v2084 = vpow.pop %v2083
  %v2085 = vmul.f32 %v2051, 1.442695
  %v2086 = vpow.pop %v2085
  %v2087 = vmul.f32 %v2052, 1.442695
  %v2088 = vpow.pop %v2087
  %v2089 = vmul.f32 %v2053, 1.442695
  %v2090 = vpow.pop %v2089
  %v2091 = vmul.f32 %v2054, 1.442695
  %v2092 = vpow.pop %v2091
  %v2093 = vmul.f32 %v2055, 1.442695
  %v2094 = vpow.pop %v2093
  %v2095 = vmul.f32 %v2056, 1.442695
  %v2096 = vpow.pop %v2095
  %v2097 = vmul.f32 %v2057, 1.442695
  %v2098 = vpow.pop %v2097
  %v2099 = vmul.f32 %v2058, 1.442695
  %v2100 = vpow.pop %v2099
  %v2101 = vmul.f32 %v2059, 1.442695
  %v2102 = vpow.pop %v2101
  %v2103 = vmul.f32 %v2060, 1.442695
  %v2104 = vpow.pop %v2103
  %v2105 = vmul.f32 %v2061, 1.442695
  %v2106 = vpow.pop %v2105
  %v2107 = vmul.f32 %v2062, 1.442695
  %v2108 = vpow.pop %v2107
  %v2109 = vmul.f32 %v2063, 1.442695
  %v2110 = vpow.pop %v2109
  %v2111 = vmul.f32 %v2064, 1.442695
  %v2112 = vpow.pop %v2111
  %v2113 = vmul.f32 %v2065, 1.442695
  %v2114 = vpow.pop %v2113
  %v2115 = vmul.f32 %v2066, 1.442695
  %v2116 = vpow.pop %v2115
  %v2117 = vmul.f32 %v2067, 1.442695
  %v2118 = vpow.pop %v2117
  %v2119 = vmul.f32 %v2068, 1.442695
  %v2120 = vpow.pop %v2119
  %v2121 = vmul.f32 %v2069, 1.442695
  %v2122 = vpow.pop %v2121
  %v2123 = vmul.f32 %v2070, 1.442695
  %v2124 = vpow.pop %v2123
  %v2125 = vmul.f32 %v2071, 1.442695
  %v2126 = vpow.pop %v2125
  %v2127 = vmul.f32 %v2072, 1.442695
  %v2128 = vpow.pop %v2127
  %v2129 = vmul.f32 %v2073, 1.442695
  %v2130 = vpow.pop %v2129
  %v2131 = vmul.f32 %v2074, 1.442695
  %v2132 = vpow.pop %v2131
  %v2133 = vmul.f32 %v2075, 1.442695
  %v2134 = vpow.pop %v2133
  %v2135 = vmul.f32 %v2076, 1.442695
  %v2136 = vpow.pop %v2135
  %v2137 = vmul.f32 %v2077, 1.442695
  %v2138 = vpow.pop %v2137
  %v2139 = vmul.f32 %v2078, 1.442695
  %v2140 = vpow.pop %v2139
  %v2141 = vmul.f32 %v2079, 1.442695
  %v2142 = vpow.pop %v2141
  %v2143 = vmul.f32 %v2080, 1.442695
  %v2144 = vpow.pop %v2143
  %v2145 = vadd.f32 %v2082, 1.0
  %v2146 = vadd.f32 %v2084, 1.0
  %v2147 = vadd.f32 %v2086, 1.0
  %v2148 = vadd.f32 %v2088, 1.0
  %v2149 = vadd.f32 %v2090, 1.0
  %v2150 = vadd.f32 %v2092, 1.0
  %v2151 = vadd.f32 %v2094, 1.0
  %v2152 = vadd.f32 %v2096, 1.0
  %v2153 = vadd.f32 %v2098, 1.0
  %v2154 = vadd.f32 %v2100, 1.0
  %v2155 = vadd.f32 %v2102, 1.0
  %v2156 = vadd.f32 %v2104, 1.0
  %v2157 = vadd.f32 %v2106, 1.0
  %v2158 = vadd.f32 %v2108, 1.0
  %v2159 = vadd.f32 %v2110, 1.0
  %v2160 = vadd.f32 %v2112, 1.0
  %v2161 = vadd.f32 %v2114, 1.0
  %v2162 = vadd.f32 %v2116, 1.0
  %v2163 = vadd.f32 %v2118, 1.0
  %v2164 = vadd.f32 %v2120, 1.0
  %v2165 = vadd.f32 %v2122, 1.0
  %v2166 = vadd.f32 %v2124, 1.0
  %v2167 = vadd.f32 %v2126, 1.0
  %v2168 = vadd.f32 %v2128, 1.0
  %v2169 = vadd.f32 %v2130, 1.0
  %v2170 = vadd.f32 %v2132, 1.0
  %v2171 = vadd.f32 %v2134, 1.0
  %v2172 = vadd.f32 %v2136, 1.0
  %v2173 = vadd.f32 %v2138, 1.0
  %v2174 = vadd.f32 %v2140, 1.0
  %v2175 = vadd.f32 %v2142, 1.0
  %v2176 = vadd.f32 %v2144, 1.0
  %v2177 = vrcp.pop %v2145
  %v2178 = vmul.f32 1.0, %v2177
  %v2179 = vrcp.pop %v2146
  %v2180 = vmul.f32 1.0, %v2179
  %v2181 = vrcp.pop %v2147
  %v2182 = vmul.f32 1.0, %v2181
  %v2183 = vrcp.pop %v2148
  %v2184 = vmul.f32 1.0, %v2183
  %v2185 = vrcp.pop %v2149
  %v2186 = vmul.f32 1.0, %v2185
  %v2187 = vrcp.pop %v2150
  %v2188 = vmul.f32 1.0, %v2187
  %v2189 = vrcp.pop %v2151
  %v2190 = vmul.f32 1.0, %v2189
  %v2191 = vrcp.pop %v2152
  %v2192 = vmul.f32 1.0, %v2191
  %v2193 = vrcp.pop %v2153
  %v2194 = vmul.f32 1.0, %v2193
  %v2195 = vrcp.pop %v2154
  %v2196 = vmul.f32 1.0, %v2195
  %v2197 = vrcp.pop %v2155
  %v2198 = vmul.f32 1.0, %v2197
  %v2199 = vrcp.pop %v2156
  %v2200 = vmul.f32 1.0, %v2199
  %v2201 = vrcp.pop %v2157
  %v2202 = vmul.f32 1.0, %v2201
  %v2203 = vrcp.pop %v2158
  %v2204 = vmul.f32 1.0, %v2203
  %v2205 = vrcp.pop %v2159
  %v2206 = vmul.f32 1.0, %v2205
  %v2207 = vrcp.pop %v2160
  %v2208 = vmul.f32 1.0, %v2207
  %v2209 = vrcp.pop %v2161
  %v2210 = vmul.f32 1.0, %v2209
  %v2211 = vrcp.pop %v2162
  %v2212 = vmul.f32 1.0, %v2211
  %v2213 = vrcp.pop %v2163
  %v2214 = vmul.f32 1.0, %v2213
  %v2215 = vrcp.pop %v2164
  %v2216 = vmul.f32 1.0, %v2215
  %v2217 = vrcp.pop %v2165
  %v2218 = vmul.f32 1.0, %v2217
  %v2219 = vrcp.pop %v2166
  %v2220 = vmul.f32 1.0, %v2219
  %v2221 = vrcp.pop %v2167
  %v2222 = vmul.f32 1.0, %v2221
  %v2223 = vrcp.pop %v2168
  %v2224 = vmul.f32 1.0, %v2223
  %v2225 = vrcp.pop %v2169
  %v2226 = vmul.f32 1.0, %v2225
  %v2227 = vrcp.pop %v2170
  %v2228 = vmul.f32 1.0, %v2227
  %v2229 = vrcp.pop %v2171
  %v2230 = vmul.f32 1.0, %v2229
  %v2231 = vrcp.pop %v2172
  %v2232 = vmul.f32 1.0, %v2231
  %v2233 = vrcp.pop %v2173
  %v2234 = vmul.f32 1.0, %v2233
  %v2235 = vrcp.pop %v2174
  %v2236 = vmul.f32 1.0, %v2235
  %v2237 = vrcp.pop %v2175
  %v2238 = vmul.f32 1.0, %v2237
  %v2239 = vrcp.pop %v2176
  %v2240 = vmul.f32 1.0, %v2239
  %v2241 = vmul.f32 %v1923, %v2178
  %v2242 = vmul.f32 %v1926, %v2180
  %v2243 = vmul.f32 %v1931, %v2182
  %v2244 = vmul.f32 %v1934, %v2184
  %v2245 = vmul.f32 %v1939, %v2186
  %v2246 = vmul.f32 %v1942, %v2188
  %v2247 = vmul.f32 %v1947, %v2190
  %v2248 = vmul.f32 %v1950, %v2192
  %v2249 = vmul.f32 %v1955, %v2194
  %v2250 = vmul.f32 %v1958, %v2196
  %v2251 = vmul.f32 %v1963, %v2198
  %v2252 = vmul.f32 %v1966, %v2200
  %v2253 = vmul.f32 %v1971, %v2202
  %v2254 = vmul.f32 %v1974, %v2204
  %v2255 = vmul.f32 %v1979, %v2206
  %v2256 = vmul.f32 %v1982, %v2208
  %v2257 = vmul.f32 %v1987, %v2210
  %v2258 = vmul.f32 %v1990, %v2212
  %v2259 = vmul.f32 %v1995, %v2214
  %v2260 = vmul.f32 %v1998, %v2216
  %v2261 = vmul.f32 %v2003, %v2218
  %v2262 = vmul.f32 %v2006, %v2220
  %v2263 = vmul.f32 %v2011, %v2222
  %v2264 = vmul.f32 %v2014, %v2224
  %v2265 = vmul.f32 %v2019, %v2226
  %v2266 = vmul.f32 %v2022, %v2228
  %v2267 = vmul.f32 %v2027, %v2230
  %v2268 = vmul.f32 %v2030, %v2232
  %v2269 = vmul.f32 %v2035, %v2234
  %v2270 = vmul.f32 %v2038, %v2236
  %v2271 = vmul.f32 %v2043, %v2238
  %v2272 = vmul.f32 %v2046, %v2240
  %v2273 = vpack.c.bf16 %v2242, %v2241
  %v2274 = vpack.c.bf16 %v2244, %v2243
  %v2275 = vpack.c.bf16 %v2246, %v2245
  %v2276 = vpack.c.bf16 %v2248, %v2247
  %v2277 = vpack.c.bf16 %v2250, %v2249
  %v2278 = vpack.c.bf16 %v2252, %v2251
  %v2279 = vpack.c.bf16 %v2254, %v2253
  %v2280 = vpack.c.bf16 %v2256, %v2255
  %v2281 = vpack.c.bf16 %v2258, %v2257
  %v2282 = vpack.c.bf16 %v2260, %v2259
  %v2283 = vpack.c.bf16 %v2262, %v2261
  %v2284 = vpack.c.bf16 %v2264, %v2263
  %v2285 = vpack.c.bf16 %v2266, %v2265
  %v2286 = vpack.c.bf16 %v2268, %v2267
  %v2287 = vpack.c.bf16 %v2270, %v2269
  %v2288 = vpack.c.bf16 %v2272, %v2271
  %s2289 = scalar_lea.vmem %s2, 192
  %v2290 = vld [vmem:[%s2289] sm:$0xf]
  %v2291 = vld [vmem:[%s2289 + $0x4] sm:$0xf]
  %v2292 = vld [vmem:[%s2289 + $0x8] sm:$0xf]
  %v2293 = vld [vmem:[%s2289 + $0xc] sm:$0xf]
  %v2294 = vld [vmem:[%s2289 + $0x10] sm:$0xf]
  %v2295 = vld [vmem:[%s2289 + $0x14] sm:$0xf]
  %v2296 = vld [vmem:[%s2289 + $0x18] sm:$0xf]
  %v2297 = vld [vmem:[%s2289 + $0x1c] sm:$0xf]
  %v2298 = vld [vmem:[%s2289 + $0x20] sm:$0xf]
  %v2299 = vld [vmem:[%s2289 + $0x24] sm:$0xf]
  %v2300 = vld [vmem:[%s2289 + $0x28] sm:$0xf]
  %v2301 = vld [vmem:[%s2289 + $0x2c] sm:$0xf]
  %v2302 = vld [vmem:[%s2289 + $0x30] sm:$0xf]
  %v2303 = vld [vmem:[%s2289 + $0x34] sm:$0xf]
  %v2304 = vld [vmem:[%s2289 + $0x38] sm:$0xf]
  %v2305 = vld [vmem:[%s2289 + $0x3c] sm:$0xf]
  %v2322 = vunpack.c.l.b16 %v2290
  %v2323 = vunpack.c.l.b16 %v2291
  %v2324 = vunpack.c.l.b16 %v2292
  %v2325 = vunpack.c.l.b16 %v2293
  %v2326 = vunpack.c.l.b16 %v2294
  %v2327 = vunpack.c.l.b16 %v2295
  %v2328 = vunpack.c.l.b16 %v2296
  %v2329 = vunpack.c.l.b16 %v2297
  %v2330 = vunpack.c.l.b16 %v2298
  %v2331 = vunpack.c.l.b16 %v2299
  %v2332 = vunpack.c.l.b16 %v2300
  %v2333 = vunpack.c.l.b16 %v2301
  %v2334 = vunpack.c.l.b16 %v2302
  %v2335 = vunpack.c.l.b16 %v2303
  %v2336 = vunpack.c.l.b16 %v2304
  %v2337 = vunpack.c.l.b16 %v2305
  %v2338 = vpack.c.b16 %v2323, %v2322
  %v2339 = vpack.c.b16 %v2325, %v2324
  %v2340 = vpack.c.b16 %v2327, %v2326
  %v2341 = vpack.c.b16 %v2329, %v2328
  %v2342 = vpack.c.b16 %v2331, %v2330
  %v2343 = vpack.c.b16 %v2333, %v2332
  %v2344 = vpack.c.b16 %v2335, %v2334
  %v2345 = vpack.c.b16 %v2337, %v2336
  %2354 = vmatprep.subr.bf16.mxu0 0
  %2355 = vmatpush1.bf16.msra.mxu0 %v2338
  %2356 = vmatprep.subr.bf16.mxu0 0
  %2357 = vmatpush1.bf16.msra.mxu0 %v2339
  %2358 = vmatprep.subr.bf16.mxu0 0
  %2359 = vmatpush1.bf16.msra.mxu0 %v2340
  %2360 = vmatprep.subr.bf16.mxu0 0
  %2361 = vmatpush1.bf16.msra.mxu0 %v2341
  %2362 = vmatprep.subr.bf16.mxu0 0
  %2363 = vmatpush1.bf16.msra.mxu0 %v2342
  %2364 = vmatprep.subr.bf16.mxu0 0
  %2365 = vmatpush1.bf16.msra.mxu0 %v2343
  %2366 = vmatprep.subr.bf16.mxu0 0
  %2367 = vmatpush1.bf16.msra.mxu0 %v2344
  %2368 = vmatprep.subr.bf16.mxu0 0
  %2369 = vmatpush1.bf16.msra.mxu0 %v2345
  %2370 = vmatprep.subr.bf16.mxu0 0
  %2371 = vmatpush1.bf16.msra.mxu0 0
  %2372 = vmatprep.subr.bf16.mxu0 0
  %2373 = vmatpush1.bf16.msra.mxu0 0
  %2374 = vmatprep.subr.bf16.mxu0 0
  %2375 = vmatpush1.bf16.msra.mxu0 0
  %2376 = vmatprep.subr.bf16.mxu0 0
  %2377 = vmatpush1.bf16.msra.mxu0 0
  %2378 = vmatprep.subr.bf16.mxu0 0
  %2379 = vmatpush1.bf16.msra.mxu0 0
  %2380 = vmatprep.subr.bf16.mxu0 0
  %2381 = vmatpush1.bf16.msra.mxu0 0
  %2382 = vmatprep.subr.bf16.mxu0 0
  %2383 = vmatpush1.bf16.msra.mxu0 0
  %2384 = vmatprep.subr.bf16.mxu0 0
  %2385 = vmatpush1.bf16.msra.mxu0 0
  %2386 = vmatprep.mubr.bf16.mxu0 0
  %2387 = vmatmul.mubr.bf16.gmra.mrb[0].mxu0 %v2273
  %v2388 = vpop.f32.mrb[0].mxu0
  %v2389 = vadd.f32 0.0, %v2388
  %v2390 = vpop.f32.mrb[0].mxu0
  %v2391 = vpop.f32.mrb[0].mxu0
  %v2392 = vadd.f32 0.0, %v2391
  %v2393 = vpop.f32.mrb[0].mxu0
  %2394 = vmatprep.mubr.bf16.mxu0 0
  %2395 = vmatmul.mubr.bf16.gmra.mrb[0].mxu0 %v2274
  %v2396 = vpop.f32.mrb[0].mxu0
  %v2397 = vadd.f32 0.0, %v2396
  %v2398 = vpop.f32.mrb[0].mxu0
  %v2399 = vpop.f32.mrb[0].mxu0
  %v2400 = vadd.f32 0.0, %v2399
  %v2401 = vpop.f32.mrb[0].mxu0
  %2402 = vmatprep.mubr.bf16.mxu0 0
  %2403 = vmatmul.mubr.bf16.gmra.mrb[0].mxu0 %v2275
  %v2404 = vpop.f32.mrb[0].mxu0
  %v2405 = vadd.f32 0.0, %v2404
  %v2406 = vpop.f32.mrb[0].mxu0
  %v2407 = vpop.f32.mrb[0].mxu0
  %v2408 = vadd.f32 0.0, %v2407
  %v2409 = vpop.f32.mrb[0].mxu0
  %2410 = vmatprep.mubr.bf16.mxu0 0
  %2411 = vmatmul.mubr.bf16.gmra.mrb[0].mxu0 %v2276
  %v2412 = vpop.f32.mrb[0].mxu0
  %v2413 = vadd.f32 0.0, %v2412
  %v2414 = vpop.f32.mrb[0].mxu0
  %v2415 = vpop.f32.mrb[0].mxu0
  %v2416 = vadd.f32 0.0, %v2415
  %v2417 = vpop.f32.mrb[0].mxu0
  %2418 = vmatprep.mubr.bf16.mxu0 0
  %2419 = vmatmul.mubr.bf16.gmra.mrb[0].mxu0 %v2277
  %v2420 = vpop.f32.mrb[0].mxu0
  %v2421 = vadd.f32 0.0, %v2420
  %v2422 = vpop.f32.mrb[0].mxu0
  %v2423 = vpop.f32.mrb[0].mxu0
  %v2424 = vadd.f32 0.0, %v2423
  %v2425 = vpop.f32.mrb[0].mxu0
  %2426 = vmatprep.mubr.bf16.mxu0 0
  %2427 = vmatmul.mubr.bf16.gmra.mrb[0].mxu0 %v2278
  %v2428 = vpop.f32.mrb[0].mxu0
  %v2429 = vadd.f32 0.0, %v2428
  %v2430 = vpop.f32.mrb[0].mxu0
  %v2431 = vpop.f32.mrb[0].mxu0
  %v2432 = vadd.f32 0.0, %v2431
  %v2433 = vpop.f32.mrb[0].mxu0
  %2434 = vmatprep.mubr.bf16.mxu0 0
  %2435 = vmatmul.mubr.bf16.gmra.mrb[0].mxu0 %v2279
  %v2436 = vpop.f32.mrb[0].mxu0
  %v2437 = vadd.f32 0.0, %v2436
  %v2438 = vpop.f32.mrb[0].mxu0
  %v2439 = vpop.f32.mrb[0].mxu0
  %v2440 = vadd.f32 0.0, %v2439
  %v2441 = vpop.f32.mrb[0].mxu0
  %2442 = vmatprep.mubr.bf16.mxu0 0
  %2443 = vmatmul.mubr.bf16.gmra.mrb[0].mxu0 %v2280
  %v2444 = vpop.f32.mrb[0].mxu0
  %v2445 = vadd.f32 0.0, %v2444
  %v2446 = vpop.f32.mrb[0].mxu0
  %v2447 = vpop.f32.mrb[0].mxu0
  %v2448 = vadd.f32 0.0, %v2447
  %v2449 = vpop.f32.mrb[0].mxu0
  %2450 = vmatprep.mubr.bf16.mxu0 0
  %2451 = vmatmul.mubr.bf16.gmra.mrb[0].mxu0 %v2281
  %v2452 = vpop.f32.mrb[0].mxu0
  %v2453 = vadd.f32 0.0, %v2452
  %v2454 = vpop.f32.mrb[0].mxu0
  %v2455 = vpop.f32.mrb[0].mxu0
  %v2456 = vadd.f32 0.0, %v2455
  %v2457 = vpop.f32.mrb[0].mxu0
  %2458 = vmatprep.mubr.bf16.mxu0 0
  %2459 = vmatmul.mubr.bf16.gmra.mrb[0].mxu0 %v2282
  %v2460 = vpop.f32.mrb[0].mxu0
  %v2461 = vadd.f32 0.0, %v2460
  %v2462 = vpop.f32.mrb[0].mxu0
  %v2463 = vpop.f32.mrb[0].mxu0
  %v2464 = vadd.f32 0.0, %v2463
  %v2465 = vpop.f32.mrb[0].mxu0
  %2466 = vmatprep.mubr.bf16.mxu0 0
  %2467 = vmatmul.mubr.bf16.gmra.mrb[0].mxu0 %v2283
  %v2468 = vpop.f32.mrb[0].mxu0
  %v2469 = vadd.f32 0.0, %v2468
  %v2470 = vpop.f32.mrb[0].mxu0
  %v2471 = vpop.f32.mrb[0].mxu0
  %v2472 = vadd.f32 0.0, %v2471
  %v2473 = vpop.f32.mrb[0].mxu0
  %2474 = vmatprep.mubr.bf16.mxu0 0
  %2475 = vmatmul.mubr.bf16.gmra.mrb[0].mxu0 %v2284
  %v2476 = vpop.f32.mrb[0].mxu0
  %v2477 = vadd.f32 0.0, %v2476
  %v2478 = vpop.f32.mrb[0].mxu0
  %v2479 = vpop.f32.mrb[0].mxu0
  %v2480 = vadd.f32 0.0, %v2479
  %v2481 = vpop.f32.mrb[0].mxu0
  %2482 = vmatprep.mubr.bf16.mxu0 0
  %2483 = vmatmul.mubr.bf16.gmra.mrb[0].mxu0 %v2285
  %v2484 = vpop.f32.mrb[0].mxu0
  %v2485 = vadd.f32 0.0, %v2484
  %v2486 = vpop.f32.mrb[0].mxu0
  %v2487 = vpop.f32.mrb[0].mxu0
  %v2488 = vadd.f32 0.0, %v2487
  %v2489 = vpop.f32.mrb[0].mxu0
  %2490 = vmatprep.mubr.bf16.mxu0 0
  %2491 = vmatmul.mubr.bf16.gmra.mrb[0].mxu0 %v2286
  %v2492 = vpop.f32.mrb[0].mxu0
  %v2493 = vadd.f32 0.0, %v2492
  %v2494 = vpop.f32.mrb[0].mxu0
  %v2495 = vpop.f32.mrb[0].mxu0
  %v2496 = vadd.f32 0.0, %v2495
  %v2497 = vpop.f32.mrb[0].mxu0
  %2498 = vmatprep.mubr.bf16.mxu0 0
  %2499 = vmatmul.mubr.bf16.gmra.mrb[0].mxu0 %v2287
  %v2500 = vpop.f32.mrb[0].mxu0
  %v2501 = vadd.f32 0.0, %v2500
  %v2502 = vpop.f32.mrb[0].mxu0
  %v2503 = vpop.f32.mrb[0].mxu0
  %v2504 = vadd.f32 0.0, %v2503
  %v2505 = vpop.f32.mrb[0].mxu0
  %2506 = vmatprep.mubr.bf16.mxu0 0
  %2507 = vmatmul.mubr.bf16.gmra.mrb[0].mxu0 %v2288
  %v2508 = vpop.f32.mrb[0].mxu0
  %v2509 = vadd.f32 0.0, %v2508
  %v2510 = vpop.f32.mrb[0].mxu0
  %v2511 = vpop.f32.mrb[0].mxu0
  %v2512 = vadd.f32 0.0, %v2511
  %v2513 = vpop.f32.mrb[0].mxu0
  %2514 = vdwg.mxu0
  %v2515 = vpack.c.bf16 %v2392, %v2389
  %v2516 = vpack.c.bf16 %v2400, %v2397
  %v2517 = vpack.c.bf16 %v2408, %v2405
  %v2518 = vpack.c.bf16 %v2416, %v2413
  %v2519 = vpack.c.bf16 %v2424, %v2421
  %v2520 = vpack.c.bf16 %v2432, %v2429
  %v2521 = vpack.c.bf16 %v2440, %v2437
  %v2522 = vpack.c.bf16 %v2448, %v2445
  %v2523 = vpack.c.bf16 %v2456, %v2453
  %v2524 = vpack.c.bf16 %v2464, %v2461
  %v2525 = vpack.c.bf16 %v2472, %v2469
  %v2526 = vpack.c.bf16 %v2480, %v2477
  %v2527 = vpack.c.bf16 %v2488, %v2485
  %v2528 = vpack.c.bf16 %v2496, %v2493
  %v2529 = vpack.c.bf16 %v2504, %v2501
  %v2530 = vpack.c.bf16 %v2512, %v2509
  %s2531 = scalar_lea.vmem %s3, 3
  %v2532 = vld [vmem:[%s2531] sm:$0x1]
  %v2534 = vlaneseq
  %v2535 = vshrl.u32 %v2534, 7
  %v2536 = vsub.s32 0, %v2535
  %v2537 = vrot.slane %v2532, %v2536
  %2539 = vmatprep.subr.bf16.mxu0 0
  %2540 = vmatpush1.bf16.msra.mxu0 %v2515
  %2541 = vmatprep.subr.bf16.mxu0 0
  %2542 = vmatpush1.bf16.msra.mxu0 %v2516
  %2543 = vmatprep.subr.bf16.mxu0 0
  %2544 = vmatpush1.bf16.msra.mxu0 %v2517
  %2545 = vmatprep.subr.bf16.mxu0 0
  %2546 = vmatpush1.bf16.msra.mxu0 %v2518
  %2547 = vmatprep.subr.bf16.mxu0 0
  %2548 = vmatpush1.bf16.msra.mxu0 %v2519
  %2549 = vmatprep.subr.bf16.mxu0 0
  %2550 = vmatpush1.bf16.msra.mxu0 %v2520
  %2551 = vmatprep.subr.bf16.mxu0 0
  %2552 = vmatpush1.bf16.msra.mxu0 %v2521
  %2553 = vmatprep.subr.bf16.mxu0 0
  %2554 = vmatpush1.bf16.msra.mxu0 %v2522
  %2555 = vmatprep.subr.bf16.mxu0 0
  %2556 = vmatpush1.bf16.msra.mxu0 %v2523
  %2557 = vmatprep.subr.bf16.mxu0 0
  %2558 = vmatpush1.bf16.msra.mxu0 %v2524
  %2559 = vmatprep.subr.bf16.mxu0 0
  %2560 = vmatpush1.bf16.msra.mxu0 %v2525
  %2561 = vmatprep.subr.bf16.mxu0 0
  %2562 = vmatpush1.bf16.msra.mxu0 %v2526
  %2563 = vmatprep.subr.bf16.mxu0 0
  %2564 = vmatpush1.bf16.msra.mxu0 %v2527
  %2565 = vmatprep.subr.bf16.mxu0 0
  %2566 = vmatpush1.bf16.msra.mxu0 %v2528
  %2567 = vmatprep.subr.bf16.mxu0 0
  %2568 = vmatpush1.bf16.msra.mxu0 %v2529
  %2569 = vmatprep.subr.bf16.mxu0 0
  %2570 = vmatpush1.bf16.msra.mxu0 %v2530
  %2571 = vmatprep.mubr.bf16.mxu0 %v523
  %2572 = vmatmul.mubr.bf16.gmra.mrb[0].mxu0 %v522
  %v2573 = vpop.f32.mrb[0].mxu0
  %v2574 = vadd.f32 %v2537, %v2573
  %v2575 = vpop.f32.mrb[0].mxu0
  %v2576 = vpop.f32.mrb[0].mxu0
  %v2577 = vadd.f32 %v2537, %v2576
  %v2578 = vpop.f32.mrb[0].mxu0
  %2579 = vmatprep.mubr.bf16.mxu0 %v525
  %2580 = vmatmul.mubr.bf16.gmra.mrb[0].mxu0 %v524
  %v2581 = vpop.f32.mrb[0].mxu0
  %v2582 = vadd.f32 %v2537, %v2581
  %v2583 = vpop.f32.mrb[0].mxu0
  %v2584 = vpop.f32.mrb[0].mxu0
  %v2585 = vadd.f32 %v2537, %v2584
  %v2586 = vpop.f32.mrb[0].mxu0
  %2587 = vmatprep.mubr.bf16.mxu0 %v527
  %2588 = vmatmul.mubr.bf16.gmra.mrb[0].mxu0 %v526
  %v2589 = vpop.f32.mrb[0].mxu0
  %v2590 = vadd.f32 %v2537, %v2589
  %v2591 = vpop.f32.mrb[0].mxu0
  %v2592 = vpop.f32.mrb[0].mxu0
  %v2593 = vadd.f32 %v2537, %v2592
  %v2594 = vpop.f32.mrb[0].mxu0
  %2595 = vmatprep.mubr.bf16.mxu0 %v529
  %2596 = vmatmul.mubr.bf16.gmra.mrb[0].mxu0 %v528
  %v2597 = vpop.f32.mrb[0].mxu0
  %v2598 = vadd.f32 %v2537, %v2597
  %v2599 = vpop.f32.mrb[0].mxu0
  %v2600 = vpop.f32.mrb[0].mxu0
  %v2601 = vadd.f32 %v2537, %v2600
  %v2602 = vpop.f32.mrb[0].mxu0
  %2603 = vmatprep.mubr.bf16.mxu0 %v531
  %2604 = vmatmul.mubr.bf16.gmra.mrb[0].mxu0 %v530
  %v2605 = vpop.f32.mrb[0].mxu0
  %v2606 = vadd.f32 %v2537, %v2605
  %v2607 = vpop.f32.mrb[0].mxu0
  %v2608 = vpop.f32.mrb[0].mxu0
  %v2609 = vadd.f32 %v2537, %v2608
  %v2610 = vpop.f32.mrb[0].mxu0
  %2611 = vmatprep.mubr.bf16.mxu0 %v533
  %2612 = vmatmul.mubr.bf16.gmra.mrb[0].mxu0 %v532
  %v2613 = vpop.f32.mrb[0].mxu0
  %v2614 = vadd.f32 %v2537, %v2613
  %v2615 = vpop.f32.mrb[0].mxu0
  %v2616 = vpop.f32.mrb[0].mxu0
  %v2617 = vadd.f32 %v2537, %v2616
  %v2618 = vpop.f32.mrb[0].mxu0
  %2619 = vmatprep.mubr.bf16.mxu0 %v535
  %2620 = vmatmul.mubr.bf16.gmra.mrb[0].mxu0 %v534
  %v2621 = vpop.f32.mrb[0].mxu0
  %v2622 = vadd.f32 %v2537, %v2621
  %v2623 = vpop.f32.mrb[0].mxu0
  %v2624 = vpop.f32.mrb[0].mxu0
  %v2625 = vadd.f32 %v2537, %v2624
  %v2626 = vpop.f32.mrb[0].mxu0
  %2627 = vmatprep.mubr.bf16.mxu0 %v537
  %2628 = vmatmul.mubr.bf16.gmra.mrb[0].mxu0 %v536
  %v2629 = vpop.f32.mrb[0].mxu0
  %v2630 = vadd.f32 %v2537, %v2629
  %v2631 = vpop.f32.mrb[0].mxu0
  %v2632 = vpop.f32.mrb[0].mxu0
  %v2633 = vadd.f32 %v2537, %v2632
  %v2634 = vpop.f32.mrb[0].mxu0
  %2635 = vmatprep.mubr.bf16.mxu0 %v539
  %2636 = vmatmul.mubr.bf16.gmra.mrb[0].mxu0 %v538
  %v2637 = vpop.f32.mrb[0].mxu0
  %v2638 = vadd.f32 %v2537, %v2637
  %v2639 = vpop.f32.mrb[0].mxu0
  %v2640 = vpop.f32.mrb[0].mxu0
  %v2641 = vadd.f32 %v2537, %v2640
  %v2642 = vpop.f32.mrb[0].mxu0
  %2643 = vmatprep.mubr.bf16.mxu0 %v541
  %2644 = vmatmul.mubr.bf16.gmra.mrb[0].mxu0 %v540
  %v2645 = vpop.f32.mrb[0].mxu0
  %v2646 = vadd.f32 %v2537, %v2645
  %v2647 = vpop.f32.mrb[0].mxu0
  %v2648 = vpop.f32.mrb[0].mxu0
  %v2649 = vadd.f32 %v2537, %v2648
  %v2650 = vpop.f32.mrb[0].mxu0
  %2651 = vmatprep.mubr.bf16.mxu0 %v543
  %2652 = vmatmul.mubr.bf16.gmra.mrb[0].mxu0 %v542
  %v2653 = vpop.f32.mrb[0].mxu0
  %v2654 = vadd.f32 %v2537, %v2653
  %v2655 = vpop.f32.mrb[0].mxu0
  %v2656 = vpop.f32.mrb[0].mxu0
  %v2657 = vadd.f32 %v2537, %v2656
  %v2658 = vpop.f32.mrb[0].mxu0
  %2659 = vmatprep.mubr.bf16.mxu0 %v545
  %2660 = vmatmul.mubr.bf16.gmra.mrb[0].mxu0 %v544
  %v2661 = vpop.f32.mrb[0].mxu0
  %v2662 = vadd.f32 %v2537, %v2661
  %v2663 = vpop.f32.mrb[0].mxu0
  %v2664 = vpop.f32.mrb[0].mxu0
  %v2665 = vadd.f32 %v2537, %v2664
  %v2666 = vpop.f32.mrb[0].mxu0
  %2667 = vmatprep.mubr.bf16.mxu0 %v547
  %2668 = vmatmul.mubr.bf16.gmra.mrb[0].mxu0 %v546
  %v2669 = vpop.f32.mrb[0].mxu0
  %v2670 = vadd.f32 %v2537, %v2669
  %v2671 = vpop.f32.mrb[0].mxu0
  %v2672 = vpop.f32.mrb[0].mxu0
  %v2673 = vadd.f32 %v2537, %v2672
  %v2674 = vpop.f32.mrb[0].mxu0
  %2675 = vmatprep.mubr.bf16.mxu0 %v549
  %2676 = vmatmul.mubr.bf16.gmra.mrb[0].mxu0 %v548
  %v2677 = vpop.f32.mrb[0].mxu0
  %v2678 = vadd.f32 %v2537, %v2677
  %v2679 = vpop.f32.mrb[0].mxu0
  %v2680 = vpop.f32.mrb[0].mxu0
  %v2681 = vadd.f32 %v2537, %v2680
  %v2682 = vpop.f32.mrb[0].mxu0
  %2683 = vmatprep.mubr.bf16.mxu0 %v551
  %2684 = vmatmul.mubr.bf16.gmra.mrb[0].mxu0 %v550
  %v2685 = vpop.f32.mrb[0].mxu0
  %v2686 = vadd.f32 %v2537, %v2685
  %v2687 = vpop.f32.mrb[0].mxu0
  %v2688 = vpop.f32.mrb[0].mxu0
  %v2689 = vadd.f32 %v2537, %v2688
  %v2690 = vpop.f32.mrb[0].mxu0
  %2691 = vmatprep.mubr.bf16.mxu0 %v553
  %2692 = vmatmul.mubr.bf16.gmra.mrb[0].mxu0 %v552
  %v2693 = vpop.f32.mrb[0].mxu0
  %v2694 = vadd.f32 %v2537, %v2693
  %v2695 = vpop.f32.mrb[0].mxu0
  %v2696 = vpop.f32.mrb[0].mxu0
  %v2697 = vadd.f32 %v2537, %v2696
  %v2698 = vpop.f32.mrb[0].mxu0
  %2699 = vdwg.mxu0
  %v2700 = vlaneseq
  %v2701 = vand.u32 %v2700, 127
  %vm2702 = vcmp.lt.s32.totalorder %v2701, 8
  %v2703 = vsel %vm2702, %v2574, -1e+30
  %v2704 = vsel %vm2702, %v2577, -1e+30
  %v2705 = vsel %vm2702, %v2582, -1e+30
  %v2706 = vsel %vm2702, %v2585, -1e+30
  %v2707 = vsel %vm2702, %v2590, -1e+30
  %v2708 = vsel %vm2702, %v2593, -1e+30
  %v2709 = vsel %vm2702, %v2598, -1e+30
  %v2710 = vsel %vm2702, %v2601, -1e+30
  %v2711 = vsel %vm2702, %v2606, -1e+30
  %v2712 = vsel %vm2702, %v2609, -1e+30
  %v2713 = vsel %vm2702, %v2614, -1e+30
  %v2714 = vsel %vm2702, %v2617, -1e+30
  %v2715 = vsel %vm2702, %v2622, -1e+30
  %v2716 = vsel %vm2702, %v2625, -1e+30
  %v2717 = vsel %vm2702, %v2630, -1e+30
  %v2718 = vsel %vm2702, %v2633, -1e+30
  %v2719 = vsel %vm2702, %v2638, -1e+30
  %v2720 = vsel %vm2702, %v2641, -1e+30
  %v2721 = vsel %vm2702, %v2646, -1e+30
  %v2722 = vsel %vm2702, %v2649, -1e+30
  %v2723 = vsel %vm2702, %v2654, -1e+30
  %v2724 = vsel %vm2702, %v2657, -1e+30
  %v2725 = vsel %vm2702, %v2662, -1e+30
  %v2726 = vsel %vm2702, %v2665, -1e+30
  %v2727 = vsel %vm2702, %v2670, -1e+30
  %v2728 = vsel %vm2702, %v2673, -1e+30
  %v2729 = vsel %vm2702, %v2678, -1e+30
  %v2730 = vsel %vm2702, %v2681, -1e+30
  %v2731 = vsel %vm2702, %v2686, -1e+30
  %v2732 = vsel %vm2702, %v2689, -1e+30
  %v2733 = vsel %vm2702, %v2694, -1e+30
  %v2734 = vsel %vm2702, %v2697, -1e+30
  %2735 = vmax.xlane.f32.xlu0 %v2703
  %v2736 = vpop.xlane.xlu0 %2735
  %2737 = vmax.xlane.f32.xlu0 %v2704
  %v2738 = vpop.xlane.xlu0 %2737
  %2739 = vmax.xlane.f32.xlu0 %v2705
  %v2740 = vpop.xlane.xlu0 %2739
  %2741 = vmax.xlane.f32.xlu0 %v2706
  %v2742 = vpop.xlane.xlu0 %2741
  %2743 = vmax.xlane.f32.xlu0 %v2707
  %v2744 = vpop.xlane.xlu0 %2743
  %2745 = vmax.xlane.f32.xlu0 %v2708
  %v2746 = vpop.xlane.xlu0 %2745
  %2747 = vmax.xlane.f32.xlu0 %v2709
  %v2748 = vpop.xlane.xlu0 %2747
  %2749 = vmax.xlane.f32.xlu0 %v2710
  %v2750 = vpop.xlane.xlu0 %2749
  %2751 = vmax.xlane.f32.xlu0 %v2711
  %v2752 = vpop.xlane.xlu0 %2751
  %2753 = vmax.xlane.f32.xlu0 %v2712
  %v2754 = vpop.xlane.xlu0 %2753
  %2755 = vmax.xlane.f32.xlu0 %v2713
  %v2756 = vpop.xlane.xlu0 %2755
  %2757 = vmax.xlane.f32.xlu0 %v2714
  %v2758 = vpop.xlane.xlu0 %2757
  %2759 = vmax.xlane.f32.xlu0 %v2715
  %v2760 = vpop.xlane.xlu0 %2759
  %2761 = vmax.xlane.f32.xlu0 %v2716
  %v2762 = vpop.xlane.xlu0 %2761
  %2763 = vmax.xlane.f32.xlu0 %v2717
  %v2764 = vpop.xlane.xlu0 %2763
  %2765 = vmax.xlane.f32.xlu0 %v2718
  %v2766 = vpop.xlane.xlu0 %2765
  %2767 = vmax.xlane.f32.xlu0 %v2719
  %v2768 = vpop.xlane.xlu0 %2767
  %2769 = vmax.xlane.f32.xlu0 %v2720
  %v2770 = vpop.xlane.xlu0 %2769
  %2771 = vmax.xlane.f32.xlu0 %v2721
  %v2772 = vpop.xlane.xlu0 %2771
  %2773 = vmax.xlane.f32.xlu0 %v2722
  %v2774 = vpop.xlane.xlu0 %2773
  %2775 = vmax.xlane.f32.xlu0 %v2723
  %v2776 = vpop.xlane.xlu0 %2775
  %2777 = vmax.xlane.f32.xlu0 %v2724
  %v2778 = vpop.xlane.xlu0 %2777
  %2779 = vmax.xlane.f32.xlu0 %v2725
  %v2780 = vpop.xlane.xlu0 %2779
  %2781 = vmax.xlane.f32.xlu0 %v2726
  %v2782 = vpop.xlane.xlu0 %2781
  %2783 = vmax.xlane.f32.xlu0 %v2727
  %v2784 = vpop.xlane.xlu0 %2783
  %2785 = vmax.xlane.f32.xlu0 %v2728
  %v2786 = vpop.xlane.xlu0 %2785
  %2787 = vmax.xlane.f32.xlu0 %v2729
  %v2788 = vpop.xlane.xlu0 %2787
  %2789 = vmax.xlane.f32.xlu0 %v2730
  %v2790 = vpop.xlane.xlu0 %2789
  %2791 = vmax.xlane.f32.xlu0 %v2731
  %v2792 = vpop.xlane.xlu0 %2791
  %2793 = vmax.xlane.f32.xlu0 %v2732
  %v2794 = vpop.xlane.xlu0 %2793
  %2795 = vmax.xlane.f32.xlu0 %v2733
  %v2796 = vpop.xlane.xlu0 %2795
  %2797 = vmax.xlane.f32.xlu0 %v2734
  %v2798 = vpop.xlane.xlu0 %2797
  %v2799 = vsub.f32 %v2703, %v2736
  %v2800 = vsub.f32 %v2704, %v2738
  %v2801 = vsub.f32 %v2705, %v2740
  %v2802 = vsub.f32 %v2706, %v2742
  %v2803 = vsub.f32 %v2707, %v2744
  %v2804 = vsub.f32 %v2708, %v2746
  %v2805 = vsub.f32 %v2709, %v2748
  %v2806 = vsub.f32 %v2710, %v2750
  %v2807 = vsub.f32 %v2711, %v2752
  %v2808 = vsub.f32 %v2712, %v2754
  %v2809 = vsub.f32 %v2713, %v2756
  %v2810 = vsub.f32 %v2714, %v2758
  %v2811 = vsub.f32 %v2715, %v2760
  %v2812 = vsub.f32 %v2716, %v2762
  %v2813 = vsub.f32 %v2717, %v2764
  %v2814 = vsub.f32 %v2718, %v2766
  %v2815 = vsub.f32 %v2719, %v2768
  %v2816 = vsub.f32 %v2720, %v2770
  %v2817 = vsub.f32 %v2721, %v2772
  %v2818 = vsub.f32 %v2722, %v2774
  %v2819 = vsub.f32 %v2723, %v2776
  %v2820 = vsub.f32 %v2724, %v2778
  %v2821 = vsub.f32 %v2725, %v2780
  %v2822 = vsub.f32 %v2726, %v2782
  %v2823 = vsub.f32 %v2727, %v2784
  %v2824 = vsub.f32 %v2728, %v2786
  %v2825 = vsub.f32 %v2729, %v2788
  %v2826 = vsub.f32 %v2730, %v2790
  %v2827 = vsub.f32 %v2731, %v2792
  %v2828 = vsub.f32 %v2732, %v2794
  %v2829 = vsub.f32 %v2733, %v2796
  %v2830 = vsub.f32 %v2734, %v2798
  %v2831 = vmul.f32 %v2799, 1.442695
  %v2832 = vpow.pop %v2831
  %v2833 = vmul.f32 %v2800, 1.442695
  %v2834 = vpow.pop %v2833
  %v2835 = vmul.f32 %v2801, 1.442695
  %v2836 = vpow.pop %v2835
  %v2837 = vmul.f32 %v2802, 1.442695
  %v2838 = vpow.pop %v2837
  %v2839 = vmul.f32 %v2803, 1.442695
  %v2840 = vpow.pop %v2839
  %v2841 = vmul.f32 %v2804, 1.442695
  %v2842 = vpow.pop %v2841
  %v2843 = vmul.f32 %v2805, 1.442695
  %v2844 = vpow.pop %v2843
  %v2845 = vmul.f32 %v2806, 1.442695
  %v2846 = vpow.pop %v2845
  %v2847 = vmul.f32 %v2807, 1.442695
  %v2848 = vpow.pop %v2847
  %v2849 = vmul.f32 %v2808, 1.442695
  %v2850 = vpow.pop %v2849
  %v2851 = vmul.f32 %v2809, 1.442695
  %v2852 = vpow.pop %v2851
  %v2853 = vmul.f32 %v2810, 1.442695
  %v2854 = vpow.pop %v2853
  %v2855 = vmul.f32 %v2811, 1.442695
  %v2856 = vpow.pop %v2855
  %v2857 = vmul.f32 %v2812, 1.442695
  %v2858 = vpow.pop %v2857
  %v2859 = vmul.f32 %v2813, 1.442695
  %v2860 = vpow.pop %v2859
  %v2861 = vmul.f32 %v2814, 1.442695
  %v2862 = vpow.pop %v2861
  %v2863 = vmul.f32 %v2815, 1.442695
  %v2864 = vpow.pop %v2863
  %v2865 = vmul.f32 %v2816, 1.442695
  %v2866 = vpow.pop %v2865
  %v2867 = vmul.f32 %v2817, 1.442695
  %v2868 = vpow.pop %v2867
  %v2869 = vmul.f32 %v2818, 1.442695
  %v2870 = vpow.pop %v2869
  %v2871 = vmul.f32 %v2819, 1.442695
  %v2872 = vpow.pop %v2871
  %v2873 = vmul.f32 %v2820, 1.442695
  %v2874 = vpow.pop %v2873
  %v2875 = vmul.f32 %v2821, 1.442695
  %v2876 = vpow.pop %v2875
  %v2877 = vmul.f32 %v2822, 1.442695
  %v2878 = vpow.pop %v2877
  %v2879 = vmul.f32 %v2823, 1.442695
  %v2880 = vpow.pop %v2879
  %v2881 = vmul.f32 %v2824, 1.442695
  %v2882 = vpow.pop %v2881
  %v2883 = vmul.f32 %v2825, 1.442695
  %v2884 = vpow.pop %v2883
  %v2885 = vmul.f32 %v2826, 1.442695
  %v2886 = vpow.pop %v2885
  %v2887 = vmul.f32 %v2827, 1.442695
  %v2888 = vpow.pop %v2887
  %v2889 = vmul.f32 %v2828, 1.442695
  %v2890 = vpow.pop %v2889
  %v2891 = vmul.f32 %v2829, 1.442695
  %v2892 = vpow.pop %v2891
  %v2893 = vmul.f32 %v2830, 1.442695
  %v2894 = vpow.pop %v2893
  %2895 = vadd.xlane.f32.xlu0 %v2832
  %v2896 = vpop.xlane.xlu0 %2895
  %2897 = vadd.xlane.f32.xlu0 %v2834
  %v2898 = vpop.xlane.xlu0 %2897
  %2899 = vadd.xlane.f32.xlu0 %v2836
  %v2900 = vpop.xlane.xlu0 %2899
  %2901 = vadd.xlane.f32.xlu0 %v2838
  %v2902 = vpop.xlane.xlu0 %2901
  %2903 = vadd.xlane.f32.xlu0 %v2840
  %v2904 = vpop.xlane.xlu0 %2903
  %2905 = vadd.xlane.f32.xlu0 %v2842
  %v2906 = vpop.xlane.xlu0 %2905
  %2907 = vadd.xlane.f32.xlu0 %v2844
  %v2908 = vpop.xlane.xlu0 %2907
  %2909 = vadd.xlane.f32.xlu0 %v2846
  %v2910 = vpop.xlane.xlu0 %2909
  %2911 = vadd.xlane.f32.xlu0 %v2848
  %v2912 = vpop.xlane.xlu0 %2911
  %2913 = vadd.xlane.f32.xlu0 %v2850
  %v2914 = vpop.xlane.xlu0 %2913
  %2915 = vadd.xlane.f32.xlu0 %v2852
  %v2916 = vpop.xlane.xlu0 %2915
  %2917 = vadd.xlane.f32.xlu0 %v2854
  %v2918 = vpop.xlane.xlu0 %2917
  %2919 = vadd.xlane.f32.xlu0 %v2856
  %v2920 = vpop.xlane.xlu0 %2919
  %2921 = vadd.xlane.f32.xlu0 %v2858
  %v2922 = vpop.xlane.xlu0 %2921
  %2923 = vadd.xlane.f32.xlu0 %v2860
  %v2924 = vpop.xlane.xlu0 %2923
  %2925 = vadd.xlane.f32.xlu0 %v2862
  %v2926 = vpop.xlane.xlu0 %2925
  %2927 = vadd.xlane.f32.xlu0 %v2864
  %v2928 = vpop.xlane.xlu0 %2927
  %2929 = vadd.xlane.f32.xlu0 %v2866
  %v2930 = vpop.xlane.xlu0 %2929
  %2931 = vadd.xlane.f32.xlu0 %v2868
  %v2932 = vpop.xlane.xlu0 %2931
  %2933 = vadd.xlane.f32.xlu0 %v2870
  %v2934 = vpop.xlane.xlu0 %2933
  %2935 = vadd.xlane.f32.xlu0 %v2872
  %v2936 = vpop.xlane.xlu0 %2935
  %2937 = vadd.xlane.f32.xlu0 %v2874
  %v2938 = vpop.xlane.xlu0 %2937
  %2939 = vadd.xlane.f32.xlu0 %v2876
  %v2940 = vpop.xlane.xlu0 %2939
  %2941 = vadd.xlane.f32.xlu0 %v2878
  %v2942 = vpop.xlane.xlu0 %2941
  %2943 = vadd.xlane.f32.xlu0 %v2880
  %v2944 = vpop.xlane.xlu0 %2943
  %2945 = vadd.xlane.f32.xlu0 %v2882
  %v2946 = vpop.xlane.xlu0 %2945
  %2947 = vadd.xlane.f32.xlu0 %v2884
  %v2948 = vpop.xlane.xlu0 %2947
  %2949 = vadd.xlane.f32.xlu0 %v2886
  %v2950 = vpop.xlane.xlu0 %2949
  %2951 = vadd.xlane.f32.xlu0 %v2888
  %v2952 = vpop.xlane.xlu0 %2951
  %2953 = vadd.xlane.f32.xlu0 %v2890
  %v2954 = vpop.xlane.xlu0 %2953
  %2955 = vadd.xlane.f32.xlu0 %v2892
  %v2956 = vpop.xlane.xlu0 %2955
  %2957 = vadd.xlane.f32.xlu0 %v2894
  %v2958 = vpop.xlane.xlu0 %2957
  %v2959 = vlog2.pop %v2896
  %v2960 = vmul.f32 %v2959, 0.6931472
  %v2961 = vlog2.pop %v2898
  %v2962 = vmul.f32 %v2961, 0.6931472
  %v2963 = vlog2.pop %v2900
  %v2964 = vmul.f32 %v2963, 0.6931472
  %v2965 = vlog2.pop %v2902
  %v2966 = vmul.f32 %v2965, 0.6931472
  %v2967 = vlog2.pop %v2904
  %v2968 = vmul.f32 %v2967, 0.6931472
  %v2969 = vlog2.pop %v2906
  %v2970 = vmul.f32 %v2969, 0.6931472
  %v2971 = vlog2.pop %v2908
  %v2972 = vmul.f32 %v2971, 0.6931472
  %v2973 = vlog2.pop %v2910
  %v2974 = vmul.f32 %v2973, 0.6931472
  %v2975 = vlog2.pop %v2912
  %v2976 = vmul.f32 %v2975, 0.6931472
  %v2977 = vlog2.pop %v2914
  %v2978 = vmul.f32 %v2977, 0.6931472
  %v2979 = vlog2.pop %v2916
  %v2980 = vmul.f32 %v2979, 0.6931472
  %v2981 = vlog2.pop %v2918
  %v2982 = vmul.f32 %v2981, 0.6931472
  %v2983 = vlog2.pop %v2920
  %v2984 = vmul.f32 %v2983, 0.6931472
  %v2985 = vlog2.pop %v2922
  %v2986 = vmul.f32 %v2985, 0.6931472
  %v2987 = vlog2.pop %v2924
  %v2988 = vmul.f32 %v2987, 0.6931472
  %v2989 = vlog2.pop %v2926
  %v2990 = vmul.f32 %v2989, 0.6931472
  %v2991 = vlog2.pop %v2928
  %v2992 = vmul.f32 %v2991, 0.6931472
  %v2993 = vlog2.pop %v2930
  %v2994 = vmul.f32 %v2993, 0.6931472
  %v2995 = vlog2.pop %v2932
  %v2996 = vmul.f32 %v2995, 0.6931472
  %v2997 = vlog2.pop %v2934
  %v2998 = vmul.f32 %v2997, 0.6931472
  %v2999 = vlog2.pop %v2936
  %v3000 = vmul.f32 %v2999, 0.6931472
  %v3001 = vlog2.pop %v2938
  %v3002 = vmul.f32 %v3001, 0.6931472
  %v3003 = vlog2.pop %v2940
  %v3004 = vmul.f32 %v3003, 0.6931472
  %v3005 = vlog2.pop %v2942
  %v3006 = vmul.f32 %v3005, 0.6931472
  %v3007 = vlog2.pop %v2944
  %v3008 = vmul.f32 %v3007, 0.6931472
  %v3009 = vlog2.pop %v2946
  %v3010 = vmul.f32 %v3009, 0.6931472
  %v3011 = vlog2.pop %v2948
  %v3012 = vmul.f32 %v3011, 0.6931472
  %v3013 = vlog2.pop %v2950
  %v3014 = vmul.f32 %v3013, 0.6931472
  %v3015 = vlog2.pop %v2952
  %v3016 = vmul.f32 %v3015, 0.6931472
  %v3017 = vlog2.pop %v2954
  %v3018 = vmul.f32 %v3017, 0.6931472
  %v3019 = vlog2.pop %v2956
  %v3020 = vmul.f32 %v3019, 0.6931472
  %v3021 = vlog2.pop %v2958
  %v3022 = vmul.f32 %v3021, 0.6931472
  %v3023 = vsub.f32 %v2799, %v2960
  %v3024 = vsub.f32 %v2800, %v2962
  %v3025 = vsub.f32 %v2801, %v2964
  %v3026 = vsub.f32 %v2802, %v2966
  %v3027 = vsub.f32 %v2803, %v2968
  %v3028 = vsub.f32 %v2804, %v2970
  %v3029 = vsub.f32 %v2805, %v2972
  %v3030 = vsub.f32 %v2806, %v2974
  %v3031 = vsub.f32 %v2807, %v2976
  %v3032 = vsub.f32 %v2808, %v2978
  %v3033 = vsub.f32 %v2809, %v2980
  %v3034 = vsub.f32 %v2810, %v2982
  %v3035 = vsub.f32 %v2811, %v2984
  %v3036 = vsub.f32 %v2812, %v2986
  %v3037 = vsub.f32 %v2813, %v2988
  %v3038 = vsub.f32 %v2814, %v2990
  %v3039 = vsub.f32 %v2815, %v2992
  %v3040 = vsub.f32 %v2816, %v2994
  %v3041 = vsub.f32 %v2817, %v2996
  %v3042 = vsub.f32 %v2818, %v2998
  %v3043 = vsub.f32 %v2819, %v3000
  %v3044 = vsub.f32 %v2820, %v3002
  %v3045 = vsub.f32 %v2821, %v3004
  %v3046 = vsub.f32 %v2822, %v3006
  %v3047 = vsub.f32 %v2823, %v3008
  %v3048 = vsub.f32 %v2824, %v3010
  %v3049 = vsub.f32 %v2825, %v3012
  %v3050 = vsub.f32 %v2826, %v3014
  %v3051 = vsub.f32 %v2827, %v3016
  %v3052 = vsub.f32 %v2828, %v3018
  %v3053 = vsub.f32 %v2829, %v3020
  %v3054 = vsub.f32 %v2830, %v3022
  %3055 = vst [vmem:[%s4] sm:$0xff] %v3023
  %3056 = vst [vmem:[%s4 + $0x8] sm:$0xff] %v3024
  %3057 = vst [vmem:[%s4 + $0x10] sm:$0xff] %v3025
  %3058 = vst [vmem:[%s4 + $0x18] sm:$0xff] %v3026
  %3059 = vst [vmem:[%s4 + $0x20] sm:$0xff] %v3027
  %3060 = vst [vmem:[%s4 + $0x28] sm:$0xff] %v3028
  %3061 = vst [vmem:[%s4 + $0x30] sm:$0xff] %v3029
  %3062 = vst [vmem:[%s4 + $0x38] sm:$0xff] %v3030
  %3063 = vst [vmem:[%s4 + $0x40] sm:$0xff] %v3031
  %3064 = vst [vmem:[%s4 + $0x48] sm:$0xff] %v3032
  %3065 = vst [vmem:[%s4 + $0x50] sm:$0xff] %v3033
  %3066 = vst [vmem:[%s4 + $0x58] sm:$0xff] %v3034
  %3067 = vst [vmem:[%s4 + $0x60] sm:$0xff] %v3035
  %3068 = vst [vmem:[%s4 + $0x68] sm:$0xff] %v3036
  %3069 = vst [vmem:[%s4 + $0x70] sm:$0xff] %v3037
  %3070 = vst [vmem:[%s4 + $0x78] sm:$0xff] %v3038
  %3071 = vst [vmem:[%s4 + $0x80] sm:$0xff] %v3039
  %3072 = vst [vmem:[%s4 + $0x88] sm:$0xff] %v3040
  %3073 = vst [vmem:[%s4 + $0x90] sm:$0xff] %v3041
  %3074 = vst [vmem:[%s4 + $0x98] sm:$0xff] %v3042
  %3075 = vst [vmem:[%s4 + $0xa0] sm:$0xff] %v3043
  %3076 = vst [vmem:[%s4 + $0xa8] sm:$0xff] %v3044
  %3077 = vst [vmem:[%s4 + $0xb0] sm:$0xff] %v3045
  %3078 = vst [vmem:[%s4 + $0xb8] sm:$0xff] %v3046
  %3079 = vst [vmem:[%s4 + $0xc0] sm:$0xff] %v3047
  %3080 = vst [vmem:[%s4 + $0xc8] sm:$0xff] %v3048
  %3081 = vst [vmem:[%s4 + $0xd0] sm:$0xff] %v3049
  %3082 = vst [vmem:[%s4 + $0xd8] sm:$0xff] %v3050
  %3083 = vst [vmem:[%s4 + $0xe0] sm:$0xff] %v3051
  %3084 = vst [vmem:[%s4 + $0xe8] sm:$0xff] %v3052
  %3085 = vst [vmem:[%s4 + $0xf0] sm:$0xff] %v3053
  %3086 = vst [vmem:[%s4 + $0xf8] sm:$0xff] %v3054
  // Predicated region
  $region18: #{_fused_forward.1} parent=0 // pred_check
    _
  $region19: #{_fused_forward.1} parent=0 // pred_check_branch
    %3088 = sbr.rel (0) target = $region21
  $region20: #{_fused_forward.1} parent=0 // pred_region
    _
  $region21: #{_fused_forward.1} parent=0 // pred_fallthru
    _
  // Predicated region
  $region22: #{_fused_forward.1} parent=0 // pred_check
    _
  $region23: #{_fused_forward.1} parent=0 // pred_check_branch
    %3090 = sbr.rel (0) target = $region25
  $region24: #{_fused_forward.1} parent=0 // pred_region
    _
  $region25: #{_fused_forward.1} parent=0 // pred_fallthru
    _

</llo_original>
